<compile_context>
chip_gen: v5e
topology: v5e:2x2
jax: 0.10.0
libtpu: 0.0.40
codegen_flags: <defaults>
</compile_context>

<pallas_src>
from functools import partial

import numpy as np
import jax
import jax.numpy as jnp
from jax import lax
from jax.experimental import pallas as pl
from jax.experimental.pallas import tpu as pltpu


def _gelu_exact(x):
    # nn.GELU() default (exact erf form), computed in fp32.
    return 0.5 * x * (1.0 + lax.erf(x / jnp.sqrt(2.0).astype(x.dtype)))


def _layer_norm(v, gamma, beta, eps=1e-5):
    # fp32 statistics (matches torch.nn.LayerNorm, eps=1e-5).
    mu = jnp.mean(v, axis=-1, keepdims=True)
    var = jnp.mean((v - mu) ** 2, axis=-1, keepdims=True)
    inv = lax.rsqrt(var + eps)
    return (v - mu) * inv * gamma + beta


def _attn_block_kernel(x_ref,
                       g1_ref, b1_ref,
                       wqkv_ref,
                       wproj_ref, bproj_ref,
                       g2_ref, b2_ref,
                       wfc1_ref, bfc1_ref,
                       wfc2_ref, bfc2_ref,
                       o_ref,
                       q_sc, proj_sc,
                       *, num_heads, head_dim, q_tile, n_q_tiles):
    f32 = jnp.float32
    bf16 = jnp.bfloat16
    H, hd = num_heads, head_dim
    D = H * hd

    x = x_ref[0]                                    # (N, D) f32
    N = x.shape[0]

    # ---- norm1 (f32) + fused QKV projection (single dense bf16 GEMM; scale pre-folded) ----
    h1 = _layer_norm(x, g1_ref[...], b1_ref[...])
    qkv = jnp.dot(h1.astype(bf16), wqkv_ref[...],
                  preferred_element_type=f32)       # (N, 3D) f32

    # ---- head split: one reshape + one leading-dim transpose (no per-head stacking) ----
    qkv_h = jnp.transpose(qkv.reshape(N, 3 * H, hd), (1, 0, 2))   # (3H, N, hd) f32
    q_sc[...] = qkv_h[0:H].astype(bf16)             # park Q so query tiles can be ref-sliced
    k = qkv_h[H:2 * H].astype(bf16)                 # (H, N, hd) bf16
    v = qkv_h[2 * H:3 * H].astype(bf16)             # (H, N, hd) bf16
    w_proj = wproj_ref[...]                         # (D, D) bf16

    # ---- attention, tiled over query rows: score tile is (H, TQ, N) f32 ----
    # TODO(synk): for very long N, also tile KV with a flash-style online softmax.
    @pl.loop(0, n_q_tiles)
    def _(t):
        start = pl.multiple_of(t * q_tile, q_tile)
        q_t = q_sc[:, pl.ds(start, q_tile), :]                       # (H, TQ, hd) bf16
        sim = jnp.einsum('hnd,hmd->hnm', q_t, k,
                         preferred_element_type=f32)                 # (H, TQ, N) f32
        sim = sim - jnp.max(sim, axis=-1, keepdims=True)
        p = jnp.exp(sim)
        # approx reciprocal runs on the otherwise-idle EUP slot; ~1e-3 relative error,
        # well inside bf16-matmul noise.  Switch to approx=False for tighter parity.
        p = p * pl.reciprocal(jnp.sum(p, axis=-1, keepdims=True), approx=True)
        ctx = jnp.einsum('hnm,hmd->hnd', p.astype(bf16), v,
                         preferred_element_type=f32)                 # (H, TQ, hd) f32
        # head merge = one transpose + reshape, feeding the unfragmented projection GEMM
        ctx_m = jnp.transpose(ctx, (1, 0, 2)).reshape(q_tile, D)     # (TQ, D) f32
        proj_sc[pl.ds(start, q_tile), :] = jnp.dot(
            ctx_m.astype(bf16), w_proj, preferred_element_type=f32)

    x_res = x + (proj_sc[...] + bproj_ref[...])     # residual 1 (f32)

    # ---- norm2 (f32) + MLP (bf16 GEMMs, f32 accumulate, exact-erf GELU) ----
    h2 = _layer_norm(x_res, g2_ref[...], b2_ref[...])
    hid = jnp.dot(h2.astype(bf16), wfc1_ref[...],
                  preferred_element_type=f32) + bfc1_ref[...]
    hid = _gelu_exact(hid)
    mlp = jnp.dot(hid.astype(bf16), wfc2_ref[...],
                  preferred_element_type=f32) + bfc2_ref[...]
    o_ref[0] = (x_res + mlp).astype(o_ref.dtype)    # residual 2


def prepare_params(params, *, num_heads):
    """One-time host-side prep: cast dense weights to bf16 (half the HBM->VMEM bytes,
    native MXU rate) and fold the softmax scale into the Q columns of the fused QKV
    weight (the QKV projection has no bias, so this is exact)."""
    D = params["w_qkv"].shape[0]
    head_dim = D // num_heads
    scale = head_dim ** -0.5
    w_qkv = jnp.asarray(params["w_qkv"], jnp.float32)
    w_qkv = w_qkv.at[:, 0:D].multiply(scale)
    out = dict(params)
    out["w_qkv"] = w_qkv.astype(jnp.bfloat16)
    out["w_proj"] = jnp.asarray(params["w_proj"]).astype(jnp.bfloat16)
    out["w_fc1"] = jnp.asarray(params["w_fc1"]).astype(jnp.bfloat16)
    out["w_fc2"] = jnp.asarray(params["w_fc2"]).astype(jnp.bfloat16)
    return out


def _pick_q_tile(n):
    # Bound the (H, TQ, N) fp32 score tile; TQ >= 256 amortizes MXU fill/drain on
    # v6e/v7x.  Fall back to a single tile when N is small or has no nice divisor.
    if n <= 256:
        return n
    for tq in (256, 128):
        if n % tq == 0:
            return tq
    return n


def attn_block(x, params, *, num_heads):
    """`params` should come from prepare_params() (one-time bf16 cast + scale fold)."""
    B, N, D = x.shape
    if params["w_qkv"].dtype != jnp.bfloat16:
        # Fallback for raw fp32 params; prefer calling prepare_params() once outside.
        params = prepare_params(params, num_heads=num_heads)
    Hm = params["w_fc1"].shape[1]              # MLP hidden dim
    head_dim = D // num_heads
    q_tile = _pick_q_tile(N)
    n_q_tiles = N // q_tile

    kernel = partial(_attn_block_kernel, num_heads=num_heads, head_dim=head_dim,
                     q_tile=q_tile, n_q_tiles=n_q_tiles)

    # ---- per-generation VMEM budget (advisory limit for Mosaic) ----
    try:
        vmem_cap = int(pltpu.get_tpu_info().vmem_capacity_bytes)
    except Exception:
        vmem_cap = 64 * 1024 * 1024            # conservative default (v7x per-core)
    vmem_budget = int(vmem_cap * 0.85)         # leave headroom for internal scratch

    wbytes = 2 * (D * 3 * D + D * D + D * Hm + Hm * D)      # bf16 weights (single-buffered)
    iobytes = 2 * 2 * 4 * N * D                              # x + out f32, double-buffered
    actbytes = 4 * (3 * N * D + N * Hm + 8 * N * D)          # fp32 temporaries
    actbytes += 2 * (4 * N * D + N * Hm)                     # bf16 temporaries / scratch
    scorebytes = 2 * 4 * num_heads * q_tile * N              # sim + p for one query tile
    est = wbytes + iobytes + actbytes + scorebytes
    vmem_limit = int(min(max(2 * est, 32 * 1024 * 1024), vmem_budget))

    def build(single_buffer_weights):
        def wspec(shape):
            if single_buffer_weights:
                # Grid-invariant block: keep one VMEM copy instead of a double buffer.
                return pl.BlockSpec(shape, lambda b: (0, 0),
                                    pipeline_mode=pl.Buffered(1))
            return pl.BlockSpec(shape, lambda b: (0, 0))

        def pspec(shape):                      # small biases / LN params (f32)
            return pl.BlockSpec(shape, lambda b: (0, 0))

        return pl.pallas_call(
            kernel,
            out_shape=jax.ShapeDtypeStruct((B, N, D), x.dtype),
            grid_spec=pltpu.PrefetchScalarGridSpec(
                num_scalar_prefetch=0,
                grid=(B,),
                in_specs=[
                    pl.BlockSpec((1, N, D), lambda b: (b, 0, 0)),   # x
                    pspec((1, D)),                                   # norm1 gamma
                    pspec((1, D)),                                   # norm1 beta
                    wspec((D, 3 * D)),                               # qkv weight (bf16, scale folded)
                    wspec((D, D)),                                   # proj weight (bf16)
                    pspec((1, D)),                                   # proj bias
                    pspec((1, D)),                                   # norm2 gamma
                    pspec((1, D)),                                   # norm2 beta
                    wspec((D, Hm)),                                  # fc1 weight (bf16)
                    pspec((1, Hm)),                                  # fc1 bias
                    wspec((Hm, D)),                                  # fc2 weight (bf16)
                    pspec((1, D)),                                   # fc2 bias
                ],
                out_specs=pl.BlockSpec((1, N, D), lambda b: (b, 0, 0)),
                scratch_shapes=[
                    pltpu.VMEM((num_heads, N, head_dim), jnp.bfloat16),  # Q, ref-sliced per tile
                    pltpu.VMEM((N, D), jnp.float32),                     # attention proj output
                ]),
            # TODO(synk): add a second "parallel" grid axis (e.g. query tiles) so v7x's
            # two TensorCores both get work when B is small or odd.
            compiler_params=pltpu.CompilerParams(
                dimension_semantics=("parallel",),
                vmem_limit_bytes=vmem_limit),
        )

    args = (x,
            params["g1"], params["b1"],
            params["w_qkv"],
            params["w_proj"], params["b_proj"],
            params["g2"], params["b2"],
            params["w_fc1"], params["b_fc1"],
            params["w_fc2"], params["b_fc2"])
    try:
        return build(single_buffer_weights=True)(*args)
    except Exception:
        # JAX build without single-buffer (Buffered(1)) support: fall back to the
        # default double-buffered weight pipeline (identical numerics, more VMEM).
        return build(single_buffer_weights=False)(*args)


# ---------------- pure-JAX fp32 reference (for verification) ----------------
def attn_block_ref(x, params, *, num_heads):
    B, N, D = x.shape
    hd = D // num_heads
    scale = hd ** -0.5

    def ln(v, g, b):
        mu = v.mean(-1, keepdims=True)
        var = ((v - mu) ** 2).mean(-1, keepdims=True)
        return (v - mu) / jnp.sqrt(var + 1e-5) * g + b

    h1 = ln(x, params["g1"], params["b1"])
    qkv = h1 @ params["w_qkv"]
    q, k, v = jnp.split(qkv, 3, axis=-1)
    q = q.reshape(B, N, num_heads, hd).transpose(0, 2, 1, 3) * scale
    k = k.reshape(B, N, num_heads, hd).transpose(0, 2, 1, 3)
    v = v.reshape(B, N, num_heads, hd).transpose(0, 2, 1, 3)
    sim = jnp.einsum("bhid,bhjd->bhij", q, k)
    p = jax.nn.softmax(sim, axis=-1)
    out = jnp.einsum("bhij,bhjd->bhid", p, v)
    out = out.transpose(0, 2, 1, 3).reshape(B, N, D)
    x_res = x + (out @ params["w_proj"] + params["b_proj"])
    h2 = ln(x_res, params["g2"], params["b2"])
    hid = jax.nn.gelu(h2 @ params["w_fc1"] + params["b_fc1"], approximate=False)
    return x_res + (hid @ params["w_fc2"] + params["b_fc2"])


if __name__ == "__main__":
    B, N, D = 2, 8, 32
    num_heads = 4
    Hm = int(D * 4.0)

    key = jax.random.PRNGKey(0)
    ks = jax.random.split(key, 8)

    # Deterministic synthetic parameters.  Linear weights stored (in, out) so the kernel
    # computes x @ W (equivalent to PyTorch's x @ W.T with W of shape (out, in)).
    params = {
        "g1": jnp.ones((1, D), jnp.float32),
        "b1": jnp.zeros((1, D), jnp.float32),
        "w_qkv": 0.05 * jax.random.normal(ks[0], (D, 3 * D), jnp.float32),
        "w_proj": 0.05 * jax.random.normal(ks[1], (D, D), jnp.float32),
        "b_proj": 0.05 * jax.random.normal(ks[2], (1, D), jnp.float32),
        "g2": jnp.ones((1, D), jnp.float32),
        "b2": jnp.zeros((1, D), jnp.float32),
        "w_fc1": 0.05 * jax.random.normal(ks[3], (D, Hm), jnp.float32),
        "b_fc1": 0.05 * jax.random.normal(ks[4], (1, Hm), jnp.float32),
        "w_fc2": 0.05 * jax.random.normal(ks[5], (Hm, D), jnp.float32),
        "b_fc2": 0.05 * jax.random.normal(ks[6], (1, D), jnp.float32),
    }

    x = jax.random.normal(ks[7], (B, N, D), jnp.float32)

    prepared = prepare_params(params, num_heads=num_heads)   # one-time bf16 cast + scale fold
    out = attn_block(x, prepared, num_heads=num_heads)
    out = jax.block_until_ready(out)

    ref = attn_block_ref(x, params, num_heads=num_heads)
    # bf16 matmul operands with fp32 accumulation vs. a pure-fp32 reference.
    np.testing.assert_allclose(np.asarray(out), np.asarray(ref),
                               rtol=2e-2, atol=2e-2)

    print("KERNEL_OK")
</pallas_src>

<mosaic_0001>
module attributes {stable_mosaic.version = 11 : i64} {
  func.func @_attn_block_kernel(%arg0: i32, %arg1: memref<1x8x32xf32, #tpu.memory_space<vmem>>, %arg2: memref<1x32xf32, #tpu.memory_space<vmem>>, %arg3: memref<1x32xf32, #tpu.memory_space<vmem>>, %arg4: memref<32x96xbf16, #tpu.memory_space<vmem>>, %arg5: memref<32x32xbf16, #tpu.memory_space<vmem>>, %arg6: memref<1x32xf32, #tpu.memory_space<vmem>>, %arg7: memref<1x32xf32, #tpu.memory_space<vmem>>, %arg8: memref<1x32xf32, #tpu.memory_space<vmem>>, %arg9: memref<32x128xbf16, #tpu.memory_space<vmem>>, %arg10: memref<1x128xf32, #tpu.memory_space<vmem>>, %arg11: memref<128x32xbf16, #tpu.memory_space<vmem>>, %arg12: memref<1x32xf32, #tpu.memory_space<vmem>>, %arg13: memref<1x8x32xf32, #tpu.memory_space<vmem>>, %arg14: memref<4x8x8xbf16, #tpu.memory_space<vmem>>, %arg15: memref<8x32xf32, #tpu.memory_space<vmem>>) attributes {dimension_semantics = [#tpu.dimension_semantics<parallel>], iteration_bounds = array<i64: 2>, scalar_prefetch = 0 : i64, scratch_operands = 2 : i64, tpu.core_type = #tpu.core_type<tc>, window_params = [{transform_indices = @transform_0, window_bounds = array<i64: 1, 8, 32>}, {pipeline_mode = #tpu.pipeline_mode<synchronous>, transform_indices = @transform_1, window_bounds = array<i64: 1, 32>}, {pipeline_mode = #tpu.pipeline_mode<synchronous>, transform_indices = @transform_2, window_bounds = array<i64: 1, 32>}, {pipeline_mode = #tpu.pipeline_mode<synchronous>, transform_indices = @transform_3, window_bounds = array<i64: 32, 96>}, {pipeline_mode = #tpu.pipeline_mode<synchronous>, transform_indices = @transform_4, window_bounds = array<i64: 32, 32>}, {pipeline_mode = #tpu.pipeline_mode<synchronous>, transform_indices = @transform_5, window_bounds = array<i64: 1, 32>}, {pipeline_mode = #tpu.pipeline_mode<synchronous>, transform_indices = @transform_6, window_bounds = array<i64: 1, 32>}, {pipeline_mode = #tpu.pipeline_mode<synchronous>, transform_indices = @transform_7, window_bounds = array<i64: 1, 32>}, {pipeline_mode = #tpu.pipeline_mode<synchronous>, transform_indices = @transform_8, window_bounds = array<i64: 32, 128>}, {pipeline_mode = #tpu.pipeline_mode<synchronous>, transform_indices = @transform_9, window_bounds = array<i64: 1, 128>}, {pipeline_mode = #tpu.pipeline_mode<synchronous>, transform_indices = @transform_10, window_bounds = array<i64: 128, 32>}, {pipeline_mode = #tpu.pipeline_mode<synchronous>, transform_indices = @transform_11, window_bounds = array<i64: 1, 32>}, {transform_indices = @transform_12, window_bounds = array<i64: 1, 8, 32>}]} {
    %c0 = arith.constant 0 : index
    %c0_0 = arith.constant 0 : index
    %c0_1 = arith.constant 0 : index
    %0 = vector.load %arg1[%c0, %c0_0, %c0_1] : memref<1x8x32xf32, #tpu.memory_space<vmem>>, vector<1x8x32xf32>
    %1 = vector.shape_cast %0 : vector<1x8x32xf32> to vector<8x32xf32>
    %c0_2 = arith.constant 0 : index
    %c0_3 = arith.constant 0 : index
    %2 = vector.load %arg2[%c0_2, %c0_3] : memref<1x32xf32, #tpu.memory_space<vmem>>, vector<1x32xf32>
    %c0_4 = arith.constant 0 : index
    %c0_5 = arith.constant 0 : index
    %3 = vector.load %arg3[%c0_4, %c0_5] : memref<1x32xf32, #tpu.memory_space<vmem>>, vector<1x32xf32>
    %cst = arith.constant dense<0.000000e+00> : vector<8xf32>
    %4 = vector.multi_reduction <add>, %1, %cst [1] : vector<8x32xf32> to vector<8xf32>
    %5 = vector.shape_cast %4 : vector<8xf32> to vector<8x1xf32>
    %cst_6 = arith.constant 3.200000e+01 : f32
    %6 = vector.broadcast %cst_6 : f32 to vector<8x1xf32>
    %7 = arith.divf %5, %6 : vector<8x1xf32>
    %8 = vector.broadcast %7 : vector<8x1xf32> to vector<8x32xf32>
    %9 = arith.subf %1, %8 : vector<8x32xf32>
    %10 = arith.mulf %9, %9 : vector<8x32xf32>
    %cst_7 = arith.constant dense<0.000000e+00> : vector<8xf32>
    %11 = vector.multi_reduction <add>, %10, %cst_7 [1] : vector<8x32xf32> to vector<8xf32>
    %12 = vector.shape_cast %11 : vector<8xf32> to vector<8x1xf32>
    %cst_8 = arith.constant 3.200000e+01 : f32
    %13 = vector.broadcast %cst_8 : f32 to vector<8x1xf32>
    %14 = arith.divf %12, %13 : vector<8x1xf32>
    %cst_9 = arith.constant 9.99999974E-6 : f32
    %15 = vector.broadcast %cst_9 : f32 to vector<8x1xf32>
    %16 = arith.addf %14, %15 : vector<8x1xf32>
    %17 = math.rsqrt %16 : vector<8x1xf32>
    %18 = vector.broadcast %7 : vector<8x1xf32> to vector<8x32xf32>
    %19 = arith.subf %1, %18 : vector<8x32xf32>
    %20 = vector.broadcast %17 : vector<8x1xf32> to vector<8x32xf32>
    %21 = arith.mulf %19, %20 : vector<8x32xf32>
    %22 = vector.broadcast %2 : vector<1x32xf32> to vector<8x32xf32>
    %23 = arith.mulf %21, %22 : vector<8x32xf32>
    %24 = vector.broadcast %3 : vector<1x32xf32> to vector<8x32xf32>
    %25 = arith.addf %23, %24 : vector<8x32xf32>
    %26 = arith.truncf %25 : vector<8x32xf32> to vector<8x32xbf16>
    %c0_10 = arith.constant 0 : index
    %c0_11 = arith.constant 0 : index
    %27 = vector.load %arg4[%c0_10, %c0_11] : memref<32x96xbf16, #tpu.memory_space<vmem>>, vector<32x96xbf16>
    %cst_12 = arith.constant dense<0.000000e+00> : vector<8x96xf32>
    %28 = tpu.matmul %26, %27, %cst_12 {dimension_numbers = #tpu.dot_dimension_numbers<[1], [0], [0], [1], [0, 0, 1, 1], [], []>} : vector<8x32xbf16>, vector<32x96xbf16>, vector<8x96xf32> -> vector<8x96xf32>
    %29 = vector.shape_cast %28 : vector<8x96xf32> to vector<8x12x8xf32>
    %30 = tpu.transpose %29, [1, 0, 2] : vector<8x12x8xf32> -> vector<12x8x8xf32>
    %31 = vector.extract_strided_slice %30 {offsets = [0, 0, 0], sizes = [4, 8, 8], strides = [1, 1, 1]} : vector<12x8x8xf32> to vector<4x8x8xf32>
    %32 = arith.truncf %31 : vector<4x8x8xf32> to vector<4x8x8xbf16>
    %c0_13 = arith.constant 0 : index
    %c0_14 = arith.constant 0 : index
    %c0_15 = arith.constant 0 : index
    %33 = vector.load %arg14[%c0_13, %c0_14, %c0_15] : memref<4x8x8xbf16, #tpu.memory_space<vmem>>, vector<4x8x8xbf16>
    tpu.vector_store %arg14[%c0_13, %c0_14, %c0_15], %32 {strides = array<i32>} : memref<4x8x8xbf16, #tpu.memory_space<vmem>>, vector<4x8x8xbf16>,
    %34 = vector.extract_strided_slice %30 {offsets = [4, 0, 0], sizes = [4, 8, 8], strides = [1, 1, 1]} : vector<12x8x8xf32> to vector<4x8x8xf32>
    %35 = arith.truncf %34 : vector<4x8x8xf32> to vector<4x8x8xbf16>
    %36 = vector.extract_strided_slice %30 {offsets = [8, 0, 0], sizes = [4, 8, 8], strides = [1, 1, 1]} : vector<12x8x8xf32> to vector<4x8x8xf32>
    %37 = arith.truncf %36 : vector<4x8x8xf32> to vector<4x8x8xbf16>
    %c0_16 = arith.constant 0 : index
    %c0_17 = arith.constant 0 : index
    %38 = vector.load %arg5[%c0_16, %c0_17] : memref<32x32xbf16, #tpu.memory_space<vmem>>, vector<32x32xbf16>
    %c0_i32 = arith.constant 0 : i32
    %c1_i32 = arith.constant 1 : i32
    %39 = arith.muli %c0_i32, %c1_i32 : i32
    %c0_i32_18 = arith.constant 0 : i32
    %40 = arith.addi %c0_i32_18, %39 : i32
    %c8_i32 = arith.constant 8 : i32
    %41 = arith.muli %40, %c8_i32 : i32
    %42 = tpu.assume_multiple %41, 8 : i32
    %c0_19 = arith.constant 0 : index
    %43 = arith.index_cast %42 : i32 to index
    %c0_20 = arith.constant 0 : index
    %44 = vector.load %arg14[%c0_19, %43, %c0_20] : memref<4x8x8xbf16, #tpu.memory_space<vmem>>, vector<4x8x8xbf16>
    "tpu.trace_start"() <{level = 10 : i32, message = "hnd,hmd->hnm"}> : () -> ()
    %cst_21 = arith.constant dense<0.000000e+00> : vector<4x8x8xf32>
    %45 = tpu.matmul %44, %35, %cst_21 {dimension_numbers = #tpu.dot_dimension_numbers<[2], [2], [1], [1], [0, 0, 0, 1, 1, 1], [0], [0]>} : vector<4x8x8xbf16>, vector<4x8x8xbf16>, vector<4x8x8xf32> -> vector<4x8x8xf32>
    "tpu.trace_stop"() : () -> ()
    %cst_22 = arith.constant dense<0xFF800000> : vector<4x8xf32>
    %46 = vector.multi_reduction <maximumf>, %45, %cst_22 [2] : vector<4x8x8xf32> to vector<4x8xf32>
    %47 = vector.shape_cast %46 : vector<4x8xf32> to vector<4x8x1xf32>
    %48 = vector.broadcast %47 : vector<4x8x1xf32> to vector<4x8x8xf32>
    %49 = arith.subf %45, %48 : vector<4x8x8xf32>
    %50 = math.exp %49 : vector<4x8x8xf32>
    %cst_23 = arith.constant dense<0.000000e+00> : vector<4x8xf32>
    %51 = vector.multi_reduction <add>, %50, %cst_23 [2] : vector<4x8x8xf32> to vector<4x8xf32>
    %52 = vector.shape_cast %51 : vector<4x8xf32> to vector<4x8x1xf32>
    %53 = tpu.reciprocal %52 {approx = true} : vector<4x8x1xf32> -> vector<4x8x1xf32>
    %54 = vector.broadcast %53 : vector<4x8x1xf32> to vector<4x8x8xf32>
    %55 = arith.mulf %50, %54 : vector<4x8x8xf32>
    %56 = arith.truncf %55 : vector<4x8x8xf32> to vector<4x8x8xbf16>
    "tpu.trace_start"() <{level = 10 : i32, message = "hnm,hmd->hnd"}> : () -> ()
    %cst_24 = arith.constant dense<0.000000e+00> : vector<4x8x8xf32>
    %57 = tpu.matmul %56, %37, %cst_24 {dimension_numbers = #tpu.dot_dimension_numbers<[2], [1], [1], [2], [0, 0, 0, 1, 1, 2], [0], [0]>} : vector<4x8x8xbf16>, vector<4x8x8xbf16>, vector<4x8x8xf32> -> vector<4x8x8xf32>
    "tpu.trace_stop"() : () -> ()
    %58 = tpu.transpose %57, [1, 0, 2] : vector<4x8x8xf32> -> vector<8x4x8xf32>
    %59 = vector.shape_cast %58 : vector<8x4x8xf32> to vector<8x32xf32>
    %60 = arith.truncf %59 : vector<8x32xf32> to vector<8x32xbf16>
    %cst_25 = arith.constant dense<0.000000e+00> : vector<8x32xf32>
    %61 = tpu.matmul %60, %38, %cst_25 {dimension_numbers = #tpu.dot_dimension_numbers<[1], [0], [0], [1], [0, 0, 1, 1], [], []>} : vector<8x32xbf16>, vector<32x32xbf16>, vector<8x32xf32> -> vector<8x32xf32>
    %62 = arith.index_cast %42 : i32 to index
    %c0_26 = arith.constant 0 : index
    %63 = vector.load %arg15[%62, %c0_26] : memref<8x32xf32, #tpu.memory_space<vmem>>, vector<8x32xf32>
    tpu.vector_store %arg15[%62, %c0_26], %61 {strides = array<i32>} : memref<8x32xf32, #tpu.memory_space<vmem>>, vector<8x32xf32>,
    %c1_i32_27 = arith.constant 1 : i32
    %c0_28 = arith.constant 0 : index
    %c0_29 = arith.constant 0 : index
    %64 = vector.load %arg15[%c0_28, %c0_29] : memref<8x32xf32, #tpu.memory_space<vmem>>, vector<8x32xf32>
    %c0_30 = arith.constant 0 : index
    %c0_31 = arith.constant 0 : index
    %65 = vector.load %arg6[%c0_30, %c0_31] : memref<1x32xf32, #tpu.memory_space<vmem>>, vector<1x32xf32>
    %66 = vector.broadcast %65 : vector<1x32xf32> to vector<8x32xf32>
    %67 = arith.addf %64, %66 : vector<8x32xf32>
    %68 = arith.addf %1, %67 : vector<8x32xf32>
    %c0_32 = arith.constant 0 : index
    %c0_33 = arith.constant 0 : index
    %69 = vector.load %arg7[%c0_32, %c0_33] : memref<1x32xf32, #tpu.memory_space<vmem>>, vector<1x32xf32>
    %c0_34 = arith.constant 0 : index
    %c0_35 = arith.constant 0 : index
    %70 = vector.load %arg8[%c0_34, %c0_35] : memref<1x32xf32, #tpu.memory_space<vmem>>, vector<1x32xf32>
    %cst_36 = arith.constant dense<0.000000e+00> : vector<8xf32>
    %71 = vector.multi_reduction <add>, %68, %cst_36 [1] : vector<8x32xf32> to vector<8xf32>
    %72 = vector.shape_cast %71 : vector<8xf32> to vector<8x1xf32>
    %cst_37 = arith.constant 3.200000e+01 : f32
    %73 = vector.broadcast %cst_37 : f32 to vector<8x1xf32>
    %74 = arith.divf %72, %73 : vector<8x1xf32>
    %75 = vector.broadcast %74 : vector<8x1xf32> to vector<8x32xf32>
    %76 = arith.subf %68, %75 : vector<8x32xf32>
    %77 = arith.mulf %76, %76 : vector<8x32xf32>
    %cst_38 = arith.constant dense<0.000000e+00> : vector<8xf32>
    %78 = vector.multi_reduction <add>, %77, %cst_38 [1] : vector<8x32xf32> to vector<8xf32>
    %79 = vector.shape_cast %78 : vector<8xf32> to vector<8x1xf32>
    %cst_39 = arith.constant 3.200000e+01 : f32
    %80 = vector.broadcast %cst_39 : f32 to vector<8x1xf32>
    %81 = arith.divf %79, %80 : vector<8x1xf32>
    %cst_40 = arith.constant 9.99999974E-6 : f32
    %82 = vector.broadcast %cst_40 : f32 to vector<8x1xf32>
    %83 = arith.addf %81, %82 : vector<8x1xf32>
    %84 = math.rsqrt %83 : vector<8x1xf32>
    %85 = vector.broadcast %74 : vector<8x1xf32> to vector<8x32xf32>
    %86 = arith.subf %68, %85 : vector<8x32xf32>
    %87 = vector.broadcast %84 : vector<8x1xf32> to vector<8x32xf32>
    %88 = arith.mulf %86, %87 : vector<8x32xf32>
    %89 = vector.broadcast %69 : vector<1x32xf32> to vector<8x32xf32>
    %90 = arith.mulf %88, %89 : vector<8x32xf32>
    %91 = vector.broadcast %70 : vector<1x32xf32> to vector<8x32xf32>
    %92 = arith.addf %90, %91 : vector<8x32xf32>
    %93 = arith.truncf %92 : vector<8x32xf32> to vector<8x32xbf16>
    %c0_41 = arith.constant 0 : index
    %c0_42 = arith.constant 0 : index
    %94 = vector.load %arg9[%c0_41, %c0_42] : memref<32x128xbf16, #tpu.memory_space<vmem>>, vector<32x128xbf16>
    %cst_43 = arith.constant dense<0.000000e+00> : vector<8x128xf32>
    %95 = tpu.matmul %93, %94, %cst_43 {dimension_numbers = #tpu.dot_dimension_numbers<[1], [0], [0], [1], [0, 0, 1, 1], [], []>} : vector<8x32xbf16>, vector<32x128xbf16>, vector<8x128xf32> -> vector<8x128xf32>
    %c0_44 = arith.constant 0 : index
    %c0_45 = arith.constant 0 : index
    %96 = vector.load %arg10[%c0_44, %c0_45] : memref<1x128xf32, #tpu.memory_space<vmem>>, vector<1x128xf32>
    %97 = vector.broadcast %96 : vector<1x128xf32> to vector<8x128xf32>
    %98 = arith.addf %95, %97 : vector<8x128xf32>
    %cst_46 = arith.constant 5.000000e-01 : f32
    %99 = vector.broadcast %cst_46 : f32 to vector<8x128xf32>
    %100 = arith.mulf %99, %98 : vector<8x128xf32>
    %cst_47 = arith.constant 2.000000e+00 : f32
    %101 = math.sqrt %cst_47 : f32
    %102 = vector.broadcast %101 : f32 to vector<8x128xf32>
    %103 = arith.divf %98, %102 : vector<8x128xf32>
    %104 = math.erf %103 : vector<8x128xf32>
    %cst_48 = arith.constant 1.000000e+00 : f32
    %105 = vector.broadcast %cst_48 : f32 to vector<8x128xf32>
    %106 = arith.addf %105, %104 : vector<8x128xf32>
    %107 = arith.mulf %100, %106 : vector<8x128xf32>
    %108 = arith.truncf %107 : vector<8x128xf32> to vector<8x128xbf16>
    %c0_49 = arith.constant 0 : index
    %c0_50 = arith.constant 0 : index
    %109 = vector.load %arg11[%c0_49, %c0_50] : memref<128x32xbf16, #tpu.memory_space<vmem>>, vector<128x32xbf16>
    %cst_51 = arith.constant dense<0.000000e+00> : vector<8x32xf32>
    %110 = tpu.matmul %108, %109, %cst_51 {dimension_numbers = #tpu.dot_dimension_numbers<[1], [0], [0], [1], [0, 0, 1, 1], [], []>} : vector<8x128xbf16>, vector<128x32xbf16>, vector<8x32xf32> -> vector<8x32xf32>
    %c0_52 = arith.constant 0 : index
    %c0_53 = arith.constant 0 : index
    %111 = vector.load %arg12[%c0_52, %c0_53] : memref<1x32xf32, #tpu.memory_space<vmem>>, vector<1x32xf32>
    %112 = vector.broadcast %111 : vector<1x32xf32> to vector<8x32xf32>
    %113 = arith.addf %110, %112 : vector<8x32xf32>
    %114 = arith.addf %68, %113 : vector<8x32xf32>
    %c0_54 = arith.constant 0 : index
    %c0_55 = arith.constant 0 : index
    %c0_56 = arith.constant 0 : index
    %115 = vector.load %arg13[%c0_54, %c0_55, %c0_56] : memref<1x8x32xf32, #tpu.memory_space<vmem>>, vector<1x8x32xf32>
    %116 = vector.shape_cast %115 : vector<1x8x32xf32> to vector<8x32xf32>
    %117 = vector.shape_cast %114 : vector<8x32xf32> to vector<1x8x32xf32>
    tpu.vector_store %arg13[%c0_54, %c0_55, %c0_56], %117 {strides = array<i32>} : memref<1x8x32xf32, #tpu.memory_space<vmem>>, vector<1x8x32xf32>,
    return
  }
  func.func @transform_0(%arg0: i32) -> (i32, i32, i32) {
    %c0_i32 = arith.constant 0 : i32
    %c0_i32_0 = arith.constant 0 : i32
    %c0_i32_1 = arith.constant 0 : i32
    return %arg0, %c0_i32, %c0_i32_0 : i32, i32, i32
  }
  func.func @transform_1(%arg0: i32) -> (i32, i32) {
    %c0_i32 = arith.constant 0 : i32
    %c0_i32_0 = arith.constant 0 : i32
    %c0_i32_1 = arith.constant 0 : i32
    return %c0_i32, %c0_i32_0 : i32, i32
  }
  func.func @transform_2(%arg0: i32) -> (i32, i32) {
    %c0_i32 = arith.constant 0 : i32
    %c0_i32_0 = arith.constant 0 : i32
    %c0_i32_1 = arith.constant 0 : i32
    return %c0_i32, %c0_i32_0 : i32, i32
  }
  func.func @transform_3(%arg0: i32) -> (i32, i32) {
    %c0_i32 = arith.constant 0 : i32
    %c0_i32_0 = arith.constant 0 : i32
    %c0_i32_1 = arith.constant 0 : i32
    return %c0_i32, %c0_i32_0 : i32, i32
  }
  func.func @transform_4(%arg0: i32) -> (i32, i32) {
    %c0_i32 = arith.constant 0 : i32
    %c0_i32_0 = arith.constant 0 : i32
    %c0_i32_1 = arith.constant 0 : i32
    return %c0_i32, %c0_i32_0 : i32, i32
  }
  func.func @transform_5(%arg0: i32) -> (i32, i32) {
    %c0_i32 = arith.constant 0 : i32
    %c0_i32_0 = arith.constant 0 : i32
    %c0_i32_1 = arith.constant 0 : i32
    return %c0_i32, %c0_i32_0 : i32, i32
  }
  func.func @transform_6(%arg0: i32) -> (i32, i32) {
    %c0_i32 = arith.constant 0 : i32
    %c0_i32_0 = arith.constant 0 : i32
    %c0_i32_1 = arith.constant 0 : i32
    return %c0_i32, %c0_i32_0 : i32, i32
  }
  func.func @transform_7(%arg0: i32) -> (i32, i32) {
    %c0_i32 = arith.constant 0 : i32
    %c0_i32_0 = arith.constant 0 : i32
    %c0_i32_1 = arith.constant 0 : i32
    return %c0_i32, %c0_i32_0 : i32, i32
  }
  func.func @transform_8(%arg0: i32) -> (i32, i32) {
    %c0_i32 = arith.constant 0 : i32
    %c0_i32_0 = arith.constant 0 : i32
    %c0_i32_1 = arith.constant 0 : i32
    return %c0_i32, %c0_i32_0 : i32, i32
  }
  func.func @transform_9(%arg0: i32) -> (i32, i32) {
    %c0_i32 = arith.constant 0 : i32
    %c0_i32_0 = arith.constant 0 : i32
    %c0_i32_1 = arith.constant 0 : i32
    return %c0_i32, %c0_i32_0 : i32, i32
  }
  func.func @transform_10(%arg0: i32) -> (i32, i32) {
    %c0_i32 = arith.constant 0 : i32
    %c0_i32_0 = arith.constant 0 : i32
    %c0_i32_1 = arith.constant 0 : i32
    return %c0_i32, %c0_i32_0 : i32, i32
  }
  func.func @transform_11(%arg0: i32) -> (i32, i32) {
    %c0_i32 = arith.constant 0 : i32
    %c0_i32_0 = arith.constant 0 : i32
    %c0_i32_1 = arith.constant 0 : i32
    return %c0_i32, %c0_i32_0 : i32, i32
  }
  func.func @transform_12(%arg0: i32) -> (i32, i32, i32) {
    %c0_i32 = arith.constant 0 : i32
    %c0_i32_0 = arith.constant 0 : i32
    %c0_i32_1 = arith.constant 0 : i32
    return %arg0, %c0_i32, %c0_i32_0 : i32, i32, i32
  }
}

module attributes {stable_mosaic.version = 11 : i64} {
  func.func @_attn_block_kernel(%arg0: i32, %arg1: memref<1x8x32xf32, #tpu.memory_space<vmem>>, %arg2: memref<1x32xf32, #tpu.memory_space<vmem>>, %arg3: memref<1x32xf32, #tpu.memory_space<vmem>>, %arg4: memref<32x96xbf16, #tpu.memory_space<vmem>>, %arg5: memref<32x32xbf16, #tpu.memory_space<vmem>>, %arg6: memref<1x32xf32, #tpu.memory_space<vmem>>, %arg7: memref<1x32xf32, #tpu.memory_space<vmem>>, %arg8: memref<1x32xf32, #tpu.memory_space<vmem>>, %arg9: memref<32x128xbf16, #tpu.memory_space<vmem>>, %arg10: memref<1x128xf32, #tpu.memory_space<vmem>>, %arg11: memref<128x32xbf16, #tpu.memory_space<vmem>>, %arg12: memref<1x32xf32, #tpu.memory_space<vmem>>, %arg13: memref<1x8x32xf32, #tpu.memory_space<vmem>>, %arg14: memref<4x8x8xbf16, #tpu.memory_space<vmem>>, %arg15: memref<8x32xf32, #tpu.memory_space<vmem>>) attributes {dimension_semantics = [#tpu.dimension_semantics<parallel>], iteration_bounds = array<i64: 2>, scalar_prefetch = 0 : i64, scratch_operands = 2 : i64, tpu.core_type = #tpu.core_type<tc>, window_params = [{transform_indices = @transform_0, window_bounds = array<i64: 1, 8, 32>}, {pipeline_mode = #tpu.pipeline_mode<synchronous>, transform_indices = @transform_1, window_bounds = array<i64: 1, 32>}, {pipeline_mode = #tpu.pipeline_mode<synchronous>, transform_indices = @transform_2, window_bounds = array<i64: 1, 32>}, {pipeline_mode = #tpu.pipeline_mode<synchronous>, transform_indices = @transform_3, window_bounds = array<i64: 32, 96>}, {pipeline_mode = #tpu.pipeline_mode<synchronous>, transform_indices = @transform_4, window_bounds = array<i64: 32, 32>}, {pipeline_mode = #tpu.pipeline_mode<synchronous>, transform_indices = @transform_5, window_bounds = array<i64: 1, 32>}, {pipeline_mode = #tpu.pipeline_mode<synchronous>, transform_indices = @transform_6, window_bounds = array<i64: 1, 32>}, {pipeline_mode = #tpu.pipeline_mode<synchronous>, transform_indices = @transform_7, window_bounds = array<i64: 1, 32>}, {pipeline_mode = #tpu.pipeline_mode<synchronous>, transform_indices = @transform_8, window_bounds = array<i64: 32, 128>}, {pipeline_mode = #tpu.pipeline_mode<synchronous>, transform_indices = @transform_9, window_bounds = array<i64: 1, 128>}, {pipeline_mode = #tpu.pipeline_mode<synchronous>, transform_indices = @transform_10, window_bounds = array<i64: 128, 32>}, {pipeline_mode = #tpu.pipeline_mode<synchronous>, transform_indices = @transform_11, window_bounds = array<i64: 1, 32>}, {transform_indices = @transform_12, window_bounds = array<i64: 1, 8, 32>}]} {
    %c0 = arith.constant 0 : index
    %c0_0 = arith.constant 0 : index
    %c0_1 = arith.constant 0 : index
    %0 = vector.load %arg1[%c0, %c0_0, %c0_1] : memref<1x8x32xf32, #tpu.memory_space<vmem>>, vector<1x8x32xf32>
    %1 = vector.shape_cast %0 : vector<1x8x32xf32> to vector<8x32xf32>
    %c0_2 = arith.constant 0 : index
    %c0_3 = arith.constant 0 : index
    %2 = vector.load %arg2[%c0_2, %c0_3] : memref<1x32xf32, #tpu.memory_space<vmem>>, vector<1x32xf32>
    %c0_4 = arith.constant 0 : index
    %c0_5 = arith.constant 0 : index
    %3 = vector.load %arg3[%c0_4, %c0_5] : memref<1x32xf32, #tpu.memory_space<vmem>>, vector<1x32xf32>
    %cst = arith.constant dense<0.000000e+00> : vector<8xf32>
    %4 = vector.multi_reduction <add>, %1, %cst [1] : vector<8x32xf32> to vector<8xf32>
    %5 = vector.shape_cast %4 : vector<8xf32> to vector<8x1xf32>
    %cst_6 = arith.constant 3.200000e+01 : f32
    %6 = vector.broadcast %cst_6 : f32 to vector<8x1xf32>
    %7 = arith.divf %5, %6 : vector<8x1xf32>
    %8 = vector.broadcast %7 : vector<8x1xf32> to vector<8x32xf32>
    %9 = arith.subf %1, %8 : vector<8x32xf32>
    %10 = arith.mulf %9, %9 : vector<8x32xf32>
    %cst_7 = arith.constant dense<0.000000e+00> : vector<8xf32>
    %11 = vector.multi_reduction <add>, %10, %cst_7 [1] : vector<8x32xf32> to vector<8xf32>
    %12 = vector.shape_cast %11 : vector<8xf32> to vector<8x1xf32>
    %cst_8 = arith.constant 3.200000e+01 : f32
    %13 = vector.broadcast %cst_8 : f32 to vector<8x1xf32>
    %14 = arith.divf %12, %13 : vector<8x1xf32>
    %cst_9 = arith.constant 9.99999974E-6 : f32
    %15 = vector.broadcast %cst_9 : f32 to vector<8x1xf32>
    %16 = arith.addf %14, %15 : vector<8x1xf32>
    %17 = math.rsqrt %16 : vector<8x1xf32>
    %18 = vector.broadcast %7 : vector<8x1xf32> to vector<8x32xf32>
    %19 = arith.subf %1, %18 : vector<8x32xf32>
    %20 = vector.broadcast %17 : vector<8x1xf32> to vector<8x32xf32>
    %21 = arith.mulf %19, %20 : vector<8x32xf32>
    %22 = vector.broadcast %2 : vector<1x32xf32> to vector<8x32xf32>
    %23 = arith.mulf %21, %22 : vector<8x32xf32>
    %24 = vector.broadcast %3 : vector<1x32xf32> to vector<8x32xf32>
    %25 = arith.addf %23, %24 : vector<8x32xf32>
    %26 = arith.truncf %25 : vector<8x32xf32> to vector<8x32xbf16>
    %c0_10 = arith.constant 0 : index
    %c0_11 = arith.constant 0 : index
    %27 = vector.load %arg4[%c0_10, %c0_11] : memref<32x96xbf16, #tpu.memory_space<vmem>>, vector<32x96xbf16>
    %cst_12 = arith.constant dense<0.000000e+00> : vector<8x96xf32>
    %28 = tpu.matmul %26, %27, %cst_12 {dimension_numbers = #tpu.dot_dimension_numbers<[1], [0], [0], [1], [0, 0, 1, 1], [], []>} : vector<8x32xbf16>, vector<32x96xbf16>, vector<8x96xf32> -> vector<8x96xf32>
    %29 = vector.shape_cast %28 : vector<8x96xf32> to vector<8x12x8xf32>
    %30 = tpu.transpose %29, [1, 0, 2] : vector<8x12x8xf32> -> vector<12x8x8xf32>
    %31 = vector.extract_strided_slice %30 {offsets = [0, 0, 0], sizes = [4, 8, 8], strides = [1, 1, 1]} : vector<12x8x8xf32> to vector<4x8x8xf32>
    %32 = arith.truncf %31 : vector<4x8x8xf32> to vector<4x8x8xbf16>
    %c0_13 = arith.constant 0 : index
    %c0_14 = arith.constant 0 : index
    %c0_15 = arith.constant 0 : index
    %33 = vector.load %arg14[%c0_13, %c0_14, %c0_15] : memref<4x8x8xbf16, #tpu.memory_space<vmem>>, vector<4x8x8xbf16>
    tpu.vector_store %arg14[%c0_13, %c0_14, %c0_15], %32 {strides = array<i32>} : memref<4x8x8xbf16, #tpu.memory_space<vmem>>, vector<4x8x8xbf16>,
    %34 = vector.extract_strided_slice %30 {offsets = [4, 0, 0], sizes = [4, 8, 8], strides = [1, 1, 1]} : vector<12x8x8xf32> to vector<4x8x8xf32>
    %35 = arith.truncf %34 : vector<4x8x8xf32> to vector<4x8x8xbf16>
    %36 = vector.extract_strided_slice %30 {offsets = [8, 0, 0], sizes = [4, 8, 8], strides = [1, 1, 1]} : vector<12x8x8xf32> to vector<4x8x8xf32>
    %37 = arith.truncf %36 : vector<4x8x8xf32> to vector<4x8x8xbf16>
    %c0_16 = arith.constant 0 : index
    %c0_17 = arith.constant 0 : index
    %38 = vector.load %arg5[%c0_16, %c0_17] : memref<32x32xbf16, #tpu.memory_space<vmem>>, vector<32x32xbf16>
    %c0_i32 = arith.constant 0 : i32
    %c1_i32 = arith.constant 1 : i32
    %39 = arith.muli %c0_i32, %c1_i32 : i32
    %c0_i32_18 = arith.constant 0 : i32
    %40 = arith.addi %c0_i32_18, %39 : i32
    %c8_i32 = arith.constant 8 : i32
    %41 = arith.muli %40, %c8_i32 : i32
    %42 = tpu.assume_multiple %41, 8 : i32
    %c0_19 = arith.constant 0 : index
    %43 = arith.index_cast %42 : i32 to index
    %c0_20 = arith.constant 0 : index
    %44 = vector.load %arg14[%c0_19, %43, %c0_20] : memref<4x8x8xbf16, #tpu.memory_space<vmem>>, vector<4x8x8xbf16>
    "tpu.trace_start"() <{level = 10 : i32, message = "hnd,hmd->hnm"}> : () -> ()
    %cst_21 = arith.constant dense<0.000000e+00> : vector<4x8x8xf32>
    %45 = tpu.matmul %44, %35, %cst_21 {dimension_numbers = #tpu.dot_dimension_numbers<[2], [2], [1], [1], [0, 0, 0, 1, 1, 1], [0], [0]>} : vector<4x8x8xbf16>, vector<4x8x8xbf16>, vector<4x8x8xf32> -> vector<4x8x8xf32>
    "tpu.trace_stop"() : () -> ()
    %cst_22 = arith.constant dense<0xFF800000> : vector<4x8xf32>
    %46 = vector.multi_reduction <maximumf>, %45, %cst_22 [2] : vector<4x8x8xf32> to vector<4x8xf32>
    %47 = vector.shape_cast %46 : vector<4x8xf32> to vector<4x8x1xf32>
    %48 = vector.broadcast %47 : vector<4x8x1xf32> to vector<4x8x8xf32>
    %49 = arith.subf %45, %48 : vector<4x8x8xf32>
    %50 = math.exp %49 : vector<4x8x8xf32>
    %cst_23 = arith.constant dense<0.000000e+00> : vector<4x8xf32>
    %51 = vector.multi_reduction <add>, %50, %cst_23 [2] : vector<4x8x8xf32> to vector<4x8xf32>
    %52 = vector.shape_cast %51 : vector<4x8xf32> to vector<4x8x1xf32>
    %53 = tpu.reciprocal %52 {approx = true} : vector<4x8x1xf32> -> vector<4x8x1xf32>
    %54 = vector.broadcast %53 : vector<4x8x1xf32> to vector<4x8x8xf32>
    %55 = arith.mulf %50, %54 : vector<4x8x8xf32>
    %56 = arith.truncf %55 : vector<4x8x8xf32> to vector<4x8x8xbf16>
    "tpu.trace_start"() <{level = 10 : i32, message = "hnm,hmd->hnd"}> : () -> ()
    %cst_24 = arith.constant dense<0.000000e+00> : vector<4x8x8xf32>
    %57 = tpu.matmul %56, %37, %cst_24 {dimension_numbers = #tpu.dot_dimension_numbers<[2], [1], [1], [2], [0, 0, 0, 1, 1, 2], [0], [0]>} : vector<4x8x8xbf16>, vector<4x8x8xbf16>, vector<4x8x8xf32> -> vector<4x8x8xf32>
    "tpu.trace_stop"() : () -> ()
    %58 = tpu.transpose %57, [1, 0, 2] : vector<4x8x8xf32> -> vector<8x4x8xf32>
    %59 = vector.shape_cast %58 : vector<8x4x8xf32> to vector<8x32xf32>
    %60 = arith.truncf %59 : vector<8x32xf32> to vector<8x32xbf16>
    %cst_25 = arith.constant dense<0.000000e+00> : vector<8x32xf32>
    %61 = tpu.matmul %60, %38, %cst_25 {dimension_numbers = #tpu.dot_dimension_numbers<[1], [0], [0], [1], [0, 0, 1, 1], [], []>} : vector<8x32xbf16>, vector<32x32xbf16>, vector<8x32xf32> -> vector<8x32xf32>
    %62 = arith.index_cast %42 : i32 to index
    %c0_26 = arith.constant 0 : index
    %63 = vector.load %arg15[%62, %c0_26] : memref<8x32xf32, #tpu.memory_space<vmem>>, vector<8x32xf32>
    tpu.vector_store %arg15[%62, %c0_26], %61 {strides = array<i32>} : memref<8x32xf32, #tpu.memory_space<vmem>>, vector<8x32xf32>,
    %c1_i32_27 = arith.constant 1 : i32
    %c0_28 = arith.constant 0 : index
    %c0_29 = arith.constant 0 : index
    %64 = vector.load %arg15[%c0_28, %c0_29] : memref<8x32xf32, #tpu.memory_space<vmem>>, vector<8x32xf32>
    %c0_30 = arith.constant 0 : index
    %c0_31 = arith.constant 0 : index
    %65 = vector.load %arg6[%c0_30, %c0_31] : memref<1x32xf32, #tpu.memory_space<vmem>>, vector<1x32xf32>
    %66 = vector.broadcast %65 : vector<1x32xf32> to vector<8x32xf32>
    %67 = arith.addf %64, %66 : vector<8x32xf32>
    %68 = arith.addf %1, %67 : vector<8x32xf32>
    %c0_32 = arith.constant 0 : index
    %c0_33 = arith.constant 0 : index
    %69 = vector.load %arg7[%c0_32, %c0_33] : memref<1x32xf32, #tpu.memory_space<vmem>>, vector<1x32xf32>
    %c0_34 = arith.constant 0 : index
    %c0_35 = arith.constant 0 : index
    %70 = vector.load %arg8[%c0_34, %c0_35] : memref<1x32xf32, #tpu.memory_space<vmem>>, vector<1x32xf32>
    %cst_36 = arith.constant dense<0.000000e+00> : vector<8xf32>
    %71 = vector.multi_reduction <add>, %68, %cst_36 [1] : vector<8x32xf32> to vector<8xf32>
    %72 = vector.shape_cast %71 : vector<8xf32> to vector<8x1xf32>
    %cst_37 = arith.constant 3.200000e+01 : f32
    %73 = vector.broadcast %cst_37 : f32 to vector<8x1xf32>
    %74 = arith.divf %72, %73 : vector<8x1xf32>
    %75 = vector.broadcast %74 : vector<8x1xf32> to vector<8x32xf32>
    %76 = arith.subf %68, %75 : vector<8x32xf32>
    %77 = arith.mulf %76, %76 : vector<8x32xf32>
    %cst_38 = arith.constant dense<0.000000e+00> : vector<8xf32>
    %78 = vector.multi_reduction <add>, %77, %cst_38 [1] : vector<8x32xf32> to vector<8xf32>
    %79 = vector.shape_cast %78 : vector<8xf32> to vector<8x1xf32>
    %cst_39 = arith.constant 3.200000e+01 : f32
    %80 = vector.broadcast %cst_39 : f32 to vector<8x1xf32>
    %81 = arith.divf %79, %80 : vector<8x1xf32>
    %cst_40 = arith.constant 9.99999974E-6 : f32
    %82 = vector.broadcast %cst_40 : f32 to vector<8x1xf32>
    %83 = arith.addf %81, %82 : vector<8x1xf32>
    %84 = math.rsqrt %83 : vector<8x1xf32>
    %85 = vector.broadcast %74 : vector<8x1xf32> to vector<8x32xf32>
    %86 = arith.subf %68, %85 : vector<8x32xf32>
    %87 = vector.broadcast %84 : vector<8x1xf32> to vector<8x32xf32>
    %88 = arith.mulf %86, %87 : vector<8x32xf32>
    %89 = vector.broadcast %69 : vector<1x32xf32> to vector<8x32xf32>
    %90 = arith.mulf %88, %89 : vector<8x32xf32>
    %91 = vector.broadcast %70 : vector<1x32xf32> to vector<8x32xf32>
    %92 = arith.addf %90, %91 : vector<8x32xf32>
    %93 = arith.truncf %92 : vector<8x32xf32> to vector<8x32xbf16>
    %c0_41 = arith.constant 0 : index
    %c0_42 = arith.constant 0 : index
    %94 = vector.load %arg9[%c0_41, %c0_42] : memref<32x128xbf16, #tpu.memory_space<vmem>>, vector<32x128xbf16>
    %cst_43 = arith.constant dense<0.000000e+00> : vector<8x128xf32>
    %95 = tpu.matmul %93, %94, %cst_43 {dimension_numbers = #tpu.dot_dimension_numbers<[1], [0], [0], [1], [0, 0, 1, 1], [], []>} : vector<8x32xbf16>, vector<32x128xbf16>, vector<8x128xf32> -> vector<8x128xf32>
    %c0_44 = arith.constant 0 : index
    %c0_45 = arith.constant 0 : index
    %96 = vector.load %arg10[%c0_44, %c0_45] : memref<1x128xf32, #tpu.memory_space<vmem>>, vector<1x128xf32>
    %97 = vector.broadcast %96 : vector<1x128xf32> to vector<8x128xf32>
    %98 = arith.addf %95, %97 : vector<8x128xf32>
    %cst_46 = arith.constant 5.000000e-01 : f32
    %99 = vector.broadcast %cst_46 : f32 to vector<8x128xf32>
    %100 = arith.mulf %99, %98 : vector<8x128xf32>
    %cst_47 = arith.constant 2.000000e+00 : f32
    %101 = math.sqrt %cst_47 : f32
    %102 = vector.broadcast %101 : f32 to vector<8x128xf32>
    %103 = arith.divf %98, %102 : vector<8x128xf32>
    %104 = math.erf %103 : vector<8x128xf32>
    %cst_48 = arith.constant 1.000000e+00 : f32
    %105 = vector.broadcast %cst_48 : f32 to vector<8x128xf32>
    %106 = arith.addf %105, %104 : vector<8x128xf32>
    %107 = arith.mulf %100, %106 : vector<8x128xf32>
    %108 = arith.truncf %107 : vector<8x128xf32> to vector<8x128xbf16>
    %c0_49 = arith.constant 0 : index
    %c0_50 = arith.constant 0 : index
    %109 = vector.load %arg11[%c0_49, %c0_50] : memref<128x32xbf16, #tpu.memory_space<vmem>>, vector<128x32xbf16>
    %cst_51 = arith.constant dense<0.000000e+00> : vector<8x32xf32>
    %110 = tpu.matmul %108, %109, %cst_51 {dimension_numbers = #tpu.dot_dimension_numbers<[1], [0], [0], [1], [0, 0, 1, 1], [], []>} : vector<8x128xbf16>, vector<128x32xbf16>, vector<8x32xf32> -> vector<8x32xf32>
    %c0_52 = arith.constant 0 : index
    %c0_53 = arith.constant 0 : index
    %111 = vector.load %arg12[%c0_52, %c0_53] : memref<1x32xf32, #tpu.memory_space<vmem>>, vector<1x32xf32>
    %112 = vector.broadcast %111 : vector<1x32xf32> to vector<8x32xf32>
    %113 = arith.addf %110, %112 : vector<8x32xf32>
    %114 = arith.addf %68, %113 : vector<8x32xf32>
    %c0_54 = arith.constant 0 : index
    %c0_55 = arith.constant 0 : index
    %c0_56 = arith.constant 0 : index
    %115 = vector.load %arg13[%c0_54, %c0_55, %c0_56] : memref<1x8x32xf32, #tpu.memory_space<vmem>>, vector<1x8x32xf32>
    %116 = vector.shape_cast %115 : vector<1x8x32xf32> to vector<8x32xf32>
    %117 = vector.shape_cast %114 : vector<8x32xf32> to vector<1x8x32xf32>
    tpu.vector_store %arg13[%c0_54, %c0_55, %c0_56], %117 {strides = array<i32>} : memref<1x8x32xf32, #tpu.memory_space<vmem>>, vector<1x8x32xf32>,
    return
  }
  func.func @transform_0(%arg0: i32) -> (i32, i32, i32) {
    %c0_i32 = arith.constant 0 : i32
    %c0_i32_0 = arith.constant 0 : i32
    %c0_i32_1 = arith.constant 0 : i32
    return %arg0, %c0_i32, %c0_i32_0 : i32, i32, i32
  }
  func.func @transform_1(%arg0: i32) -> (i32, i32) {
    %c0_i32 = arith.constant 0 : i32
    %c0_i32_0 = arith.constant 0 : i32
    %c0_i32_1 = arith.constant 0 : i32
    return %c0_i32, %c0_i32_0 : i32, i32
  }
  func.func @transform_2(%arg0: i32) -> (i32, i32) {
    %c0_i32 = arith.constant 0 : i32
    %c0_i32_0 = arith.constant 0 : i32
    %c0_i32_1 = arith.constant 0 : i32
    return %c0_i32, %c0_i32_0 : i32, i32
  }
  func.func @transform_3(%arg0: i32) -> (i32, i32) {
    %c0_i32 = arith.constant 0 : i32
    %c0_i32_0 = arith.constant 0 : i32
    %c0_i32_1 = arith.constant 0 : i32
    return %c0_i32, %c0_i32_0 : i32, i32
  }
  func.func @transform_4(%arg0: i32) -> (i32, i32) {
    %c0_i32 = arith.constant 0 : i32
    %c0_i32_0 = arith.constant 0 : i32
    %c0_i32_1 = arith.constant 0 : i32
    return %c0_i32, %c0_i32_0 : i32, i32
  }
  func.func @transform_5(%arg0: i32) -> (i32, i32) {
    %c0_i32 = arith.constant 0 : i32
    %c0_i32_0 = arith.constant 0 : i32
    %c0_i32_1 = arith.constant 0 : i32
    return %c0_i32, %c0_i32_0 : i32, i32
  }
  func.func @transform_6(%arg0: i32) -> (i32, i32) {
    %c0_i32 = arith.constant 0 : i32
    %c0_i32_0 = arith.constant 0 : i32
    %c0_i32_1 = arith.constant 0 : i32
    return %c0_i32, %c0_i32_0 : i32, i32
  }
  func.func @transform_7(%arg0: i32) -> (i32, i32) {
    %c0_i32 = arith.constant 0 : i32
    %c0_i32_0 = arith.constant 0 : i32
    %c0_i32_1 = arith.constant 0 : i32
    return %c0_i32, %c0_i32_0 : i32, i32
  }
  func.func @transform_8(%arg0: i32) -> (i32, i32) {
    %c0_i32 = arith.constant 0 : i32
    %c0_i32_0 = arith.constant 0 : i32
    %c0_i32_1 = arith.constant 0 : i32
    return %c0_i32, %c0_i32_0 : i32, i32
  }
  func.func @transform_9(%arg0: i32) -> (i32, i32) {
    %c0_i32 = arith.constant 0 : i32
    %c0_i32_0 = arith.constant 0 : i32
    %c0_i32_1 = arith.constant 0 : i32
    return %c0_i32, %c0_i32_0 : i32, i32
  }
  func.func @transform_10(%arg0: i32) -> (i32, i32) {
    %c0_i32 = arith.constant 0 : i32
    %c0_i32_0 = arith.constant 0 : i32
    %c0_i32_1 = arith.constant 0 : i32
    return %c0_i32, %c0_i32_0 : i32, i32
  }
  func.func @transform_11(%arg0: i32) -> (i32, i32) {
    %c0_i32 = arith.constant 0 : i32
    %c0_i32_0 = arith.constant 0 : i32
    %c0_i32_1 = arith.constant 0 : i32
    return %c0_i32, %c0_i32_0 : i32, i32
  }
  func.func @transform_12(%arg0: i32) -> (i32, i32, i32) {
    %c0_i32 = arith.constant 0 : i32
    %c0_i32_0 = arith.constant 0 : i32
    %c0_i32_1 = arith.constant 0 : i32
    return %arg0, %c0_i32, %c0_i32_0 : i32, i32, i32
  }
}

</mosaic_0001>

<llo_original>
// kernel: tpu_custom_call.1
$region0: #{tpu_custom_call.1}
  #allocation0 [shape = 'u32[]', space=smem, size = 0x4, offset = 0x4, fixed_abs, tag = 'smem constant byte address 0x4 - core index']
  #allocation1 [shape = 'u32[72,128]{1,0:T(1,128)}', space=vmem, size = 0x9000, scoped, tag = 'internal scratch']
  #allocation2 [shape = 'bf16[4,8,8]{2,1,0:T(8,128)(2,1)}', space=vmem, size = 0x2000, scoped, tag = 'scratch operand']
  #allocation3 [shape = 'f32[8,32]{1,0:T(8,128)}', space=vmem, size = 0x1000, scoped, tag = 'scratch operand']
  %s0 = inlined_call_operand.vmem [shape: f32[2,8,32], index: 0, kind: input, shape index: {}]
  %s1 = inlined_call_operand.vmem [shape: f32[1,32], index: 1, kind: input, shape index: {}]
  %s2 = inlined_call_operand.vmem [shape: f32[1,32], index: 2, kind: input, shape index: {}]
  %s3 = inlined_call_operand.vmem [shape: bf16[32,96], index: 3, kind: input, shape index: {}]
  %s4 = inlined_call_operand.vmem [shape: bf16[32,32], index: 4, kind: input, shape index: {}]
  %s5 = inlined_call_operand.vmem [shape: f32[1,32], index: 5, kind: input, shape index: {}]
  %s6 = inlined_call_operand.vmem [shape: f32[1,32], index: 6, kind: input, shape index: {}]
  %s7 = inlined_call_operand.vmem [shape: f32[1,32], index: 7, kind: input, shape index: {}]
  %s8 = inlined_call_operand.vmem [shape: bf16[32,128], index: 8, kind: input, shape index: {}]
  %s9 = inlined_call_operand.vmem [shape: f32[1,128], index: 9, kind: input, shape index: {}]
  %s10 = inlined_call_operand.vmem [shape: bf16[128,32], index: 10, kind: input, shape index: {}]
  %s11 = inlined_call_operand.vmem [shape: f32[1,32], index: 11, kind: input, shape index: {}]
  %s12 = inlined_call_operand.hbm [shape: f32[2,8,32], index: 12, kind: output, shape index: {}]
  %s13 = sld [smem:[#allocation0]]
  $region81: #{tpu_custom_call.1} parent=0
    _
  %s15 = ssub.s32 1, %s13
  %s16 = scalar_select 0, %s15, %s13
  $region1: #{tpu_custom_call.1} parent=0
    #allocation4 [shape = 'u8[8192]{0}', space=vmem, size = 0x2000, scoped, tag = 'output window, operand 0']
    #allocation5 [shape = 's32[2]{0}', space=sflag, size = 0x8, scoped, tag = 'scoped memory for tpu_custom_call.1']
    %17 = vsyncpa [#allocation5], 0
    %s18 = scalar_lea.sflag [#allocation5], 1
    %19 = vsyncpa %s18, 0
    loop: start=0, step=1, limit=4
    $region2: #{tpu_custom_call.1} parent=1 // loop_pre_header
      _
    $region3: #{tpu_custom_call.1} parent=1 // loop_header
      %s21 = sphi 0, %s25
      %p22 = scmp.ge.s32.totalorder %s21, 4
      %s31 = sphi 0, %s33
      %s34 = sphi 0, %s31
      %s35 = sphi 0, %s34
      %s51 = sphi 0, %s35
      %s55 = sphi 0, %s55
      %s57 = sphi 0, %s55
      %s58 = sphi 0, %s57
      %s72 = sphi 0, %s58
      %s76 = sphi 0, %s76
      %s78 = sphi 0, %s76
      %s79 = sphi 0, %s78
      %s93 = sphi 0, %s79
      %s97 = sphi 0, %s97
      %s99 = sphi 0, %s97
      %s100 = sphi 0, %s99
      %s114 = sphi 0, %s100
      %s118 = sphi 0, %s118
      %s120 = sphi 0, %s118
      %s121 = sphi 0, %s120
      %s135 = sphi 0, %s121
      %s139 = sphi 0, %s139
      %s141 = sphi 0, %s139
      %s142 = sphi 0, %s141
      %s156 = sphi 0, %s142
      %s160 = sphi 0, %s160
      %s162 = sphi 0, %s160
      %s163 = sphi 0, %s162
      %s177 = sphi 0, %s163
      %s181 = sphi 0, %s181
      %s183 = sphi 0, %s181
      %s184 = sphi 0, %s183
      %s198 = sphi 0, %s184
      %s202 = sphi 0, %s202
      %s204 = sphi 0, %s202
      %s205 = sphi 0, %s204
      %s219 = sphi 0, %s205
      %s223 = sphi 0, %s223
      %s225 = sphi 0, %s223
      %s226 = sphi 0, %s225
      %s240 = sphi 0, %s226
      %s244 = sphi 0, %s244
      %s246 = sphi 0, %s244
      %s247 = sphi 0, %s246
      %s261 = sphi 0, %s247
      %s265 = sphi 0, %s265
      %s267 = sphi 0, %s265
      %s268 = sphi 0, %s267
      %s282 = sphi 0, %s268
      %s288 = sphi 0, %s290
      %s291 = sphi 0, %s288
      %s292 = sphi 0, %s291
      %s308 = sphi 0, %s292
    $region4: #{tpu_custom_call.1} parent=1 // loop_header_branch
      %24 = sbr.rel (%p22) target = $region8
    $region5: #{tpu_custom_call.1} parent=1 // loop_body
      %s26 = ssub.s32 %s21, 1
      %s27 = ssub.s32 %s21, 2
      %s28 = sadd.s32 %s21, 1
      %s29 = ssub.s32 %s21, %s28
      %p30 = scmp.eq.s32.totalorder %s29, 0
      %s32 = sadd.s32 %s31, 1
      %s33 = scalar_select %p30, %s31, %s32
      %p36 = pneg %p30
      %p37 = scmp.eq.s32.totalorder %s21, 1
      %p38 = por %p36, %p37
      %p39 = scmp.ne.s32.totalorder %s31, %s34
      %p40 = scmp.eq.s32.totalorder %s21, 0
      %p41 = por %p39, %p40
      %p42 = scmp.ne.s32.totalorder %s31, %s34
      %p43 = scmp.eq.s32.totalorder %s26, 1
      %p44 = por %p42, %p43
      %p45 = scmp.ne.s32.totalorder %s34, %s35
      %p46 = scmp.eq.s32.totalorder %s26, 0
      %p47 = por %p45, %p46
      %p48 = scmp.ne.s32.totalorder %s34, %s35
      %p49 = scmp.eq.s32.totalorder %s27, 1
      %p50 = por %p48, %p49
      %p52 = scmp.ne.s32.totalorder %s35, %s51
      %p53 = scmp.eq.s32.totalorder %s27, 0
      %p54 = por %p52, %p53
      %s56 = sadd.s32 %s55, 1
      %p59 = scmp.eq.s32.totalorder %s21, 1
      %p60 = scmp.ne.s32.totalorder %s55, %s57
      %p61 = scmp.eq.s32.totalorder %s21, 0
      %p62 = por %p60, %p61
      %p63 = scmp.ne.s32.totalorder %s55, %s57
      %p64 = scmp.eq.s32.totalorder %s26, 1
      %p65 = por %p63, %p64
      %p66 = scmp.ne.s32.totalorder %s57, %s58
      %p67 = scmp.eq.s32.totalorder %s26, 0
      %p68 = por %p66, %p67
      %p69 = scmp.ne.s32.totalorder %s57, %s58
      %p70 = scmp.eq.s32.totalorder %s27, 1
      %p71 = por %p69, %p70
      %p73 = scmp.ne.s32.totalorder %s58, %s72
      %p74 = scmp.eq.s32.totalorder %s27, 0
      %p75 = por %p73, %p74
      %s77 = sadd.s32 %s76, 1
      %p80 = scmp.eq.s32.totalorder %s21, 1
      %p81 = scmp.ne.s32.totalorder %s76, %s78
      %p82 = scmp.eq.s32.totalorder %s21, 0
      %p83 = por %p81, %p82
      %p84 = scmp.ne.s32.totalorder %s76, %s78
      %p85 = scmp.eq.s32.totalorder %s26, 1
      %p86 = por %p84, %p85
      %p87 = scmp.ne.s32.totalorder %s78, %s79
      %p88 = scmp.eq.s32.totalorder %s26, 0
      %p89 = por %p87, %p88
      %p90 = scmp.ne.s32.totalorder %s78, %s79
      %p91 = scmp.eq.s32.totalorder %s27, 1
      %p92 = por %p90, %p91
      %p94 = scmp.ne.s32.totalorder %s79, %s93
      %p95 = scmp.eq.s32.totalorder %s27, 0
      %p96 = por %p94, %p95
      %s98 = sadd.s32 %s97, 1
      %p101 = scmp.eq.s32.totalorder %s21, 1
      %p102 = scmp.ne.s32.totalorder %s97, %s99
      %p103 = scmp.eq.s32.totalorder %s21, 0
      %p104 = por %p102, %p103
      %p105 = scmp.ne.s32.totalorder %s97, %s99
      %p106 = scmp.eq.s32.totalorder %s26, 1
      %p107 = por %p105, %p106
      %p108 = scmp.ne.s32.totalorder %s99, %s100
      %p109 = scmp.eq.s32.totalorder %s26, 0
      %p110 = por %p108, %p109
      %p111 = scmp.ne.s32.totalorder %s99, %s100
      %p112 = scmp.eq.s32.totalorder %s27, 1
      %p113 = por %p111, %p112
      %p115 = scmp.ne.s32.totalorder %s100, %s114
      %p116 = scmp.eq.s32.totalorder %s27, 0
      %p117 = por %p115, %p116
      %s119 = sadd.s32 %s118, 1
      %p122 = scmp.eq.s32.totalorder %s21, 1
      %p123 = scmp.ne.s32.totalorder %s118, %s120
      %p124 = scmp.eq.s32.totalorder %s21, 0
      %p125 = por %p123, %p124
      %p126 = scmp.ne.s32.totalorder %s118, %s120
      %p127 = scmp.eq.s32.totalorder %s26, 1
      %p128 = por %p126, %p127
      %p129 = scmp.ne.s32.totalorder %s120, %s121
      %p130 = scmp.eq.s32.totalorder %s26, 0
      %p131 = por %p129, %p130
      %p132 = scmp.ne.s32.totalorder %s120, %s121
      %p133 = scmp.eq.s32.totalorder %s27, 1
      %p134 = por %p132, %p133
      %p136 = scmp.ne.s32.totalorder %s121, %s135
      %p137 = scmp.eq.s32.totalorder %s27, 0
      %p138 = por %p136, %p137
      %s140 = sadd.s32 %s139, 1
      %p143 = scmp.eq.s32.totalorder %s21, 1
      %p144 = scmp.ne.s32.totalorder %s139, %s141
      %p145 = scmp.eq.s32.totalorder %s21, 0
      %p146 = por %p144, %p145
      %p147 = scmp.ne.s32.totalorder %s139, %s141
      %p148 = scmp.eq.s32.totalorder %s26, 1
      %p149 = por %p147, %p148
      %p150 = scmp.ne.s32.totalorder %s141, %s142
      %p151 = scmp.eq.s32.totalorder %s26, 0
      %p152 = por %p150, %p151
      %p153 = scmp.ne.s32.totalorder %s141, %s142
      %p154 = scmp.eq.s32.totalorder %s27, 1
      %p155 = por %p153, %p154
      %p157 = scmp.ne.s32.totalorder %s142, %s156
      %p158 = scmp.eq.s32.totalorder %s27, 0
      %p159 = por %p157, %p158
      %s161 = sadd.s32 %s160, 1
      %p164 = scmp.eq.s32.totalorder %s21, 1
      %p165 = scmp.ne.s32.totalorder %s160, %s162
      %p166 = scmp.eq.s32.totalorder %s21, 0
      %p167 = por %p165, %p166
      %p168 = scmp.ne.s32.totalorder %s160, %s162
      %p169 = scmp.eq.s32.totalorder %s26, 1
      %p170 = por %p168, %p169
      %p171 = scmp.ne.s32.totalorder %s162, %s163
      %p172 = scmp.eq.s32.totalorder %s26, 0
      %p173 = por %p171, %p172
      %p174 = scmp.ne.s32.totalorder %s162, %s163
      %p175 = scmp.eq.s32.totalorder %s27, 1
      %p176 = por %p174, %p175
      %p178 = scmp.ne.s32.totalorder %s163, %s177
      %p179 = scmp.eq.s32.totalorder %s27, 0
      %p180 = por %p178, %p179
      %s182 = sadd.s32 %s181, 1
      %p185 = scmp.eq.s32.totalorder %s21, 1
      %p186 = scmp.ne.s32.totalorder %s181, %s183
      %p187 = scmp.eq.s32.totalorder %s21, 0
      %p188 = por %p186, %p187
      %p189 = scmp.ne.s32.totalorder %s181, %s183
      %p190 = scmp.eq.s32.totalorder %s26, 1
      %p191 = por %p189, %p190
      %p192 = scmp.ne.s32.totalorder %s183, %s184
      %p193 = scmp.eq.s32.totalorder %s26, 0
      %p194 = por %p192, %p193
      %p195 = scmp.ne.s32.totalorder %s183, %s184
      %p196 = scmp.eq.s32.totalorder %s27, 1
      %p197 = por %p195, %p196
      %p199 = scmp.ne.s32.totalorder %s184, %s198
      %p200 = scmp.eq.s32.totalorder %s27, 0
      %p201 = por %p199, %p200
      %s203 = sadd.s32 %s202, 1
      %p206 = scmp.eq.s32.totalorder %s21, 1
      %p207 = scmp.ne.s32.totalorder %s202, %s204
      %p208 = scmp.eq.s32.totalorder %s21, 0
      %p209 = por %p207, %p208
      %p210 = scmp.ne.s32.totalorder %s202, %s204
      %p211 = scmp.eq.s32.totalorder %s26, 1
      %p212 = por %p210, %p211
      %p213 = scmp.ne.s32.totalorder %s204, %s205
      %p214 = scmp.eq.s32.totalorder %s26, 0
      %p215 = por %p213, %p214
      %p216 = scmp.ne.s32.totalorder %s204, %s205
      %p217 = scmp.eq.s32.totalorder %s27, 1
      %p218 = por %p216, %p217
      %p220 = scmp.ne.s32.totalorder %s205, %s219
      %p221 = scmp.eq.s32.totalorder %s27, 0
      %p222 = por %p220, %p221
      %s224 = sadd.s32 %s223, 1
      %p227 = scmp.eq.s32.totalorder %s21, 1
      %p228 = scmp.ne.s32.totalorder %s223, %s225
      %p229 = scmp.eq.s32.totalorder %s21, 0
      %p230 = por %p228, %p229
      %p231 = scmp.ne.s32.totalorder %s223, %s225
      %p232 = scmp.eq.s32.totalorder %s26, 1
      %p233 = por %p231, %p232
      %p234 = scmp.ne.s32.totalorder %s225, %s226
      %p235 = scmp.eq.s32.totalorder %s26, 0
      %p236 = por %p234, %p235
      %p237 = scmp.ne.s32.totalorder %s225, %s226
      %p238 = scmp.eq.s32.totalorder %s27, 1
      %p239 = por %p237, %p238
      %p241 = scmp.ne.s32.totalorder %s226, %s240
      %p242 = scmp.eq.s32.totalorder %s27, 0
      %p243 = por %p241, %p242
      %s245 = sadd.s32 %s244, 1
      %p248 = scmp.eq.s32.totalorder %s21, 1
      %p249 = scmp.ne.s32.totalorder %s244, %s246
      %p250 = scmp.eq.s32.totalorder %s21, 0
      %p251 = por %p249, %p250
      %p252 = scmp.ne.s32.totalorder %s244, %s246
      %p253 = scmp.eq.s32.totalorder %s26, 1
      %p254 = por %p252, %p253
      %p255 = scmp.ne.s32.totalorder %s246, %s247
      %p256 = scmp.eq.s32.totalorder %s26, 0
      %p257 = por %p255, %p256
      %p258 = scmp.ne.s32.totalorder %s246, %s247
      %p259 = scmp.eq.s32.totalorder %s27, 1
      %p260 = por %p258, %p259
      %p262 = scmp.ne.s32.totalorder %s247, %s261
      %p263 = scmp.eq.s32.totalorder %s27, 0
      %p264 = por %p262, %p263
      %s266 = sadd.s32 %s265, 1
      %p269 = scmp.eq.s32.totalorder %s21, 1
      %p270 = scmp.ne.s32.totalorder %s265, %s267
      %p271 = scmp.eq.s32.totalorder %s21, 0
      %p272 = por %p270, %p271
      %p273 = scmp.ne.s32.totalorder %s265, %s267
      %p274 = scmp.eq.s32.totalorder %s26, 1
      %p275 = por %p273, %p274
      %p276 = scmp.ne.s32.totalorder %s267, %s268
      %p277 = scmp.eq.s32.totalorder %s26, 0
      %p278 = por %p276, %p277
      %p279 = scmp.ne.s32.totalorder %s267, %s268
      %p280 = scmp.eq.s32.totalorder %s27, 1
      %p281 = por %p279, %p280
      %p283 = scmp.ne.s32.totalorder %s268, %s282
      %p284 = scmp.eq.s32.totalorder %s27, 0
      %p285 = por %p283, %p284
      %s286 = ssub.s32 %s21, %s28
      %p287 = scmp.eq.s32.totalorder %s286, 0
      %s289 = sadd.s32 %s288, 1
      %s290 = scalar_select %p287, %s288, %s289
      %p293 = pneg %p287
      %p294 = scmp.eq.s32.totalorder %s21, 1
      %p295 = por %p293, %p294
      %p296 = scmp.ne.s32.totalorder %s288, %s291
      %p297 = scmp.eq.s32.totalorder %s21, 0
      %p298 = por %p296, %p297
      %p299 = scmp.ne.s32.totalorder %s288, %s291
      %p300 = scmp.eq.s32.totalorder %s26, 1
      %p301 = por %p299, %p300
      %p302 = scmp.ne.s32.totalorder %s291, %s292
      %p303 = scmp.eq.s32.totalorder %s26, 0
      %p304 = por %p302, %p303
      %p305 = scmp.ne.s32.totalorder %s291, %s292
      %p306 = scmp.eq.s32.totalorder %s27, 1
      %p307 = por %p305, %p306
      %p309 = scmp.ne.s32.totalorder %s292, %s308
      %p310 = scmp.eq.s32.totalorder %s27, 0
      %p311 = por %p309, %p310
      %p312 = scmp.le.s32.totalorder 1, %s21
      %p313 = scmp.lt.s32.totalorder %s21, 3
      %p314 = pnand %p312, %p313
      %p315 = pneg %p314
      // Predicated region
      $region9: #{tpu_custom_call.1} parent=5 // pred_check
        _
      $region10: #{tpu_custom_call.1} parent=5 // pred_check_branch
        %317 = sbr.rel (%p314) target = $region12
      $region11: #{tpu_custom_call.1} parent=5 // pred_region
        %s318 = ssub.s32 %s21, 1
        // Predicated region
        $region13: #{tpu_custom_call.1} parent=11 // pred_check
          %p319 = pneg %p68
        $region14: #{tpu_custom_call.1} parent=11 // pred_check_branch
          %321 = sbr.rel (%p319) target = $region16
        $region15: #{tpu_custom_call.1} parent=11 // pred_region
          _
        $region16: #{tpu_custom_call.1} parent=11 // pred_fallthru
          _
        // Predicated region
        $region17: #{tpu_custom_call.1} parent=11 // pred_check
          %p322 = pneg %p89
        $region18: #{tpu_custom_call.1} parent=11 // pred_check_branch
          %324 = sbr.rel (%p322) target = $region20
        $region19: #{tpu_custom_call.1} parent=11 // pred_region
          _
        $region20: #{tpu_custom_call.1} parent=11 // pred_fallthru
          _
        // Predicated region
        $region21: #{tpu_custom_call.1} parent=11 // pred_check
          %p325 = pneg %p110
        $region22: #{tpu_custom_call.1} parent=11 // pred_check_branch
          %327 = sbr.rel (%p325) target = $region24
        $region23: #{tpu_custom_call.1} parent=11 // pred_region
          _
        $region24: #{tpu_custom_call.1} parent=11 // pred_fallthru
          _
        // Predicated region
        $region25: #{tpu_custom_call.1} parent=11 // pred_check
          %p328 = pneg %p131
        $region26: #{tpu_custom_call.1} parent=11 // pred_check_branch
          %330 = sbr.rel (%p328) target = $region28
        $region27: #{tpu_custom_call.1} parent=11 // pred_region
          _
        $region28: #{tpu_custom_call.1} parent=11 // pred_fallthru
          _
        // Predicated region
        $region29: #{tpu_custom_call.1} parent=11 // pred_check
          %p331 = pneg %p152
        $region30: #{tpu_custom_call.1} parent=11 // pred_check_branch
          %333 = sbr.rel (%p331) target = $region32
        $region31: #{tpu_custom_call.1} parent=11 // pred_region
          _
        $region32: #{tpu_custom_call.1} parent=11 // pred_fallthru
          _
        // Predicated region
        $region33: #{tpu_custom_call.1} parent=11 // pred_check
          %p334 = pneg %p173
        $region34: #{tpu_custom_call.1} parent=11 // pred_check_branch
          %336 = sbr.rel (%p334) target = $region36
        $region35: #{tpu_custom_call.1} parent=11 // pred_region
          _
        $region36: #{tpu_custom_call.1} parent=11 // pred_fallthru
          _
        // Predicated region
        $region37: #{tpu_custom_call.1} parent=11 // pred_check
          %p337 = pneg %p194
        $region38: #{tpu_custom_call.1} parent=11 // pred_check_branch
          %339 = sbr.rel (%p337) target = $region40
        $region39: #{tpu_custom_call.1} parent=11 // pred_region
          _
        $region40: #{tpu_custom_call.1} parent=11 // pred_fallthru
          _
        // Predicated region
        $region41: #{tpu_custom_call.1} parent=11 // pred_check
          %p340 = pneg %p215
        $region42: #{tpu_custom_call.1} parent=11 // pred_check_branch
          %342 = sbr.rel (%p340) target = $region44
        $region43: #{tpu_custom_call.1} parent=11 // pred_region
          _
        $region44: #{tpu_custom_call.1} parent=11 // pred_fallthru
          _
        // Predicated region
        $region45: #{tpu_custom_call.1} parent=11 // pred_check
          %p343 = pneg %p236
        $region46: #{tpu_custom_call.1} parent=11 // pred_check_branch
          %345 = sbr.rel (%p343) target = $region48
        $region47: #{tpu_custom_call.1} parent=11 // pred_region
          _
        $region48: #{tpu_custom_call.1} parent=11 // pred_fallthru
          _
        // Predicated region
        $region49: #{tpu_custom_call.1} parent=11 // pred_check
          %p346 = pneg %p257
        $region50: #{tpu_custom_call.1} parent=11 // pred_check_branch
          %348 = sbr.rel (%p346) target = $region52
        $region51: #{tpu_custom_call.1} parent=11 // pred_region
          _
        $region52: #{tpu_custom_call.1} parent=11 // pred_fallthru
          _
        // Predicated region
        $region53: #{tpu_custom_call.1} parent=11 // pred_check
          %p349 = pneg %p278
        $region54: #{tpu_custom_call.1} parent=11 // pred_check_branch
          %351 = sbr.rel (%p349) target = $region56
        $region55: #{tpu_custom_call.1} parent=11 // pred_region
          _
        $region56: #{tpu_custom_call.1} parent=11 // pred_fallthru
          _
      $region12: #{tpu_custom_call.1} parent=5 // pred_fallthru
        _
      %p352 = scmp.lt.s32.totalorder %s21, 2
      // Predicated region
      $region57: #{tpu_custom_call.1} parent=5 // pred_check
        %p353 = pneg %p352
      $region58: #{tpu_custom_call.1} parent=5 // pred_check_branch
        %355 = sbr.rel (%p353) target = $region60
      $region59: #{tpu_custom_call.1} parent=5 // pred_region
        // Predicated region
        $region61: #{tpu_custom_call.1} parent=59 // pred_check
          %p356 = pneg %p41
        $region62: #{tpu_custom_call.1} parent=59 // pred_check_branch
          %358 = sbr.rel (%p356) target = $region64
        $region63: #{tpu_custom_call.1} parent=59 // pred_region
          %p359 = scmp.lt.s32.totalorder %s21, 1
          %s360 = scalar_select %p359, %s21, 1
          %s361 = smul.addr %s360, 8
          %s362 = scalar_lea.vmem %s0, %s361
        $region64: #{tpu_custom_call.1} parent=59 // pred_fallthru
          _
      $region60: #{tpu_custom_call.1} parent=5 // pred_fallthru
        _
      %p363 = scmp.le.s32.totalorder 1, %s21
      %p364 = scmp.lt.s32.totalorder %s21, 3
      %p365 = pnand %p363, %p364
      %p366 = pneg %p365
      // Predicated region
      $region65: #{tpu_custom_call.1} parent=5 // pred_check
        _
      $region66: #{tpu_custom_call.1} parent=5 // pred_check_branch
        %368 = sbr.rel (%p365) target = $region68
      $region67: #{tpu_custom_call.1} parent=5 // pred_region
        %s369 = ssub.s32 %s21, 1
        %p370 = scmp.lt.s32.totalorder %s26, 1
        %s371 = scalar_select %p370, %s26, 1
        %s372 = smul.addr %s371, 8
        %s373 = scalar_lea.vmem %s0, %s372
        %p374 = pneg %p47
        %p375 = pneg %p44
        %p376 = pneg %p68
        %p377 = pneg %p65
        %p378 = pneg %p89
        %p379 = pneg %p86
        %p380 = pneg %p110
        %p381 = pneg %p107
        %p382 = pneg %p131
        %p383 = pneg %p128
        %p384 = pneg %p152
        %p385 = pneg %p149
        %p386 = pneg %p173
        %p387 = pneg %p170
        %p388 = pneg %p194
        %p389 = pneg %p191
        %p390 = pneg %p215
        %p391 = pneg %p212
        %p392 = pneg %p236
        %p393 = pneg %p233
        %p394 = pneg %p257
        %p395 = pneg %p254
        %p396 = pneg %p278
        %p397 = pneg %p275
        %p398 = pneg %p304
        %p399 = pneg %p301
        %s400 = sand.u32 %s291, 1
        %s401 = scalar_lea.sflag [#allocation5], %s400
        %s402 = sand.u32 %s291, 1
        %s403 = smul.addr %s402, 8
        %s404 = scalar_lea.vmem [#allocation4], %s403
        %p405 = scmp.lt.s32.totalorder %s26, 1
        %s406 = scalar_select %p405, %s26, 1
        %s407 = smul.addr %s406, 8
        %s408 = scalar_lea.vmem %s0, %s407
        %v410 = vld [vmem:[%s408] sm:$0xff]
        %v411 = vld [vmem:[%s1] sm:$0x1]
        %v412 = vld [vmem:[%s2] sm:$0x1]
        %vm413 = vcmask 261120
        %v414 = vsel %vm413, %v410, 0.0
        %415 = vadd.xlane.f32.xlu0 %v414
        %v416 = vpop.xlane.xlu0 %415
        %v417 = vrcp.pop 32.0
        %v418 = vmul.f32 32.0, %v417
        %v419 = vsub.f32 1.0, %v418
        %v420 = vmul.f32 %v417, %v419
        %v421 = vadd.f32 %v417, %v420
        %vm422 = vweird.f32 %v417
        %v423 = vsel %vm422, %v417, %v421
        %v424 = vmul.f32 %v416, %v423
        %v425 = vsub.f32 %v410, %v424
        %v426 = vmul.f32 %v425, %v425
        %v427 = vsel %vm413, %v426, 0.0
        %428 = vadd.xlane.f32.xlu0 %v427
        %v429 = vpop.xlane.xlu0 %428
        %v430 = vmul.f32 %v429, %v423
        %v431 = vadd.f32 %v430, 1e-05
        %v432 = vrsqrt.pop %v431
        %v433 = vmul.f32 %v432, %v431
        %v434 = vmul.f32 %v433, %v432
        %v435 = vmul.f32 0.5, %v434
        %v436 = vsub.f32 1.5, %v435
        %v437 = vmul.f32 %v432, %v436
        %vm438 = vweird.f32 %v431
        %vm439 = vweird.f32 %v432
        %vm440 = vmor %vm438, %vm439
        %v441 = vsel %vm440, %v432, %v437
        %v442 = vmul.f32 %v425, %v441
        %v444 = vperm.slane %v411, 0
        %v446 = vmul.f32 %v442, %v444
        %v448 = vperm.slane %v412, 0
        %v450 = vadd.f32 %v446, %v448
        %v451 = vpack.c.bf16 %v450, %v450
        %v452 = vld [vmem:[%s3] sm:$0xf]
        %v453 = vld [vmem:[%s3 + $0x4] sm:$0xf]
        %v454 = vld [vmem:[%s3 + $0x8] sm:$0xf]
        %v455 = vld [vmem:[%s3 + $0xc] sm:$0xf]
        %v460 = vunpack.c.l.b16 %v452
        %v461 = vunpack.c.l.b16 %v453
        %v462 = vunpack.c.l.b16 %v454
        %v463 = vunpack.c.l.b16 %v455
        %v464 = vpack.c.b16 %v461, %v460
        %v465 = vpack.c.b16 %v463, %v462
        %v469 = vsel %vm413, %v451, 0
        %471 = vmatpush.bf16.msra.mxu0 0
        %472 = vmatpush.bf16.msra.mxu0 0
        %473 = vmatpush.bf16.msra.mxu0 0
        %474 = vmatpush.bf16.msra.mxu0 0
        %475 = vmatpush.bf16.msra.mxu0 0
        %476 = vmatpush.bf16.msra.mxu0 0
        %477 = vmatpush.bf16.msra.mxu0 %v465
        %478 = vmatpush.bf16.msra.mxu0 %v464
        %479 = vmatmul.bf16.gmra.mxu0 %v469
        %v480 = vpop.f32.mrf.mxu0
        %v481 = vadd.f32 0.0, %v480
        %v482 = vpop.f32.mrf.mxu0
        %483 = vdwg.mxu0
        %485 = vrot.lane.b32.xlu0 %v481, 120
        %v486 = vpop.permute.xlu0 %485
        %488 = vrot.lane.b32.xlu0 %v481, 112
        %v489 = vpop.permute.xlu0 %488
        %491 = vrot.lane.b32.xlu0 %v481, 104
        %v492 = vpop.permute.xlu0 %491
        %494 = vrot.lane.b32.xlu0 %v481, 96
        %v495 = vpop.permute.xlu0 %494
        %497 = vrot.lane.b32.xlu0 %v481, 88
        %v498 = vpop.permute.xlu0 %497
        %500 = vrot.lane.b32.xlu0 %v481, 80
        %v501 = vpop.permute.xlu0 %500
        %503 = vrot.lane.b32.xlu0 %v481, 72
        %v504 = vpop.permute.xlu0 %503
        %506 = vrot.lane.b32.xlu0 %v481, 64
        %v507 = vpop.permute.xlu0 %506
        %509 = vrot.lane.b32.xlu0 %v481, 56
        %v510 = vpop.permute.xlu0 %509
        %512 = vrot.lane.b32.xlu0 %v481, 48
        %v513 = vpop.permute.xlu0 %512
        %515 = vrot.lane.b32.xlu0 %v481, 40
        %v516 = vpop.permute.xlu0 %515
        %v518 = vrot.slane %v489, 4
        %vm519 = vcmask 1047556
        %v520 = vsel %vm519, %v518, %v481
        %v521 = vrot.slane %v481, 4
        %v522 = vsel %vm519, %v489, %v521
        %v524 = vunpack.c.l.s4 1983009808
        %v525 = vunpack.c.0.s8 %v524
        %v526 = vperm.slane %v520, %v525
        %v528 = vunpack.c.l.s4 1983009808
        %v529 = vunpack.c.0.s8 %v528
        %v530 = vperm.slane %v522, %v529
        %v531 = vrot.slane %v492, 4
        %v532 = vsel %vm519, %v531, %v486
        %v533 = vrot.slane %v486, 4
        %v534 = vsel %vm519, %v492, %v533
        %v536 = vunpack.c.l.s4 1983009808
        %v537 = vunpack.c.0.s8 %v536
        %v538 = vperm.slane %v532, %v537
        %v540 = vunpack.c.l.s4 1983009808
        %v541 = vunpack.c.0.s8 %v540
        %v542 = vperm.slane %v534, %v541
        %v543 = vrot.slane %v501, 4
        %v544 = vsel %vm519, %v543, %v495
        %v545 = vrot.slane %v495, 4
        %v546 = vsel %vm519, %v501, %v545
        %v548 = vunpack.c.l.s4 1983009808
        %v549 = vunpack.c.0.s8 %v548
        %v550 = vperm.slane %v544, %v549
        %v552 = vunpack.c.l.s4 1983009808
        %v553 = vunpack.c.0.s8 %v552
        %v554 = vperm.slane %v546, %v553
        %v555 = vrot.slane %v504, 4
        %v556 = vsel %vm519, %v555, %v498
        %v557 = vrot.slane %v498, 4
        %v558 = vsel %vm519, %v504, %v557
        %v560 = vunpack.c.l.s4 1983009808
        %v561 = vunpack.c.0.s8 %v560
        %v562 = vperm.slane %v556, %v561
        %v564 = vunpack.c.l.s4 1983009808
        %v565 = vunpack.c.0.s8 %v564
        %v566 = vperm.slane %v558, %v565
        %v567 = vrot.slane %v538, 4
        %v568 = vsel %vm519, %v567, %v526
        %v569 = vrot.slane %v526, 4
        %v570 = vsel %vm519, %v538, %v569
        %v572 = vunpack.c.l.s4 1934713408
        %v573 = vunpack.c.0.s8 %v572
        %v574 = vperm.slane %v568, %v573
        %v576 = vunpack.c.l.s4 1934713408
        %v577 = vunpack.c.0.s8 %v576
        %v578 = vperm.slane %v570, %v577
        %v579 = vrot.slane %v542, 4
        %v580 = vsel %vm519, %v579, %v530
        %v581 = vrot.slane %v530, 4
        %v582 = vsel %vm519, %v542, %v581
        %v584 = vunpack.c.l.s4 1934713408
        %v585 = vunpack.c.0.s8 %v584
        %v586 = vperm.slane %v580, %v585
        %v588 = vunpack.c.l.s4 1934713408
        %v589 = vunpack.c.0.s8 %v588
        %v590 = vperm.slane %v582, %v589
        %v591 = vrot.slane %v562, 4
        %v592 = vsel %vm519, %v591, %v550
        %v593 = vrot.slane %v550, 4
        %v594 = vsel %vm519, %v562, %v593
        %v596 = vunpack.c.l.s4 1934713408
        %v597 = vunpack.c.0.s8 %v596
        %v598 = vperm.slane %v592, %v597
        %v600 = vunpack.c.l.s4 1934713408
        %v601 = vunpack.c.0.s8 %v600
        %v602 = vperm.slane %v594, %v601
        %v603 = vrot.slane %v566, 4
        %v604 = vsel %vm519, %v603, %v554
        %v605 = vrot.slane %v554, 4
        %v606 = vsel %vm519, %v566, %v605
        %v608 = vunpack.c.l.s4 1934713408
        %v609 = vunpack.c.0.s8 %v608
        %v610 = vperm.slane %v604, %v609
        %v612 = vunpack.c.l.s4 1934713408
        %v613 = vunpack.c.0.s8 %v612
        %v614 = vperm.slane %v606, %v613
        %v615 = vrot.slane %v598, 4
        %v616 = vsel %vm519, %v615, %v574
        %v617 = vrot.slane %v574, 4
        %v618 = vsel %vm519, %v598, %v617
        %v619 = vrot.slane %v602, 4
        %v620 = vsel %vm519, %v619, %v578
        %v621 = vrot.slane %v578, 4
        %v622 = vsel %vm519, %v602, %v621
        %v623 = vrot.slane %v610, 4
        %v624 = vsel %vm519, %v623, %v586
        %v625 = vrot.slane %v586, 4
        %v626 = vsel %vm519, %v610, %v625
        %v627 = vrot.slane %v614, 4
        %v628 = vsel %vm519, %v627, %v590
        %v629 = vrot.slane %v590, 4
        %v630 = vsel %vm519, %v614, %v629
        %v631 = vrot.slane %v513, 4
        %v632 = vsel %vm519, %v631, %v507
        %v633 = vrot.slane %v507, 4
        %v634 = vsel %vm519, %v513, %v633
        %v636 = vunpack.c.l.s4 1983009808
        %v637 = vunpack.c.0.s8 %v636
        %v638 = vperm.slane %v632, %v637
        %v640 = vunpack.c.l.s4 1983009808
        %v641 = vunpack.c.0.s8 %v640
        %v642 = vperm.slane %v634, %v641
        %v643 = vrot.slane %v516, 4
        %v644 = vsel %vm519, %v643, %v510
        %v645 = vrot.slane %v510, 4
        %v646 = vsel %vm519, %v516, %v645
        %v648 = vunpack.c.l.s4 1983009808
        %v649 = vunpack.c.0.s8 %v648
        %v650 = vperm.slane %v644, %v649
        %v652 = vunpack.c.l.s4 1983009808
        %v653 = vunpack.c.0.s8 %v652
        %v654 = vperm.slane %v646, %v653
        %v655 = vrot.slane %v650, 4
        %v656 = vsel %vm519, %v655, %v638
        %v657 = vrot.slane %v638, 4
        %v658 = vsel %vm519, %v650, %v657
        %v660 = vunpack.c.l.s4 1934713408
        %v661 = vunpack.c.0.s8 %v660
        %v662 = vperm.slane %v656, %v661
        %v664 = vunpack.c.l.s4 1934713408
        %v665 = vunpack.c.0.s8 %v664
        %v666 = vperm.slane %v658, %v665
        %v667 = vrot.slane %v654, 4
        %v668 = vsel %vm519, %v667, %v642
        %v669 = vrot.slane %v642, 4
        %v670 = vsel %vm519, %v654, %v669
        %v672 = vunpack.c.l.s4 1934713408
        %v673 = vunpack.c.0.s8 %v672
        %v674 = vperm.slane %v668, %v673
        %v676 = vunpack.c.l.s4 1934713408
        %v677 = vunpack.c.0.s8 %v676
        %v678 = vperm.slane %v670, %v677
        %v679 = vrot.slane %v662, 4
        %v680 = vsel %vm519, 0.0, %v679
        %v681 = vrot.slane %v666, 4
        %v682 = vsel %vm519, 0.0, %v681
        %v683 = vrot.slane %v674, 4
        %v684 = vsel %vm519, 0.0, %v683
        %v685 = vrot.slane %v678, 4
        %v686 = vsel %vm519, 0.0, %v685
        %v687 = vrot.slane %v620, 4
        %v688 = vsel %vm519, %v687, %v616
        %v689 = vrot.slane %v616, 4
        %v690 = vsel %vm519, %v620, %v689
        %v692 = vunpack.c.l.s4 1983009808
        %v693 = vunpack.c.0.s8 %v692
        %v694 = vperm.slane %v688, %v693
        %v696 = vunpack.c.l.s4 1983009808
        %v697 = vunpack.c.0.s8 %v696
        %v698 = vperm.slane %v690, %v697
        %v699 = vrot.slane %v622, 4
        %v700 = vsel %vm519, %v699, %v618
        %v701 = vrot.slane %v618, 4
        %v702 = vsel %vm519, %v622, %v701
        %v704 = vunpack.c.l.s4 1983009808
        %v705 = vunpack.c.0.s8 %v704
        %v706 = vperm.slane %v700, %v705
        %v708 = vunpack.c.l.s4 1983009808
        %v709 = vunpack.c.0.s8 %v708
        %v710 = vperm.slane %v702, %v709
        %v711 = vrot.slane %v628, 4
        %v712 = vsel %vm519, %v711, %v624
        %v713 = vrot.slane %v624, 4
        %v714 = vsel %vm519, %v628, %v713
        %v716 = vunpack.c.l.s4 1983009808
        %v717 = vunpack.c.0.s8 %v716
        %v718 = vperm.slane %v712, %v717
        %v720 = vunpack.c.l.s4 1983009808
        %v721 = vunpack.c.0.s8 %v720
        %v722 = vperm.slane %v714, %v721
        %v723 = vrot.slane %v630, 4
        %v724 = vsel %vm519, %v723, %v626
        %v725 = vrot.slane %v626, 4
        %v726 = vsel %vm519, %v630, %v725
        %v728 = vunpack.c.l.s4 1983009808
        %v729 = vunpack.c.0.s8 %v728
        %v730 = vperm.slane %v724, %v729
        %v732 = vunpack.c.l.s4 1983009808
        %v733 = vunpack.c.0.s8 %v732
        %v734 = vperm.slane %v726, %v733
        %v735 = vrot.slane %v706, 4
        %v736 = vsel %vm519, %v735, %v694
        %v737 = vrot.slane %v694, 4
        %v738 = vsel %vm519, %v706, %v737
        %v740 = vunpack.c.l.s4 1934713408
        %v741 = vunpack.c.0.s8 %v740
        %v742 = vperm.slane %v736, %v741
        %v744 = vunpack.c.l.s4 1934713408
        %v745 = vunpack.c.0.s8 %v744
        %v746 = vperm.slane %v738, %v745
        %v747 = vrot.slane %v710, 4
        %v748 = vsel %vm519, %v747, %v698
        %v749 = vrot.slane %v698, 4
        %v750 = vsel %vm519, %v710, %v749
        %v752 = vunpack.c.l.s4 1934713408
        %v753 = vunpack.c.0.s8 %v752
        %v754 = vperm.slane %v748, %v753
        %v756 = vunpack.c.l.s4 1934713408
        %v757 = vunpack.c.0.s8 %v756
        %v758 = vperm.slane %v750, %v757
        %v759 = vrot.slane %v730, 4
        %v760 = vsel %vm519, %v759, %v718
        %v761 = vrot.slane %v718, 4
        %v762 = vsel %vm519, %v730, %v761
        %v764 = vunpack.c.l.s4 1934713408
        %v765 = vunpack.c.0.s8 %v764
        %v766 = vperm.slane %v760, %v765
        %v768 = vunpack.c.l.s4 1934713408
        %v769 = vunpack.c.0.s8 %v768
        %v770 = vperm.slane %v762, %v769
        %v771 = vrot.slane %v734, 4
        %v772 = vsel %vm519, %v771, %v722
        %v773 = vrot.slane %v722, 4
        %v774 = vsel %vm519, %v734, %v773
        %v776 = vunpack.c.l.s4 1934713408
        %v777 = vunpack.c.0.s8 %v776
        %v778 = vperm.slane %v772, %v777
        %v780 = vunpack.c.l.s4 1934713408
        %v781 = vunpack.c.0.s8 %v780
        %v782 = vperm.slane %v774, %v781
        %v783 = vrot.slane %v766, 4
        %v784 = vsel %vm519, %v783, %v742
        %v785 = vrot.slane %v742, 4
        %v786 = vsel %vm519, %v766, %v785
        %v787 = vrot.slane %v770, 4
        %v788 = vsel %vm519, %v787, %v746
        %v789 = vrot.slane %v746, 4
        %v790 = vsel %vm519, %v770, %v789
        %v791 = vrot.slane %v778, 4
        %v792 = vsel %vm519, %v791, %v754
        %v793 = vrot.slane %v754, 4
        %v794 = vsel %vm519, %v778, %v793
        %v795 = vrot.slane %v782, 4
        %v796 = vsel %vm519, %v795, %v758
        %v797 = vrot.slane %v758, 4
        %v798 = vsel %vm519, %v782, %v797
        %v799 = vsel %vm519, %v681, %v662
        %v801 = vunpack.c.l.s4 1983009808
        %v802 = vunpack.c.0.s8 %v801
        %v803 = vperm.slane %v799, %v802
        %v804 = vrot.slane %v682, 4
        %v805 = vsel %vm519, %v804, %v680
        %v807 = vunpack.c.l.s4 1983009808
        %v808 = vunpack.c.0.s8 %v807
        %v809 = vperm.slane %v805, %v808
        %v810 = vsel %vm519, %v685, %v674
        %v812 = vunpack.c.l.s4 1983009808
        %v813 = vunpack.c.0.s8 %v812
        %v814 = vperm.slane %v810, %v813
        %v815 = vrot.slane %v686, 4
        %v816 = vsel %vm519, %v815, %v684
        %v818 = vunpack.c.l.s4 1983009808
        %v819 = vunpack.c.0.s8 %v818
        %v820 = vperm.slane %v816, %v819
        %v821 = vrot.slane %v809, 4
        %v822 = vsel %vm519, %v821, %v803
        %v823 = vrot.slane %v803, 4
        %v824 = vsel %vm519, %v809, %v823
        %v826 = vunpack.c.l.s4 1934713408
        %v827 = vunpack.c.0.s8 %v826
        %v828 = vperm.slane %v822, %v827
        %v830 = vunpack.c.l.s4 1934713408
        %v831 = vunpack.c.0.s8 %v830
        %v832 = vperm.slane %v824, %v831
        %v833 = vrot.slane %v820, 4
        %v834 = vsel %vm519, %v833, %v814
        %v835 = vrot.slane %v814, 4
        %v836 = vsel %vm519, %v820, %v835
        %v838 = vunpack.c.l.s4 1934713408
        %v839 = vunpack.c.0.s8 %v838
        %v840 = vperm.slane %v834, %v839
        %v842 = vunpack.c.l.s4 1934713408
        %v843 = vunpack.c.0.s8 %v842
        %v844 = vperm.slane %v836, %v843
        %v845 = vrot.slane %v840, 4
        %v846 = vsel %vm519, %v845, %v828
        %v847 = vrot.slane %v828, 4
        %v848 = vsel %vm519, %v840, %v847
        %v849 = vrot.slane %v844, 4
        %v850 = vsel %vm519, %v849, %v832
        %v851 = vrot.slane %v832, 4
        %v852 = vsel %vm519, %v844, %v851
        %v853 = vpack.c.bf16 %v784, %v784
        %v854 = vpack.c.bf16 %v786, %v786
        %v855 = vpack.c.bf16 %v788, %v788
        %v856 = vpack.c.bf16 %v790, %v790
        %vm857 = vcmask 60416
        %858 = vst.msk [vmem:[#allocation2] sm:$0xf] %vm857, %v853
        %859 = vst.msk [vmem:[#allocation2 + $0x4] sm:$0xf] %vm857, %v854
        %860 = vst.msk [vmem:[#allocation2 + $0x8] sm:$0xf] %vm857, %v855
        %861 = vst.msk [vmem:[#allocation2 + $0xc] sm:$0xf] %vm857, %v856
        %v862 = vpack.c.bf16 %v792, %v792
        %v863 = vpack.c.bf16 %v794, %v794
        %v864 = vpack.c.bf16 %v796, %v796
        %v865 = vpack.c.bf16 %v798, %v798
        %v866 = vpack.c.bf16 %v846, %v846
        %v867 = vpack.c.bf16 %v848, %v848
        %v868 = vpack.c.bf16 %v850, %v850
        %v869 = vpack.c.bf16 %v852, %v852
        %v870 = vld [vmem:[%s4] sm:$0xf]
        %v871 = vld [vmem:[%s4 + $0x4] sm:$0xf]
        %v872 = vld [vmem:[%s4 + $0x8] sm:$0xf]
        %v873 = vld [vmem:[%s4 + $0xc] sm:$0xf]
        %v874 = vld [vmem:[#allocation2] sm:$0xf]
        %v875 = vld [vmem:[#allocation2 + $0x4] sm:$0xf]
        %v876 = vld [vmem:[#allocation2 + $0x8] sm:$0xf]
        %v877 = vld [vmem:[#allocation2 + $0xc] sm:$0xf]
        %vm878 = vcmask 64512
        %v880 = vsel %vm878, %v874, 0
        %v883 = vsel %vm878, %v862, 0
        %885 = vmatpush.bf16.xpose.msra.mxu0 0
        %886 = vmatpush.bf16.xpose.msra.mxu0 0
        %887 = vmatpush.bf16.xpose.msra.mxu0 0
        %888 = vmatpush.bf16.xpose.msra.mxu0 0
        %889 = vmatpush.bf16.xpose.msra.mxu0 0
        %890 = vmatpush.bf16.xpose.msra.mxu0 0
        %891 = vmatpush.bf16.xpose.msra.mxu0 0
        %892 = vmatpush.bf16.xpose.msra.mxu0 %v883
        %893 = vmatmul.bf16.gmra.mxu0 %v880
        %v894 = vpop.f32.mrf.mxu0
        %v895 = vadd.f32 0.0, %v894
        %v896 = vpop.f32.mrf.mxu0
        %897 = vdwg.mxu0
        %v899 = vsel %vm878, %v875, 0
        %v902 = vsel %vm878, %v863, 0
        %904 = vmatpush.bf16.xpose.msra.mxu0 0
        %905 = vmatpush.bf16.xpose.msra.mxu0 0
        %906 = vmatpush.bf16.xpose.msra.mxu0 0
        %907 = vmatpush.bf16.xpose.msra.mxu0 0
        %908 = vmatpush.bf16.xpose.msra.mxu0 0
        %909 = vmatpush.bf16.xpose.msra.mxu0 0
        %910 = vmatpush.bf16.xpose.msra.mxu0 0
        %911 = vmatpush.bf16.xpose.msra.mxu0 %v902
        %912 = vmatmul.bf16.gmra.mxu0 %v899
        %v913 = vpop.f32.mrf.mxu0
        %v914 = vadd.f32 0.0, %v913
        %v915 = vpop.f32.mrf.mxu0
        %916 = vdwg.mxu0
        %v918 = vsel %vm878, %v876, 0
        %v921 = vsel %vm878, %v864, 0
        %923 = vmatpush.bf16.xpose.msra.mxu0 0
        %924 = vmatpush.bf16.xpose.msra.mxu0 0
        %925 = vmatpush.bf16.xpose.msra.mxu0 0
        %926 = vmatpush.bf16.xpose.msra.mxu0 0
        %927 = vmatpush.bf16.xpose.msra.mxu0 0
        %928 = vmatpush.bf16.xpose.msra.mxu0 0
        %929 = vmatpush.bf16.xpose.msra.mxu0 0
        %930 = vmatpush.bf16.xpose.msra.mxu0 %v921
        %931 = vmatmul.bf16.gmra.mxu0 %v918
        %v932 = vpop.f32.mrf.mxu0
        %v933 = vadd.f32 0.0, %v932
        %v934 = vpop.f32.mrf.mxu0
        %935 = vdwg.mxu0
        %v937 = vsel %vm878, %v877, 0
        %v940 = vsel %vm878, %v865, 0
        %942 = vmatpush.bf16.xpose.msra.mxu0 0
        %943 = vmatpush.bf16.xpose.msra.mxu0 0
        %944 = vmatpush.bf16.xpose.msra.mxu0 0
        %945 = vmatpush.bf16.xpose.msra.mxu0 0
        %946 = vmatpush.bf16.xpose.msra.mxu0 0
        %947 = vmatpush.bf16.xpose.msra.mxu0 0
        %948 = vmatpush.bf16.xpose.msra.mxu0 0
        %949 = vmatpush.bf16.xpose.msra.mxu0 %v940
        %950 = vmatmul.bf16.gmra.mxu0 %v937
        %v951 = vpop.f32.mrf.mxu0
        %v952 = vadd.f32 0.0, %v951
        %v953 = vpop.f32.mrf.mxu0
        %954 = vdwg.mxu0
        %v955 = vsel %vm878, %v895, -inf
        %956 = vmax.xlane.f32.xlu0 %v955
        %v957 = vpop.xlane.xlu0 %956
        %v958 = vsel %vm878, %v914, -inf
        %959 = vmax.xlane.f32.xlu0 %v958
        %v960 = vpop.xlane.xlu0 %959
        %v961 = vsel %vm878, %v933, -inf
        %962 = vmax.xlane.f32.xlu0 %v961
        %v963 = vpop.xlane.xlu0 %962
        %v964 = vsel %vm878, %v952, -inf
        %965 = vmax.xlane.f32.xlu0 %v964
        %v966 = vpop.xlane.xlu0 %965
        %v967 = vsub.f32 %v895, %v957
        %v968 = vsub.f32 %v914, %v960
        %v969 = vsub.f32 %v933, %v963
        %v970 = vsub.f32 %v952, %v966
        %v971 = vmul.f32 %v967, 1.442695
        %v972 = vpow.pop %v971
        %v973 = vmul.f32 %v968, 1.442695
        %v974 = vpow.pop %v973
        %v975 = vmul.f32 %v969, 1.442695
        %v976 = vpow.pop %v975
        %v977 = vmul.f32 %v970, 1.442695
        %v978 = vpow.pop %v977
        %v979 = vsel %vm878, %v972, 0.0
        %980 = vadd.xlane.f32.xlu0 %v979
        %v981 = vpop.xlane.xlu0 %980
        %v982 = vsel %vm878, %v974, 0.0
        %983 = vadd.xlane.f32.xlu0 %v982
        %v984 = vpop.xlane.xlu0 %983
        %v985 = vsel %vm878, %v976, 0.0
        %986 = vadd.xlane.f32.xlu0 %v985
        %v987 = vpop.xlane.xlu0 %986
        %v988 = vsel %vm878, %v978, 0.0
        %989 = vadd.xlane.f32.xlu0 %v988
        %v990 = vpop.xlane.xlu0 %989
        %v991 = vrcp.pop %v981
        %v992 = vrcp.pop %v984
        %v993 = vrcp.pop %v987
        %v994 = vrcp.pop %v990
        %v995 = vmul.f32 %v972, %v991
        %v996 = vmul.f32 %v974, %v992
        %v997 = vmul.f32 %v976, %v993
        %v998 = vmul.f32 %v978, %v994
        %v999 = vpack.c.bf16 %v995, %v995
        %v1000 = vpack.c.bf16 %v996, %v996
        %v1001 = vpack.c.bf16 %v997, %v997
        %v1002 = vpack.c.bf16 %v998, %v998
        %v1004 = vsel %vm878, %v999, 0
        %vm1006 = vcmask 1043456
        %v1008 = vsel %vm1006, %v866, 0
        %1010 = vmatpush.bf16.msra.mxu0 0
        %1011 = vmatpush.bf16.msra.mxu0 0
        %1012 = vmatpush.bf16.msra.mxu0 0
        %1013 = vmatpush.bf16.msra.mxu0 0
        %1014 = vmatpush.bf16.msra.mxu0 0
        %1015 = vmatpush.bf16.msra.mxu0 0
        %1016 = vmatpush.bf16.msra.mxu0 0
        %1017 = vmatpush.bf16.msra.mxu0 %v1008
        %1018 = vmatmul.bf16.gmra.mxu0 %v1004
        %v1019 = vpop.f32.mrf.mxu0
        %v1020 = vadd.f32 0.0, %v1019
        %v1021 = vpop.f32.mrf.mxu0
        %1022 = vdwg.mxu0
        %v1024 = vsel %vm878, %v1000, 0
        %v1027 = vsel %vm1006, %v867, 0
        %1029 = vmatpush.bf16.msra.mxu0 0
        %1030 = vmatpush.bf16.msra.mxu0 0
        %1031 = vmatpush.bf16.msra.mxu0 0
        %1032 = vmatpush.bf16.msra.mxu0 0
        %1033 = vmatpush.bf16.msra.mxu0 0
        %1034 = vmatpush.bf16.msra.mxu0 0
        %1035 = vmatpush.bf16.msra.mxu0 0
        %1036 = vmatpush.bf16.msra.mxu0 %v1027
        %1037 = vmatmul.bf16.gmra.mxu0 %v1024
        %v1038 = vpop.f32.mrf.mxu0
        %v1039 = vadd.f32 0.0, %v1038
        %v1040 = vpop.f32.mrf.mxu0
        %1041 = vdwg.mxu0
        %v1043 = vsel %vm878, %v1001, 0
        %v1046 = vsel %vm1006, %v868, 0
        %1048 = vmatpush.bf16.msra.mxu0 0
        %1049 = vmatpush.bf16.msra.mxu0 0
        %1050 = vmatpush.bf16.msra.mxu0 0
        %1051 = vmatpush.bf16.msra.mxu0 0
        %1052 = vmatpush.bf16.msra.mxu0 0
        %1053 = vmatpush.bf16.msra.mxu0 0
        %1054 = vmatpush.bf16.msra.mxu0 0
        %1055 = vmatpush.bf16.msra.mxu0 %v1046
        %1056 = vmatmul.bf16.gmra.mxu0 %v1043
        %v1057 = vpop.f32.mrf.mxu0
        %v1058 = vadd.f32 0.0, %v1057
        %v1059 = vpop.f32.mrf.mxu0
        %1060 = vdwg.mxu0
        %v1062 = vsel %vm878, %v1002, 0
        %v1065 = vsel %vm1006, %v869, 0
        %1067 = vmatpush.bf16.msra.mxu0 0
        %1068 = vmatpush.bf16.msra.mxu0 0
        %1069 = vmatpush.bf16.msra.mxu0 0
        %1070 = vmatpush.bf16.msra.mxu0 0
        %1071 = vmatpush.bf16.msra.mxu0 0
        %1072 = vmatpush.bf16.msra.mxu0 0
        %1073 = vmatpush.bf16.msra.mxu0 0
        %1074 = vmatpush.bf16.msra.mxu0 %v1065
        %1075 = vmatmul.bf16.gmra.mxu0 %v1062
        %v1076 = vpop.f32.mrf.mxu0
        %v1077 = vadd.f32 0.0, %v1076
        %v1078 = vpop.f32.mrf.mxu0
        %1079 = vdwg.mxu0
        %v1080 = vrot.slane %v1058, 4
        %v1081 = vsel %vm519, %v1080, %v1020
        %v1082 = vrot.slane %v1020, 4
        %v1083 = vsel %vm519, %v1058, %v1082
        %v1085 = vunpack.c.l.s4 1983009808
        %v1086 = vunpack.c.0.s8 %v1085
        %v1087 = vperm.slane %v1081, %v1086
        %v1089 = vunpack.c.l.s4 1983009808
        %v1090 = vunpack.c.0.s8 %v1089
        %v1091 = vperm.slane %v1083, %v1090
        %v1092 = vrot.slane %v1077, 4
        %v1093 = vsel %vm519, %v1092, %v1039
        %v1094 = vrot.slane %v1039, 4
        %v1095 = vsel %vm519, %v1077, %v1094
        %v1097 = vunpack.c.l.s4 1983009808
        %v1098 = vunpack.c.0.s8 %v1097
        %v1099 = vperm.slane %v1093, %v1098
        %v1101 = vunpack.c.l.s4 1983009808
        %v1102 = vunpack.c.0.s8 %v1101
        %v1103 = vperm.slane %v1095, %v1102
        %v1104 = vrot.slane %v1099, 4
        %v1105 = vsel %vm519, %v1104, %v1087
        %v1106 = vrot.slane %v1087, 4
        %v1107 = vsel %vm519, %v1099, %v1106
        %v1109 = vunpack.c.l.s4 1934713408
        %v1110 = vunpack.c.0.s8 %v1109
        %v1111 = vperm.slane %v1105, %v1110
        %v1113 = vunpack.c.l.s4 1934713408
        %v1114 = vunpack.c.0.s8 %v1113
        %v1115 = vperm.slane %v1107, %v1114
        %v1116 = vrot.slane %v1103, 4
        %v1117 = vsel %vm519, %v1116, %v1091
        %v1118 = vrot.slane %v1091, 4
        %v1119 = vsel %vm519, %v1103, %v1118
        %v1121 = vunpack.c.l.s4 1934713408
        %v1122 = vunpack.c.0.s8 %v1121
        %v1123 = vperm.slane %v1117, %v1122
        %v1125 = vunpack.c.l.s4 1934713408
        %v1126 = vunpack.c.0.s8 %v1125
        %v1127 = vperm.slane %v1119, %v1126
        %v1128 = vrot.slane %v1111, 4
        %v1129 = vsel %vm519, 0.0, %v1128
        %v1130 = vrot.slane %v1115, 4
        %v1131 = vsel %vm519, 0.0, %v1130
        %v1132 = vrot.slane %v1123, 4
        %v1133 = vsel %vm519, 0.0, %v1132
        %v1134 = vrot.slane %v1127, 4
        %v1135 = vsel %vm519, 0.0, %v1134
        %v1136 = vsel %vm519, %v1130, %v1111
        %v1138 = vunpack.c.l.s4 1983009808
        %v1139 = vunpack.c.0.s8 %v1138
        %v1140 = vperm.slane %v1136, %v1139
        %v1141 = vrot.slane %v1131, 4
        %v1142 = vsel %vm519, %v1141, %v1129
        %v1144 = vunpack.c.l.s4 1983009808
        %v1145 = vunpack.c.0.s8 %v1144
        %v1146 = vperm.slane %v1142, %v1145
        %v1147 = vsel %vm519, %v1134, %v1123
        %v1149 = vunpack.c.l.s4 1983009808
        %v1150 = vunpack.c.0.s8 %v1149
        %v1151 = vperm.slane %v1147, %v1150
        %v1152 = vrot.slane %v1135, 4
        %v1153 = vsel %vm519, %v1152, %v1133
        %v1155 = vunpack.c.l.s4 1983009808
        %v1156 = vunpack.c.0.s8 %v1155
        %v1157 = vperm.slane %v1153, %v1156
        %v1158 = vrot.slane %v1146, 4
        %v1159 = vsel %vm519, %v1158, %v1140
        %v1160 = vrot.slane %v1140, 4
        %v1161 = vsel %vm519, %v1146, %v1160
        %v1163 = vunpack.c.l.s4 1934713408
        %v1164 = vunpack.c.0.s8 %v1163
        %v1165 = vperm.slane %v1159, %v1164
        %v1167 = vunpack.c.l.s4 1934713408
        %v1168 = vunpack.c.0.s8 %v1167
        %v1169 = vperm.slane %v1161, %v1168
        %v1170 = vrot.slane %v1157, 4
        %v1171 = vsel %vm519, %v1170, %v1151
        %v1172 = vrot.slane %v1151, 4
        %v1173 = vsel %vm519, %v1157, %v1172
        %v1175 = vunpack.c.l.s4 1934713408
        %v1176 = vunpack.c.0.s8 %v1175
        %v1177 = vperm.slane %v1171, %v1176
        %v1179 = vunpack.c.l.s4 1934713408
        %v1180 = vunpack.c.0.s8 %v1179
        %v1181 = vperm.slane %v1173, %v1180
        %v1182 = vrot.slane %v1177, 4
        %v1183 = vsel %vm519, %v1182, %v1165
        %v1184 = vrot.slane %v1165, 4
        %v1185 = vsel %vm519, %v1177, %v1184
        %v1186 = vrot.slane %v1181, 4
        %v1187 = vsel %vm519, %v1186, %v1169
        %v1188 = vrot.slane %v1169, 4
        %v1189 = vsel %vm519, %v1181, %v1188
        %1191 = vrot.lane.b32.xlu0 %v1185, 8
        %v1192 = vpop.permute.xlu0 %1191
        %1195 = vrot.lane.b32.xlu0 %v1187, 16
        %v1196 = vpop.permute.xlu0 %1195
        %1199 = vrot.lane.b32.xlu0 %v1189, 24
        %v1200 = vpop.permute.xlu0 %1199
        %v1202 = vsel %vm878, %v1183, %v1192
        %vm1203 = vcmask 130048
        %v1204 = vsel %vm1203, %v1202, %v1196
        %vm1205 = vcmask 195584
        %v1206 = vsel %vm1205, %v1204, %v1200
        %v1207 = vpack.c.bf16 %v1206, %v1206
        %v1212 = vunpack.c.l.b16 %v870
        %v1213 = vunpack.c.l.b16 %v871
        %v1214 = vunpack.c.l.b16 %v872
        %v1215 = vunpack.c.l.b16 %v873
        %v1216 = vpack.c.b16 %v1213, %v1212
        %v1217 = vpack.c.b16 %v1215, %v1214
        %v1221 = vsel %vm413, %v1207, 0
        %1223 = vmatpush.bf16.msra.mxu0 0
        %1224 = vmatpush.bf16.msra.mxu0 0
        %1225 = vmatpush.bf16.msra.mxu0 0
        %1226 = vmatpush.bf16.msra.mxu0 0
        %1227 = vmatpush.bf16.msra.mxu0 0
        %1228 = vmatpush.bf16.msra.mxu0 0
        %1229 = vmatpush.bf16.msra.mxu0 %v1217
        %1230 = vmatpush.bf16.msra.mxu0 %v1216
        %1231 = vmatmul.bf16.gmra.mxu0 %v1221
        %v1232 = vpop.f32.mrf.mxu0
        %v1233 = vadd.f32 0.0, %v1232
        %v1234 = vpop.f32.mrf.mxu0
        %1235 = vdwg.mxu0
        %1236 = vst.msk [vmem:[#allocation3] sm:$0xff] %vm413, %v1233
        %v1237 = vld [vmem:[#allocation3] sm:$0xff]
        %v1238 = vld [vmem:[%s5] sm:$0x1]
        %v1240 = vperm.slane %v1238, 0
        %v1242 = vadd.f32 %v1237, %v1240
        %v1243 = vadd.f32 %v410, %v1242
        %v1244 = vld [vmem:[%s6] sm:$0x1]
        %v1245 = vld [vmem:[%s7] sm:$0x1]
        %v1246 = vsel %vm413, %v1243, 0.0
        %1247 = vadd.xlane.f32.xlu0 %v1246
        %v1248 = vpop.xlane.xlu0 %1247
        %v1249 = vmul.f32 %v1248, %v423
        %v1250 = vsub.f32 %v1243, %v1249
        %v1251 = vmul.f32 %v1250, %v1250
        %v1252 = vsel %vm413, %v1251, 0.0
        %1253 = vadd.xlane.f32.xlu0 %v1252
        %v1254 = vpop.xlane.xlu0 %1253
        %v1255 = vmul.f32 %v1254, %v423
        %v1256 = vadd.f32 %v1255, 1e-05
        %v1257 = vrsqrt.pop %v1256
        %v1258 = vmul.f32 %v1257, %v1256
        %v1259 = vmul.f32 %v1258, %v1257
        %v1260 = vmul.f32 0.5, %v1259
        %v1261 = vsub.f32 1.5, %v1260
        %v1262 = vmul.f32 %v1257, %v1261
        %vm1263 = vweird.f32 %v1256
        %vm1264 = vweird.f32 %v1257
        %vm1265 = vmor %vm1263, %vm1264
        %v1266 = vsel %vm1265, %v1257, %v1262
        %v1267 = vmul.f32 %v1250, %v1266
        %v1269 = vperm.slane %v1244, 0
        %v1271 = vmul.f32 %v1267, %v1269
        %v1273 = vperm.slane %v1245, 0
        %v1275 = vadd.f32 %v1271, %v1273
        %v1276 = vpack.c.bf16 %v1275, %v1275
        %v1277 = vld [vmem:[%s8] sm:$0xf]
        %v1278 = vld [vmem:[%s8 + $0x4] sm:$0xf]
        %v1279 = vld [vmem:[%s8 + $0x8] sm:$0xf]
        %v1280 = vld [vmem:[%s8 + $0xc] sm:$0xf]
        %v1281 = vld [vmem:[%s9] sm:$0x1]
        %v1283 = vperm.slane %v1281, 0
        %v1289 = vunpack.c.l.b16 %v1277
        %v1290 = vunpack.c.l.b16 %v1278
        %v1291 = vunpack.c.l.b16 %v1279
        %v1292 = vunpack.c.l.b16 %v1280
        %v1293 = vpack.c.b16 %v1290, %v1289
        %v1294 = vpack.c.b16 %v1292, %v1291
        %v1298 = vsel %vm413, %v1276, 0
        %1300 = vmatpush.bf16.msra.mxu0 0
        %1301 = vmatpush.bf16.msra.mxu0 0
        %1302 = vmatpush.bf16.msra.mxu0 0
        %1303 = vmatpush.bf16.msra.mxu0 0
        %1304 = vmatpush.bf16.msra.mxu0 0
        %1305 = vmatpush.bf16.msra.mxu0 0
        %1306 = vmatpush.bf16.msra.mxu0 %v1294
        %1307 = vmatpush.bf16.msra.mxu0 %v1293
        %1308 = vmatmul.bf16.gmra.mxu0 %v1298
        %v1309 = vpop.f32.mrf.mxu0
        %v1310 = vadd.f32 %v1283, %v1309
        %v1311 = vpop.f32.mrf.mxu0
        %1312 = vdwg.mxu0
        %v1313 = vmul.f32 %v1310, 0.5
        %v1314 = vrcp.pop 1.4142135
        %v1315 = vmul.f32 1.4142135, %v1314
        %v1316 = vsub.f32 1.0, %v1315
        %v1317 = vmul.f32 %v1314, %v1316
        %v1318 = vadd.f32 %v1314, %v1317
        %vm1319 = vweird.f32 %v1314
        %v1320 = vsel %vm1319, %v1314, %v1318
        %v1321 = vmul.f32 %v1310, %v1320
        %v1322 = vmul.f32 %v1321, %v1321
        %v1323 = vmin.f32 16.0, %v1322
        %v1324 = vmul.f32 %v1323, 2.1237322e-06
        %v1325 = vadd.f32 %v1324, 0.00028619796
        %v1326 = vmul.f32 %v1323, %v1325
        %v1327 = vadd.f32 %v1326, 0.0036580483
        %v1328 = vmul.f32 %v1323, %v1327
        %v1329 = vadd.f32 %v1328, 0.05243302
        %v1330 = vmul.f32 %v1323, %v1329
        %v1331 = vadd.f32 %v1330, 0.18741608
        %v1332 = vmul.f32 %v1323, %v1331
        %v1333 = vadd.f32 %v1332, 1.1283791
        %v1334 = vmul.f32 %v1321, %v1333
        %v1335 = vmul.f32 %v1323, 3.8918573e-05
        %v1336 = vadd.f32 %v1335, 0.001143296
        %v1337 = vmul.f32 %v1323, %v1336
        %v1338 = vadd.f32 %v1337, 0.014752088
        %v1339 = vmul.f32 %v1323, %v1338
        %v1340 = vadd.f32 %v1339, 0.112945676
        %v1341 = vmul.f32 %v1323, %v1340
        %v1342 = vadd.f32 %v1341, 0.4994258
        %v1343 = vmul.f32 %v1323, %v1342
        %v1344 = vadd.f32 %v1343, 1.0
        %v1345 = vrcp.pop %v1344
        %v1346 = vmul.f32 %v1344, %v1345
        %v1347 = vsub.f32 1.0, %v1346
        %v1348 = vmul.f32 %v1345, %v1347
        %v1349 = vadd.f32 %v1345, %v1348
        %vm1350 = vweird.f32 %v1344
        %vm1351 = vweird.f32 %v1345
        %vm1352 = vmor %vm1350, %vm1351
        %v1353 = vsel %vm1352, %v1345, %v1349
        %v1354 = vand.u32 2147483647, %v1344
        %vm1355 = vcmp.eq.f32.partialorder %v1354, 8.507059e+37
        %v1356 = vand.u32 %v1344, 2147483648
        %v1357 = vor.u32 1.1754944e-38, %v1356
        %v1358 = vsel %vm1355, %v1357, %v1353
        %v1359 = vmul.f32 %v1334, %v1358
        %v1360 = vmin.f32 %v1359, 1.0
        %v1361 = vmax.f32 %v1360, -1.0
        %v1362 = vadd.f32 %v1361, 1.0
        %v1363 = vmul.f32 %v1313, %v1362
        %v1364 = vpack.c.bf16 %v1363, %v1363
        %v1365 = vld [vmem:[%s10] sm:$0xf]
        %v1366 = vld [vmem:[%s10 + $0x4] sm:$0xf]
        %v1367 = vld [vmem:[%s10 + $0x8] sm:$0xf]
        %v1368 = vld [vmem:[%s10 + $0xc] sm:$0xf]
        %v1369 = vld [vmem:[%s10 + $0x10] sm:$0xf]
        %v1370 = vld [vmem:[%s10 + $0x14] sm:$0xf]
        %v1371 = vld [vmem:[%s10 + $0x18] sm:$0xf]
        %v1372 = vld [vmem:[%s10 + $0x1c] sm:$0xf]
        %v1373 = vld [vmem:[%s10 + $0x20] sm:$0xf]
        %v1374 = vld [vmem:[%s10 + $0x24] sm:$0xf]
        %v1375 = vld [vmem:[%s10 + $0x28] sm:$0xf]
        %v1376 = vld [vmem:[%s10 + $0x2c] sm:$0xf]
        %v1377 = vld [vmem:[%s10 + $0x30] sm:$0xf]
        %v1378 = vld [vmem:[%s10 + $0x34] sm:$0xf]
        %v1379 = vld [vmem:[%s10 + $0x38] sm:$0xf]
        %v1380 = vld [vmem:[%s10 + $0x3c] sm:$0xf]
        %v1381 = vld [vmem:[%s11] sm:$0x1]
        %v1383 = vperm.slane %v1381, 0
        %v1401 = vunpack.c.l.b16 %v1365
        %v1402 = vunpack.c.l.b16 %v1366
        %v1403 = vunpack.c.l.b16 %v1367
        %v1404 = vunpack.c.l.b16 %v1368
        %v1405 = vunpack.c.l.b16 %v1369
        %v1406 = vunpack.c.l.b16 %v1370
        %v1407 = vunpack.c.l.b16 %v1371
        %v1408 = vunpack.c.l.b16 %v1372
        %v1409 = vunpack.c.l.b16 %v1373
        %v1410 = vunpack.c.l.b16 %v1374
        %v1411 = vunpack.c.l.b16 %v1375
        %v1412 = vunpack.c.l.b16 %v1376
        %v1413 = vunpack.c.l.b16 %v1377
        %v1414 = vunpack.c.l.b16 %v1378
        %v1415 = vunpack.c.l.b16 %v1379
        %v1416 = vunpack.c.l.b16 %v1380
        %v1417 = vpack.c.b16 %v1402, %v1401
        %v1418 = vpack.c.b16 %v1404, %v1403
        %v1419 = vpack.c.b16 %v1406, %v1405
        %v1420 = vpack.c.b16 %v1408, %v1407
        %v1421 = vpack.c.b16 %v1410, %v1409
        %v1422 = vpack.c.b16 %v1412, %v1411
        %v1423 = vpack.c.b16 %v1414, %v1413
        %v1424 = vpack.c.b16 %v1416, %v1415
        %1433 = vmatpush.bf16.msra.mxu0 %v1424
        %1434 = vmatpush.bf16.msra.mxu0 %v1423
        %1435 = vmatpush.bf16.msra.mxu0 %v1422
        %1436 = vmatpush.bf16.msra.mxu0 %v1421
        %1437 = vmatpush.bf16.msra.mxu0 %v1420
        %1438 = vmatpush.bf16.msra.mxu0 %v1419
        %1439 = vmatpush.bf16.msra.mxu0 %v1418
        %1440 = vmatpush.bf16.msra.mxu0 %v1417
        %1441 = vmatmul.bf16.gmra.mxu0 %v1364
        %v1442 = vpop.f32.mrf.mxu0
        %v1443 = vadd.f32 %v1383, %v1442
        %v1444 = vpop.f32.mrf.mxu0
        %1445 = vdwg.mxu0
        %v1446 = vadd.f32 %v1243, %v1443
        %1447 = vst.msk [vmem:[%s404] sm:$0xff] %vm413, %v1446
        %s1448 = sand.u32 %s291, 1
        %s1449 = scalar_lea.sflag [#allocation5], %s1448
        %s1450 = sand.u32 %s291, 1
        %s1451 = smul.addr %s1450, 8
        %s1452 = scalar_lea.vmem [#allocation4], %s1451
        // Predicated region
        $region69: #{tpu_custom_call.1} parent=67 // pred_check
          %p1453 = pneg %p301
        $region70: #{tpu_custom_call.1} parent=67 // pred_check_branch
          %1455 = sbr.rel (%p1453) target = $region72
        $region71: #{tpu_custom_call.1} parent=67 // pred_region
          %1457 = vsyncadd %s1449, 0
          %s1458 = smul.addr %s26, 8
          %s1459 = scalar_lea.hbm %s12, %s1458
          %s1461 = sshll.u32 %s1452, 4
          %s1462 = int_to_ptr.vmem [resolvable:$true] %s1461
          %s1463 = sshll.u32 %s1459, 4
          %s1464 = int_to_ptr.hbm [resolvable:$true] %s1463
          %1466 = dma.vmem_to_hbm [thread:$0]  %s1462, 128, %s1464, %s1449
        $region72: #{tpu_custom_call.1} parent=67 // pred_fallthru
          _
      $region68: #{tpu_custom_call.1} parent=5 // pred_fallthru
        _
      %p1467 = scmp.le.s32.totalorder 2, %s21
      // Predicated region
      $region73: #{tpu_custom_call.1} parent=5 // pred_check
        %p1468 = pneg %p1467
      $region74: #{tpu_custom_call.1} parent=5 // pred_check_branch
        %1470 = sbr.rel (%p1468) target = $region76
      $region75: #{tpu_custom_call.1} parent=5 // pred_region
        %s1471 = ssub.s32 %s21, 2
        // Predicated region
        $region77: #{tpu_custom_call.1} parent=75 // pred_check
          %p1472 = pneg %p307
        $region78: #{tpu_custom_call.1} parent=75 // pred_check_branch
          %1474 = sbr.rel (%p1472) target = $region80
        $region79: #{tpu_custom_call.1} parent=75 // pred_region
          %s1475 = sand.u32 %s292, 1
          %s1476 = scalar_lea.sflag [#allocation5], %s1475
          %s1477 = sand.u32 %s292, 1
          %s1478 = smul.addr %s1477, 8
          %s1479 = scalar_lea.vmem [#allocation4], %s1478
          %1481 = dma.done %s1476, 128
        $region80: #{tpu_custom_call.1} parent=75 // pred_fallthru
          _
      $region76: #{tpu_custom_call.1} parent=5 // pred_fallthru
        _
    $region6: #{tpu_custom_call.1} parent=1 // loop_footer
      %s25 = sadd.s32 1, %s21
    $region7: #{tpu_custom_call.1} parent=1 // loop_footer_branch
      %20 = sbr.rel target = $region3
    $region8: #{tpu_custom_call.1} parent=1 // loop_exit
      _
    %1482 = vsyncpa [#allocation5], 1
    %s1483 = scalar_lea.sflag [#allocation5], 1
    %1484 = vsyncpa %s1483, 1

// kernel: tpu_custom_call.1
$region0: #{tpu_custom_call.1}
  #allocation0 [shape = 'u32[]', space=smem, size = 0x4, offset = 0x4, fixed_abs, tag = 'smem constant byte address 0x4 - core index']
  #allocation1 [shape = 'u32[72,128]{1,0:T(1,128)}', space=vmem, size = 0x9000, scoped, tag = 'internal scratch']
  #allocation2 [shape = 'bf16[4,8,8]{2,1,0:T(8,128)(2,1)}', space=vmem, size = 0x2000, scoped, tag = 'scratch operand']
  #allocation3 [shape = 'f32[8,32]{1,0:T(8,128)}', space=vmem, size = 0x1000, scoped, tag = 'scratch operand']
  %s0 = inlined_call_operand.vmem [shape: f32[2,8,32], index: 0, kind: input, shape index: {}]
  %s1 = inlined_call_operand.vmem [shape: f32[1,32], index: 1, kind: input, shape index: {}]
  %s2 = inlined_call_operand.vmem [shape: f32[1,32], index: 2, kind: input, shape index: {}]
  %s3 = inlined_call_operand.vmem [shape: bf16[32,96], index: 3, kind: input, shape index: {}]
  %s4 = inlined_call_operand.vmem [shape: bf16[32,32], index: 4, kind: input, shape index: {}]
  %s5 = inlined_call_operand.vmem [shape: f32[1,32], index: 5, kind: input, shape index: {}]
  %s6 = inlined_call_operand.vmem [shape: f32[1,32], index: 6, kind: input, shape index: {}]
  %s7 = inlined_call_operand.vmem [shape: f32[1,32], index: 7, kind: input, shape index: {}]
  %s8 = inlined_call_operand.vmem [shape: bf16[32,128], index: 8, kind: input, shape index: {}]
  %s9 = inlined_call_operand.vmem [shape: f32[1,128], index: 9, kind: input, shape index: {}]
  %s10 = inlined_call_operand.vmem [shape: bf16[128,32], index: 10, kind: input, shape index: {}]
  %s11 = inlined_call_operand.vmem [shape: f32[1,32], index: 11, kind: input, shape index: {}]
  %s12 = inlined_call_operand.hbm [shape: f32[2,8,32], index: 12, kind: output, shape index: {}]
  %s13 = sld [smem:[#allocation0]]
  $region81: #{tpu_custom_call.1} parent=0
    _
  %s15 = ssub.s32 1, %s13
  %s16 = scalar_select 0, %s15, %s13
  $region1: #{tpu_custom_call.1} parent=0
    #allocation4 [shape = 'u8[8192]{0}', space=vmem, size = 0x2000, scoped, tag = 'output window, operand 0']
    #allocation5 [shape = 's32[2]{0}', space=sflag, size = 0x8, scoped, tag = 'scoped memory for tpu_custom_call.1']
    %17 = vsyncpa [#allocation5], 0
    %s18 = scalar_lea.sflag [#allocation5], 1
    %19 = vsyncpa %s18, 0
    loop: start=0, step=1, limit=4
    $region2: #{tpu_custom_call.1} parent=1 // loop_pre_header
      _
    $region3: #{tpu_custom_call.1} parent=1 // loop_header
      %s21 = sphi 0, %s25
      %p22 = scmp.ge.s32.totalorder %s21, 4
      %s31 = sphi 0, %s33
      %s34 = sphi 0, %s31
      %s35 = sphi 0, %s34
      %s51 = sphi 0, %s35
      %s55 = sphi 0, %s55
      %s57 = sphi 0, %s55
      %s58 = sphi 0, %s57
      %s72 = sphi 0, %s58
      %s76 = sphi 0, %s76
      %s78 = sphi 0, %s76
      %s79 = sphi 0, %s78
      %s93 = sphi 0, %s79
      %s97 = sphi 0, %s97
      %s99 = sphi 0, %s97
      %s100 = sphi 0, %s99
      %s114 = sphi 0, %s100
      %s118 = sphi 0, %s118
      %s120 = sphi 0, %s118
      %s121 = sphi 0, %s120
      %s135 = sphi 0, %s121
      %s139 = sphi 0, %s139
      %s141 = sphi 0, %s139
      %s142 = sphi 0, %s141
      %s156 = sphi 0, %s142
      %s160 = sphi 0, %s160
      %s162 = sphi 0, %s160
      %s163 = sphi 0, %s162
      %s177 = sphi 0, %s163
      %s181 = sphi 0, %s181
      %s183 = sphi 0, %s181
      %s184 = sphi 0, %s183
      %s198 = sphi 0, %s184
      %s202 = sphi 0, %s202
      %s204 = sphi 0, %s202
      %s205 = sphi 0, %s204
      %s219 = sphi 0, %s205
      %s223 = sphi 0, %s223
      %s225 = sphi 0, %s223
      %s226 = sphi 0, %s225
      %s240 = sphi 0, %s226
      %s244 = sphi 0, %s244
      %s246 = sphi 0, %s244
      %s247 = sphi 0, %s246
      %s261 = sphi 0, %s247
      %s265 = sphi 0, %s265
      %s267 = sphi 0, %s265
      %s268 = sphi 0, %s267
      %s282 = sphi 0, %s268
      %s288 = sphi 0, %s290
      %s291 = sphi 0, %s288
      %s292 = sphi 0, %s291
      %s308 = sphi 0, %s292
    $region4: #{tpu_custom_call.1} parent=1 // loop_header_branch
      %24 = sbr.rel (%p22) target = $region8
    $region5: #{tpu_custom_call.1} parent=1 // loop_body
      %s26 = ssub.s32 %s21, 1
      %s27 = ssub.s32 %s21, 2
      %s28 = sadd.s32 %s21, 1
      %s29 = ssub.s32 %s21, %s28
      %p30 = scmp.eq.s32.totalorder %s29, 0
      %s32 = sadd.s32 %s31, 1
      %s33 = scalar_select %p30, %s31, %s32
      %p36 = pneg %p30
      %p37 = scmp.eq.s32.totalorder %s21, 1
      %p38 = por %p36, %p37
      %p39 = scmp.ne.s32.totalorder %s31, %s34
      %p40 = scmp.eq.s32.totalorder %s21, 0
      %p41 = por %p39, %p40
      %p42 = scmp.ne.s32.totalorder %s31, %s34
      %p43 = scmp.eq.s32.totalorder %s26, 1
      %p44 = por %p42, %p43
      %p45 = scmp.ne.s32.totalorder %s34, %s35
      %p46 = scmp.eq.s32.totalorder %s26, 0
      %p47 = por %p45, %p46
      %p48 = scmp.ne.s32.totalorder %s34, %s35
      %p49 = scmp.eq.s32.totalorder %s27, 1
      %p50 = por %p48, %p49
      %p52 = scmp.ne.s32.totalorder %s35, %s51
      %p53 = scmp.eq.s32.totalorder %s27, 0
      %p54 = por %p52, %p53
      %s56 = sadd.s32 %s55, 1
      %p59 = scmp.eq.s32.totalorder %s21, 1
      %p60 = scmp.ne.s32.totalorder %s55, %s57
      %p61 = scmp.eq.s32.totalorder %s21, 0
      %p62 = por %p60, %p61
      %p63 = scmp.ne.s32.totalorder %s55, %s57
      %p64 = scmp.eq.s32.totalorder %s26, 1
      %p65 = por %p63, %p64
      %p66 = scmp.ne.s32.totalorder %s57, %s58
      %p67 = scmp.eq.s32.totalorder %s26, 0
      %p68 = por %p66, %p67
      %p69 = scmp.ne.s32.totalorder %s57, %s58
      %p70 = scmp.eq.s32.totalorder %s27, 1
      %p71 = por %p69, %p70
      %p73 = scmp.ne.s32.totalorder %s58, %s72
      %p74 = scmp.eq.s32.totalorder %s27, 0
      %p75 = por %p73, %p74
      %s77 = sadd.s32 %s76, 1
      %p80 = scmp.eq.s32.totalorder %s21, 1
      %p81 = scmp.ne.s32.totalorder %s76, %s78
      %p82 = scmp.eq.s32.totalorder %s21, 0
      %p83 = por %p81, %p82
      %p84 = scmp.ne.s32.totalorder %s76, %s78
      %p85 = scmp.eq.s32.totalorder %s26, 1
      %p86 = por %p84, %p85
      %p87 = scmp.ne.s32.totalorder %s78, %s79
      %p88 = scmp.eq.s32.totalorder %s26, 0
      %p89 = por %p87, %p88
      %p90 = scmp.ne.s32.totalorder %s78, %s79
      %p91 = scmp.eq.s32.totalorder %s27, 1
      %p92 = por %p90, %p91
      %p94 = scmp.ne.s32.totalorder %s79, %s93
      %p95 = scmp.eq.s32.totalorder %s27, 0
      %p96 = por %p94, %p95
      %s98 = sadd.s32 %s97, 1
      %p101 = scmp.eq.s32.totalorder %s21, 1
      %p102 = scmp.ne.s32.totalorder %s97, %s99
      %p103 = scmp.eq.s32.totalorder %s21, 0
      %p104 = por %p102, %p103
      %p105 = scmp.ne.s32.totalorder %s97, %s99
      %p106 = scmp.eq.s32.totalorder %s26, 1
      %p107 = por %p105, %p106
      %p108 = scmp.ne.s32.totalorder %s99, %s100
      %p109 = scmp.eq.s32.totalorder %s26, 0
      %p110 = por %p108, %p109
      %p111 = scmp.ne.s32.totalorder %s99, %s100
      %p112 = scmp.eq.s32.totalorder %s27, 1
      %p113 = por %p111, %p112
      %p115 = scmp.ne.s32.totalorder %s100, %s114
      %p116 = scmp.eq.s32.totalorder %s27, 0
      %p117 = por %p115, %p116
      %s119 = sadd.s32 %s118, 1
      %p122 = scmp.eq.s32.totalorder %s21, 1
      %p123 = scmp.ne.s32.totalorder %s118, %s120
      %p124 = scmp.eq.s32.totalorder %s21, 0
      %p125 = por %p123, %p124
      %p126 = scmp.ne.s32.totalorder %s118, %s120
      %p127 = scmp.eq.s32.totalorder %s26, 1
      %p128 = por %p126, %p127
      %p129 = scmp.ne.s32.totalorder %s120, %s121
      %p130 = scmp.eq.s32.totalorder %s26, 0
      %p131 = por %p129, %p130
      %p132 = scmp.ne.s32.totalorder %s120, %s121
      %p133 = scmp.eq.s32.totalorder %s27, 1
      %p134 = por %p132, %p133
      %p136 = scmp.ne.s32.totalorder %s121, %s135
      %p137 = scmp.eq.s32.totalorder %s27, 0
      %p138 = por %p136, %p137
      %s140 = sadd.s32 %s139, 1
      %p143 = scmp.eq.s32.totalorder %s21, 1
      %p144 = scmp.ne.s32.totalorder %s139, %s141
      %p145 = scmp.eq.s32.totalorder %s21, 0
      %p146 = por %p144, %p145
      %p147 = scmp.ne.s32.totalorder %s139, %s141
      %p148 = scmp.eq.s32.totalorder %s26, 1
      %p149 = por %p147, %p148
      %p150 = scmp.ne.s32.totalorder %s141, %s142
      %p151 = scmp.eq.s32.totalorder %s26, 0
      %p152 = por %p150, %p151
      %p153 = scmp.ne.s32.totalorder %s141, %s142
      %p154 = scmp.eq.s32.totalorder %s27, 1
      %p155 = por %p153, %p154
      %p157 = scmp.ne.s32.totalorder %s142, %s156
      %p158 = scmp.eq.s32.totalorder %s27, 0
      %p159 = por %p157, %p158
      %s161 = sadd.s32 %s160, 1
      %p164 = scmp.eq.s32.totalorder %s21, 1
      %p165 = scmp.ne.s32.totalorder %s160, %s162
      %p166 = scmp.eq.s32.totalorder %s21, 0
      %p167 = por %p165, %p166
      %p168 = scmp.ne.s32.totalorder %s160, %s162
      %p169 = scmp.eq.s32.totalorder %s26, 1
      %p170 = por %p168, %p169
      %p171 = scmp.ne.s32.totalorder %s162, %s163
      %p172 = scmp.eq.s32.totalorder %s26, 0
      %p173 = por %p171, %p172
      %p174 = scmp.ne.s32.totalorder %s162, %s163
      %p175 = scmp.eq.s32.totalorder %s27, 1
      %p176 = por %p174, %p175
      %p178 = scmp.ne.s32.totalorder %s163, %s177
      %p179 = scmp.eq.s32.totalorder %s27, 0
      %p180 = por %p178, %p179
      %s182 = sadd.s32 %s181, 1
      %p185 = scmp.eq.s32.totalorder %s21, 1
      %p186 = scmp.ne.s32.totalorder %s181, %s183
      %p187 = scmp.eq.s32.totalorder %s21, 0
      %p188 = por %p186, %p187
      %p189 = scmp.ne.s32.totalorder %s181, %s183
      %p190 = scmp.eq.s32.totalorder %s26, 1
      %p191 = por %p189, %p190
      %p192 = scmp.ne.s32.totalorder %s183, %s184
      %p193 = scmp.eq.s32.totalorder %s26, 0
      %p194 = por %p192, %p193
      %p195 = scmp.ne.s32.totalorder %s183, %s184
      %p196 = scmp.eq.s32.totalorder %s27, 1
      %p197 = por %p195, %p196
      %p199 = scmp.ne.s32.totalorder %s184, %s198
      %p200 = scmp.eq.s32.totalorder %s27, 0
      %p201 = por %p199, %p200
      %s203 = sadd.s32 %s202, 1
      %p206 = scmp.eq.s32.totalorder %s21, 1
      %p207 = scmp.ne.s32.totalorder %s202, %s204
      %p208 = scmp.eq.s32.totalorder %s21, 0
      %p209 = por %p207, %p208
      %p210 = scmp.ne.s32.totalorder %s202, %s204
      %p211 = scmp.eq.s32.totalorder %s26, 1
      %p212 = por %p210, %p211
      %p213 = scmp.ne.s32.totalorder %s204, %s205
      %p214 = scmp.eq.s32.totalorder %s26, 0
      %p215 = por %p213, %p214
      %p216 = scmp.ne.s32.totalorder %s204, %s205
      %p217 = scmp.eq.s32.totalorder %s27, 1
      %p218 = por %p216, %p217
      %p220 = scmp.ne.s32.totalorder %s205, %s219
      %p221 = scmp.eq.s32.totalorder %s27, 0
      %p222 = por %p220, %p221
      %s224 = sadd.s32 %s223, 1
      %p227 = scmp.eq.s32.totalorder %s21, 1
      %p228 = scmp.ne.s32.totalorder %s223, %s225
      %p229 = scmp.eq.s32.totalorder %s21, 0
      %p230 = por %p228, %p229
      %p231 = scmp.ne.s32.totalorder %s223, %s225
      %p232 = scmp.eq.s32.totalorder %s26, 1
      %p233 = por %p231, %p232
      %p234 = scmp.ne.s32.totalorder %s225, %s226
      %p235 = scmp.eq.s32.totalorder %s26, 0
      %p236 = por %p234, %p235
      %p237 = scmp.ne.s32.totalorder %s225, %s226
      %p238 = scmp.eq.s32.totalorder %s27, 1
      %p239 = por %p237, %p238
      %p241 = scmp.ne.s32.totalorder %s226, %s240
      %p242 = scmp.eq.s32.totalorder %s27, 0
      %p243 = por %p241, %p242
      %s245 = sadd.s32 %s244, 1
      %p248 = scmp.eq.s32.totalorder %s21, 1
      %p249 = scmp.ne.s32.totalorder %s244, %s246
      %p250 = scmp.eq.s32.totalorder %s21, 0
      %p251 = por %p249, %p250
      %p252 = scmp.ne.s32.totalorder %s244, %s246
      %p253 = scmp.eq.s32.totalorder %s26, 1
      %p254 = por %p252, %p253
      %p255 = scmp.ne.s32.totalorder %s246, %s247
      %p256 = scmp.eq.s32.totalorder %s26, 0
      %p257 = por %p255, %p256
      %p258 = scmp.ne.s32.totalorder %s246, %s247
      %p259 = scmp.eq.s32.totalorder %s27, 1
      %p260 = por %p258, %p259
      %p262 = scmp.ne.s32.totalorder %s247, %s261
      %p263 = scmp.eq.s32.totalorder %s27, 0
      %p264 = por %p262, %p263
      %s266 = sadd.s32 %s265, 1
      %p269 = scmp.eq.s32.totalorder %s21, 1
      %p270 = scmp.ne.s32.totalorder %s265, %s267
      %p271 = scmp.eq.s32.totalorder %s21, 0
      %p272 = por %p270, %p271
      %p273 = scmp.ne.s32.totalorder %s265, %s267
      %p274 = scmp.eq.s32.totalorder %s26, 1
      %p275 = por %p273, %p274
      %p276 = scmp.ne.s32.totalorder %s267, %s268
      %p277 = scmp.eq.s32.totalorder %s26, 0
      %p278 = por %p276, %p277
      %p279 = scmp.ne.s32.totalorder %s267, %s268
      %p280 = scmp.eq.s32.totalorder %s27, 1
      %p281 = por %p279, %p280
      %p283 = scmp.ne.s32.totalorder %s268, %s282
      %p284 = scmp.eq.s32.totalorder %s27, 0
      %p285 = por %p283, %p284
      %s286 = ssub.s32 %s21, %s28
      %p287 = scmp.eq.s32.totalorder %s286, 0
      %s289 = sadd.s32 %s288, 1
      %s290 = scalar_select %p287, %s288, %s289
      %p293 = pneg %p287
      %p294 = scmp.eq.s32.totalorder %s21, 1
      %p295 = por %p293, %p294
      %p296 = scmp.ne.s32.totalorder %s288, %s291
      %p297 = scmp.eq.s32.totalorder %s21, 0
      %p298 = por %p296, %p297
      %p299 = scmp.ne.s32.totalorder %s288, %s291
      %p300 = scmp.eq.s32.totalorder %s26, 1
      %p301 = por %p299, %p300
      %p302 = scmp.ne.s32.totalorder %s291, %s292
      %p303 = scmp.eq.s32.totalorder %s26, 0
      %p304 = por %p302, %p303
      %p305 = scmp.ne.s32.totalorder %s291, %s292
      %p306 = scmp.eq.s32.totalorder %s27, 1
      %p307 = por %p305, %p306
      %p309 = scmp.ne.s32.totalorder %s292, %s308
      %p310 = scmp.eq.s32.totalorder %s27, 0
      %p311 = por %p309, %p310
      %p312 = scmp.le.s32.totalorder 1, %s21
      %p313 = scmp.lt.s32.totalorder %s21, 3
      %p314 = pnand %p312, %p313
      %p315 = pneg %p314
      // Predicated region
      $region9: #{tpu_custom_call.1} parent=5 // pred_check
        _
      $region10: #{tpu_custom_call.1} parent=5 // pred_check_branch
        %317 = sbr.rel (%p314) target = $region12
      $region11: #{tpu_custom_call.1} parent=5 // pred_region
        %s318 = ssub.s32 %s21, 1
        // Predicated region
        $region13: #{tpu_custom_call.1} parent=11 // pred_check
          %p319 = pneg %p68
        $region14: #{tpu_custom_call.1} parent=11 // pred_check_branch
          %321 = sbr.rel (%p319) target = $region16
        $region15: #{tpu_custom_call.1} parent=11 // pred_region
          _
        $region16: #{tpu_custom_call.1} parent=11 // pred_fallthru
          _
        // Predicated region
        $region17: #{tpu_custom_call.1} parent=11 // pred_check
          %p322 = pneg %p89
        $region18: #{tpu_custom_call.1} parent=11 // pred_check_branch
          %324 = sbr.rel (%p322) target = $region20
        $region19: #{tpu_custom_call.1} parent=11 // pred_region
          _
        $region20: #{tpu_custom_call.1} parent=11 // pred_fallthru
          _
        // Predicated region
        $region21: #{tpu_custom_call.1} parent=11 // pred_check
          %p325 = pneg %p110
        $region22: #{tpu_custom_call.1} parent=11 // pred_check_branch
          %327 = sbr.rel (%p325) target = $region24
        $region23: #{tpu_custom_call.1} parent=11 // pred_region
          _
        $region24: #{tpu_custom_call.1} parent=11 // pred_fallthru
          _
        // Predicated region
        $region25: #{tpu_custom_call.1} parent=11 // pred_check
          %p328 = pneg %p131
        $region26: #{tpu_custom_call.1} parent=11 // pred_check_branch
          %330 = sbr.rel (%p328) target = $region28
        $region27: #{tpu_custom_call.1} parent=11 // pred_region
          _
        $region28: #{tpu_custom_call.1} parent=11 // pred_fallthru
          _
        // Predicated region
        $region29: #{tpu_custom_call.1} parent=11 // pred_check
          %p331 = pneg %p152
        $region30: #{tpu_custom_call.1} parent=11 // pred_check_branch
          %333 = sbr.rel (%p331) target = $region32
        $region31: #{tpu_custom_call.1} parent=11 // pred_region
          _
        $region32: #{tpu_custom_call.1} parent=11 // pred_fallthru
          _
        // Predicated region
        $region33: #{tpu_custom_call.1} parent=11 // pred_check
          %p334 = pneg %p173
        $region34: #{tpu_custom_call.1} parent=11 // pred_check_branch
          %336 = sbr.rel (%p334) target = $region36
        $region35: #{tpu_custom_call.1} parent=11 // pred_region
          _
        $region36: #{tpu_custom_call.1} parent=11 // pred_fallthru
          _
        // Predicated region
        $region37: #{tpu_custom_call.1} parent=11 // pred_check
          %p337 = pneg %p194
        $region38: #{tpu_custom_call.1} parent=11 // pred_check_branch
          %339 = sbr.rel (%p337) target = $region40
        $region39: #{tpu_custom_call.1} parent=11 // pred_region
          _
        $region40: #{tpu_custom_call.1} parent=11 // pred_fallthru
          _
        // Predicated region
        $region41: #{tpu_custom_call.1} parent=11 // pred_check
          %p340 = pneg %p215
        $region42: #{tpu_custom_call.1} parent=11 // pred_check_branch
          %342 = sbr.rel (%p340) target = $region44
        $region43: #{tpu_custom_call.1} parent=11 // pred_region
          _
        $region44: #{tpu_custom_call.1} parent=11 // pred_fallthru
          _
        // Predicated region
        $region45: #{tpu_custom_call.1} parent=11 // pred_check
          %p343 = pneg %p236
        $region46: #{tpu_custom_call.1} parent=11 // pred_check_branch
          %345 = sbr.rel (%p343) target = $region48
        $region47: #{tpu_custom_call.1} parent=11 // pred_region
          _
        $region48: #{tpu_custom_call.1} parent=11 // pred_fallthru
          _
        // Predicated region
        $region49: #{tpu_custom_call.1} parent=11 // pred_check
          %p346 = pneg %p257
        $region50: #{tpu_custom_call.1} parent=11 // pred_check_branch
          %348 = sbr.rel (%p346) target = $region52
        $region51: #{tpu_custom_call.1} parent=11 // pred_region
          _
        $region52: #{tpu_custom_call.1} parent=11 // pred_fallthru
          _
        // Predicated region
        $region53: #{tpu_custom_call.1} parent=11 // pred_check
          %p349 = pneg %p278
        $region54: #{tpu_custom_call.1} parent=11 // pred_check_branch
          %351 = sbr.rel (%p349) target = $region56
        $region55: #{tpu_custom_call.1} parent=11 // pred_region
          _
        $region56: #{tpu_custom_call.1} parent=11 // pred_fallthru
          _
      $region12: #{tpu_custom_call.1} parent=5 // pred_fallthru
        _
      %p352 = scmp.lt.s32.totalorder %s21, 2
      // Predicated region
      $region57: #{tpu_custom_call.1} parent=5 // pred_check
        %p353 = pneg %p352
      $region58: #{tpu_custom_call.1} parent=5 // pred_check_branch
        %355 = sbr.rel (%p353) target = $region60
      $region59: #{tpu_custom_call.1} parent=5 // pred_region
        // Predicated region
        $region61: #{tpu_custom_call.1} parent=59 // pred_check
          %p356 = pneg %p41
        $region62: #{tpu_custom_call.1} parent=59 // pred_check_branch
          %358 = sbr.rel (%p356) target = $region64
        $region63: #{tpu_custom_call.1} parent=59 // pred_region
          %p359 = scmp.lt.s32.totalorder %s21, 1
          %s360 = scalar_select %p359, %s21, 1
          %s361 = smul.addr %s360, 8
          %s362 = scalar_lea.vmem %s0, %s361
        $region64: #{tpu_custom_call.1} parent=59 // pred_fallthru
          _
      $region60: #{tpu_custom_call.1} parent=5 // pred_fallthru
        _
      %p363 = scmp.le.s32.totalorder 1, %s21
      %p364 = scmp.lt.s32.totalorder %s21, 3
      %p365 = pnand %p363, %p364
      %p366 = pneg %p365
      // Predicated region
      $region65: #{tpu_custom_call.1} parent=5 // pred_check
        _
      $region66: #{tpu_custom_call.1} parent=5 // pred_check_branch
        %368 = sbr.rel (%p365) target = $region68
      $region67: #{tpu_custom_call.1} parent=5 // pred_region
        %s369 = ssub.s32 %s21, 1
        %p370 = scmp.lt.s32.totalorder %s26, 1
        %s371 = scalar_select %p370, %s26, 1
        %s372 = smul.addr %s371, 8
        %s373 = scalar_lea.vmem %s0, %s372
        %p374 = pneg %p47
        %p375 = pneg %p44
        %p376 = pneg %p68
        %p377 = pneg %p65
        %p378 = pneg %p89
        %p379 = pneg %p86
        %p380 = pneg %p110
        %p381 = pneg %p107
        %p382 = pneg %p131
        %p383 = pneg %p128
        %p384 = pneg %p152
        %p385 = pneg %p149
        %p386 = pneg %p173
        %p387 = pneg %p170
        %p388 = pneg %p194
        %p389 = pneg %p191
        %p390 = pneg %p215
        %p391 = pneg %p212
        %p392 = pneg %p236
        %p393 = pneg %p233
        %p394 = pneg %p257
        %p395 = pneg %p254
        %p396 = pneg %p278
        %p397 = pneg %p275
        %p398 = pneg %p304
        %p399 = pneg %p301
        %s400 = sand.u32 %s291, 1
        %s401 = scalar_lea.sflag [#allocation5], %s400
        %s402 = sand.u32 %s291, 1
        %s403 = smul.addr %s402, 8
        %s404 = scalar_lea.vmem [#allocation4], %s403
        %p405 = scmp.lt.s32.totalorder %s26, 1
        %s406 = scalar_select %p405, %s26, 1
        %s407 = smul.addr %s406, 8
        %s408 = scalar_lea.vmem %s0, %s407
        %v410 = vld [vmem:[%s408] sm:$0xff]
        %v411 = vld [vmem:[%s1] sm:$0x1]
        %v412 = vld [vmem:[%s2] sm:$0x1]
        %vm413 = vcmask 261120
        %v414 = vsel %vm413, %v410, 0.0
        %415 = vadd.xlane.f32.xlu0 %v414
        %v416 = vpop.xlane.xlu0 %415
        %v417 = vrcp.pop 32.0
        %v418 = vmul.f32 32.0, %v417
        %v419 = vsub.f32 1.0, %v418
        %v420 = vmul.f32 %v417, %v419
        %v421 = vadd.f32 %v417, %v420
        %vm422 = vweird.f32 %v417
        %v423 = vsel %vm422, %v417, %v421
        %v424 = vmul.f32 %v416, %v423
        %v425 = vsub.f32 %v410, %v424
        %v426 = vmul.f32 %v425, %v425
        %v427 = vsel %vm413, %v426, 0.0
        %428 = vadd.xlane.f32.xlu0 %v427
        %v429 = vpop.xlane.xlu0 %428
        %v430 = vmul.f32 %v429, %v423
        %v431 = vadd.f32 %v430, 1e-05
        %v432 = vrsqrt.pop %v431
        %v433 = vmul.f32 %v432, %v431
        %v434 = vmul.f32 %v433, %v432
        %v435 = vmul.f32 0.5, %v434
        %v436 = vsub.f32 1.5, %v435
        %v437 = vmul.f32 %v432, %v436
        %vm438 = vweird.f32 %v431
        %vm439 = vweird.f32 %v432
        %vm440 = vmor %vm438, %vm439
        %v441 = vsel %vm440, %v432, %v437
        %v442 = vmul.f32 %v425, %v441
        %v444 = vperm.slane %v411, 0
        %v446 = vmul.f32 %v442, %v444
        %v448 = vperm.slane %v412, 0
        %v450 = vadd.f32 %v446, %v448
        %v451 = vpack.c.bf16 %v450, %v450
        %v452 = vld [vmem:[%s3] sm:$0xf]
        %v453 = vld [vmem:[%s3 + $0x4] sm:$0xf]
        %v454 = vld [vmem:[%s3 + $0x8] sm:$0xf]
        %v455 = vld [vmem:[%s3 + $0xc] sm:$0xf]
        %v460 = vunpack.c.l.b16 %v452
        %v461 = vunpack.c.l.b16 %v453
        %v462 = vunpack.c.l.b16 %v454
        %v463 = vunpack.c.l.b16 %v455
        %v464 = vpack.c.b16 %v461, %v460
        %v465 = vpack.c.b16 %v463, %v462
        %v469 = vsel %vm413, %v451, 0
        %471 = vmatpush.bf16.msra.mxu0 0
        %472 = vmatpush.bf16.msra.mxu0 0
        %473 = vmatpush.bf16.msra.mxu0 0
        %474 = vmatpush.bf16.msra.mxu0 0
        %475 = vmatpush.bf16.msra.mxu0 0
        %476 = vmatpush.bf16.msra.mxu0 0
        %477 = vmatpush.bf16.msra.mxu0 %v465
        %478 = vmatpush.bf16.msra.mxu0 %v464
        %479 = vmatmul.bf16.gmra.mxu0 %v469
        %v480 = vpop.f32.mrf.mxu0
        %v481 = vadd.f32 0.0, %v480
        %v482 = vpop.f32.mrf.mxu0
        %483 = vdwg.mxu0
        %485 = vrot.lane.b32.xlu0 %v481, 120
        %v486 = vpop.permute.xlu0 %485
        %488 = vrot.lane.b32.xlu0 %v481, 112
        %v489 = vpop.permute.xlu0 %488
        %491 = vrot.lane.b32.xlu0 %v481, 104
        %v492 = vpop.permute.xlu0 %491
        %494 = vrot.lane.b32.xlu0 %v481, 96
        %v495 = vpop.permute.xlu0 %494
        %497 = vrot.lane.b32.xlu0 %v481, 88
        %v498 = vpop.permute.xlu0 %497
        %500 = vrot.lane.b32.xlu0 %v481, 80
        %v501 = vpop.permute.xlu0 %500
        %503 = vrot.lane.b32.xlu0 %v481, 72
        %v504 = vpop.permute.xlu0 %503
        %506 = vrot.lane.b32.xlu0 %v481, 64
        %v507 = vpop.permute.xlu0 %506
        %509 = vrot.lane.b32.xlu0 %v481, 56
        %v510 = vpop.permute.xlu0 %509
        %512 = vrot.lane.b32.xlu0 %v481, 48
        %v513 = vpop.permute.xlu0 %512
        %515 = vrot.lane.b32.xlu0 %v481, 40
        %v516 = vpop.permute.xlu0 %515
        %v518 = vrot.slane %v489, 4
        %vm519 = vcmask 1047556
        %v520 = vsel %vm519, %v518, %v481
        %v521 = vrot.slane %v481, 4
        %v522 = vsel %vm519, %v489, %v521
        %v524 = vunpack.c.l.s4 1983009808
        %v525 = vunpack.c.0.s8 %v524
        %v526 = vperm.slane %v520, %v525
        %v528 = vunpack.c.l.s4 1983009808
        %v529 = vunpack.c.0.s8 %v528
        %v530 = vperm.slane %v522, %v529
        %v531 = vrot.slane %v492, 4
        %v532 = vsel %vm519, %v531, %v486
        %v533 = vrot.slane %v486, 4
        %v534 = vsel %vm519, %v492, %v533
        %v536 = vunpack.c.l.s4 1983009808
        %v537 = vunpack.c.0.s8 %v536
        %v538 = vperm.slane %v532, %v537
        %v540 = vunpack.c.l.s4 1983009808
        %v541 = vunpack.c.0.s8 %v540
        %v542 = vperm.slane %v534, %v541
        %v543 = vrot.slane %v501, 4
        %v544 = vsel %vm519, %v543, %v495
        %v545 = vrot.slane %v495, 4
        %v546 = vsel %vm519, %v501, %v545
        %v548 = vunpack.c.l.s4 1983009808
        %v549 = vunpack.c.0.s8 %v548
        %v550 = vperm.slane %v544, %v549
        %v552 = vunpack.c.l.s4 1983009808
        %v553 = vunpack.c.0.s8 %v552
        %v554 = vperm.slane %v546, %v553
        %v555 = vrot.slane %v504, 4
        %v556 = vsel %vm519, %v555, %v498
        %v557 = vrot.slane %v498, 4
        %v558 = vsel %vm519, %v504, %v557
        %v560 = vunpack.c.l.s4 1983009808
        %v561 = vunpack.c.0.s8 %v560
        %v562 = vperm.slane %v556, %v561
        %v564 = vunpack.c.l.s4 1983009808
        %v565 = vunpack.c.0.s8 %v564
        %v566 = vperm.slane %v558, %v565
        %v567 = vrot.slane %v538, 4
        %v568 = vsel %vm519, %v567, %v526
        %v569 = vrot.slane %v526, 4
        %v570 = vsel %vm519, %v538, %v569
        %v572 = vunpack.c.l.s4 1934713408
        %v573 = vunpack.c.0.s8 %v572
        %v574 = vperm.slane %v568, %v573
        %v576 = vunpack.c.l.s4 1934713408
        %v577 = vunpack.c.0.s8 %v576
        %v578 = vperm.slane %v570, %v577
        %v579 = vrot.slane %v542, 4
        %v580 = vsel %vm519, %v579, %v530
        %v581 = vrot.slane %v530, 4
        %v582 = vsel %vm519, %v542, %v581
        %v584 = vunpack.c.l.s4 1934713408
        %v585 = vunpack.c.0.s8 %v584
        %v586 = vperm.slane %v580, %v585
        %v588 = vunpack.c.l.s4 1934713408
        %v589 = vunpack.c.0.s8 %v588
        %v590 = vperm.slane %v582, %v589
        %v591 = vrot.slane %v562, 4
        %v592 = vsel %vm519, %v591, %v550
        %v593 = vrot.slane %v550, 4
        %v594 = vsel %vm519, %v562, %v593
        %v596 = vunpack.c.l.s4 1934713408
        %v597 = vunpack.c.0.s8 %v596
        %v598 = vperm.slane %v592, %v597
        %v600 = vunpack.c.l.s4 1934713408
        %v601 = vunpack.c.0.s8 %v600
        %v602 = vperm.slane %v594, %v601
        %v603 = vrot.slane %v566, 4
        %v604 = vsel %vm519, %v603, %v554
        %v605 = vrot.slane %v554, 4
        %v606 = vsel %vm519, %v566, %v605
        %v608 = vunpack.c.l.s4 1934713408
        %v609 = vunpack.c.0.s8 %v608
        %v610 = vperm.slane %v604, %v609
        %v612 = vunpack.c.l.s4 1934713408
        %v613 = vunpack.c.0.s8 %v612
        %v614 = vperm.slane %v606, %v613
        %v615 = vrot.slane %v598, 4
        %v616 = vsel %vm519, %v615, %v574
        %v617 = vrot.slane %v574, 4
        %v618 = vsel %vm519, %v598, %v617
        %v619 = vrot.slane %v602, 4
        %v620 = vsel %vm519, %v619, %v578
        %v621 = vrot.slane %v578, 4
        %v622 = vsel %vm519, %v602, %v621
        %v623 = vrot.slane %v610, 4
        %v624 = vsel %vm519, %v623, %v586
        %v625 = vrot.slane %v586, 4
        %v626 = vsel %vm519, %v610, %v625
        %v627 = vrot.slane %v614, 4
        %v628 = vsel %vm519, %v627, %v590
        %v629 = vrot.slane %v590, 4
        %v630 = vsel %vm519, %v614, %v629
        %v631 = vrot.slane %v513, 4
        %v632 = vsel %vm519, %v631, %v507
        %v633 = vrot.slane %v507, 4
        %v634 = vsel %vm519, %v513, %v633
        %v636 = vunpack.c.l.s4 1983009808
        %v637 = vunpack.c.0.s8 %v636
        %v638 = vperm.slane %v632, %v637
        %v640 = vunpack.c.l.s4 1983009808
        %v641 = vunpack.c.0.s8 %v640
        %v642 = vperm.slane %v634, %v641
        %v643 = vrot.slane %v516, 4
        %v644 = vsel %vm519, %v643, %v510
        %v645 = vrot.slane %v510, 4
        %v646 = vsel %vm519, %v516, %v645
        %v648 = vunpack.c.l.s4 1983009808
        %v649 = vunpack.c.0.s8 %v648
        %v650 = vperm.slane %v644, %v649
        %v652 = vunpack.c.l.s4 1983009808
        %v653 = vunpack.c.0.s8 %v652
        %v654 = vperm.slane %v646, %v653
        %v655 = vrot.slane %v650, 4
        %v656 = vsel %vm519, %v655, %v638
        %v657 = vrot.slane %v638, 4
        %v658 = vsel %vm519, %v650, %v657
        %v660 = vunpack.c.l.s4 1934713408
        %v661 = vunpack.c.0.s8 %v660
        %v662 = vperm.slane %v656, %v661
        %v664 = vunpack.c.l.s4 1934713408
        %v665 = vunpack.c.0.s8 %v664
        %v666 = vperm.slane %v658, %v665
        %v667 = vrot.slane %v654, 4
        %v668 = vsel %vm519, %v667, %v642
        %v669 = vrot.slane %v642, 4
        %v670 = vsel %vm519, %v654, %v669
        %v672 = vunpack.c.l.s4 1934713408
        %v673 = vunpack.c.0.s8 %v672
        %v674 = vperm.slane %v668, %v673
        %v676 = vunpack.c.l.s4 1934713408
        %v677 = vunpack.c.0.s8 %v676
        %v678 = vperm.slane %v670, %v677
        %v679 = vrot.slane %v662, 4
        %v680 = vsel %vm519, 0.0, %v679
        %v681 = vrot.slane %v666, 4
        %v682 = vsel %vm519, 0.0, %v681
        %v683 = vrot.slane %v674, 4
        %v684 = vsel %vm519, 0.0, %v683
        %v685 = vrot.slane %v678, 4
        %v686 = vsel %vm519, 0.0, %v685
        %v687 = vrot.slane %v620, 4
        %v688 = vsel %vm519, %v687, %v616
        %v689 = vrot.slane %v616, 4
        %v690 = vsel %vm519, %v620, %v689
        %v692 = vunpack.c.l.s4 1983009808
        %v693 = vunpack.c.0.s8 %v692
        %v694 = vperm.slane %v688, %v693
        %v696 = vunpack.c.l.s4 1983009808
        %v697 = vunpack.c.0.s8 %v696
        %v698 = vperm.slane %v690, %v697
        %v699 = vrot.slane %v622, 4
        %v700 = vsel %vm519, %v699, %v618
        %v701 = vrot.slane %v618, 4
        %v702 = vsel %vm519, %v622, %v701
        %v704 = vunpack.c.l.s4 1983009808
        %v705 = vunpack.c.0.s8 %v704
        %v706 = vperm.slane %v700, %v705
        %v708 = vunpack.c.l.s4 1983009808
        %v709 = vunpack.c.0.s8 %v708
        %v710 = vperm.slane %v702, %v709
        %v711 = vrot.slane %v628, 4
        %v712 = vsel %vm519, %v711, %v624
        %v713 = vrot.slane %v624, 4
        %v714 = vsel %vm519, %v628, %v713
        %v716 = vunpack.c.l.s4 1983009808
        %v717 = vunpack.c.0.s8 %v716
        %v718 = vperm.slane %v712, %v717
        %v720 = vunpack.c.l.s4 1983009808
        %v721 = vunpack.c.0.s8 %v720
        %v722 = vperm.slane %v714, %v721
        %v723 = vrot.slane %v630, 4
        %v724 = vsel %vm519, %v723, %v626
        %v725 = vrot.slane %v626, 4
        %v726 = vsel %vm519, %v630, %v725
        %v728 = vunpack.c.l.s4 1983009808
        %v729 = vunpack.c.0.s8 %v728
        %v730 = vperm.slane %v724, %v729
        %v732 = vunpack.c.l.s4 1983009808
        %v733 = vunpack.c.0.s8 %v732
        %v734 = vperm.slane %v726, %v733
        %v735 = vrot.slane %v706, 4
        %v736 = vsel %vm519, %v735, %v694
        %v737 = vrot.slane %v694, 4
        %v738 = vsel %vm519, %v706, %v737
        %v740 = vunpack.c.l.s4 1934713408
        %v741 = vunpack.c.0.s8 %v740
        %v742 = vperm.slane %v736, %v741
        %v744 = vunpack.c.l.s4 1934713408
        %v745 = vunpack.c.0.s8 %v744
        %v746 = vperm.slane %v738, %v745
        %v747 = vrot.slane %v710, 4
        %v748 = vsel %vm519, %v747, %v698
        %v749 = vrot.slane %v698, 4
        %v750 = vsel %vm519, %v710, %v749
        %v752 = vunpack.c.l.s4 1934713408
        %v753 = vunpack.c.0.s8 %v752
        %v754 = vperm.slane %v748, %v753
        %v756 = vunpack.c.l.s4 1934713408
        %v757 = vunpack.c.0.s8 %v756
        %v758 = vperm.slane %v750, %v757
        %v759 = vrot.slane %v730, 4
        %v760 = vsel %vm519, %v759, %v718
        %v761 = vrot.slane %v718, 4
        %v762 = vsel %vm519, %v730, %v761
        %v764 = vunpack.c.l.s4 1934713408
        %v765 = vunpack.c.0.s8 %v764
        %v766 = vperm.slane %v760, %v765
        %v768 = vunpack.c.l.s4 1934713408
        %v769 = vunpack.c.0.s8 %v768
        %v770 = vperm.slane %v762, %v769
        %v771 = vrot.slane %v734, 4
        %v772 = vsel %vm519, %v771, %v722
        %v773 = vrot.slane %v722, 4
        %v774 = vsel %vm519, %v734, %v773
        %v776 = vunpack.c.l.s4 1934713408
        %v777 = vunpack.c.0.s8 %v776
        %v778 = vperm.slane %v772, %v777
        %v780 = vunpack.c.l.s4 1934713408
        %v781 = vunpack.c.0.s8 %v780
        %v782 = vperm.slane %v774, %v781
        %v783 = vrot.slane %v766, 4
        %v784 = vsel %vm519, %v783, %v742
        %v785 = vrot.slane %v742, 4
        %v786 = vsel %vm519, %v766, %v785
        %v787 = vrot.slane %v770, 4
        %v788 = vsel %vm519, %v787, %v746
        %v789 = vrot.slane %v746, 4
        %v790 = vsel %vm519, %v770, %v789
        %v791 = vrot.slane %v778, 4
        %v792 = vsel %vm519, %v791, %v754
        %v793 = vrot.slane %v754, 4
        %v794 = vsel %vm519, %v778, %v793
        %v795 = vrot.slane %v782, 4
        %v796 = vsel %vm519, %v795, %v758
        %v797 = vrot.slane %v758, 4
        %v798 = vsel %vm519, %v782, %v797
        %v799 = vsel %vm519, %v681, %v662
        %v801 = vunpack.c.l.s4 1983009808
        %v802 = vunpack.c.0.s8 %v801
        %v803 = vperm.slane %v799, %v802
        %v804 = vrot.slane %v682, 4
        %v805 = vsel %vm519, %v804, %v680
        %v807 = vunpack.c.l.s4 1983009808
        %v808 = vunpack.c.0.s8 %v807
        %v809 = vperm.slane %v805, %v808
        %v810 = vsel %vm519, %v685, %v674
        %v812 = vunpack.c.l.s4 1983009808
        %v813 = vunpack.c.0.s8 %v812
        %v814 = vperm.slane %v810, %v813
        %v815 = vrot.slane %v686, 4
        %v816 = vsel %vm519, %v815, %v684
        %v818 = vunpack.c.l.s4 1983009808
        %v819 = vunpack.c.0.s8 %v818
        %v820 = vperm.slane %v816, %v819
        %v821 = vrot.slane %v809, 4
        %v822 = vsel %vm519, %v821, %v803
        %v823 = vrot.slane %v803, 4
        %v824 = vsel %vm519, %v809, %v823
        %v826 = vunpack.c.l.s4 1934713408
        %v827 = vunpack.c.0.s8 %v826
        %v828 = vperm.slane %v822, %v827
        %v830 = vunpack.c.l.s4 1934713408
        %v831 = vunpack.c.0.s8 %v830
        %v832 = vperm.slane %v824, %v831
        %v833 = vrot.slane %v820, 4
        %v834 = vsel %vm519, %v833, %v814
        %v835 = vrot.slane %v814, 4
        %v836 = vsel %vm519, %v820, %v835
        %v838 = vunpack.c.l.s4 1934713408
        %v839 = vunpack.c.0.s8 %v838
        %v840 = vperm.slane %v834, %v839
        %v842 = vunpack.c.l.s4 1934713408
        %v843 = vunpack.c.0.s8 %v842
        %v844 = vperm.slane %v836, %v843
        %v845 = vrot.slane %v840, 4
        %v846 = vsel %vm519, %v845, %v828
        %v847 = vrot.slane %v828, 4
        %v848 = vsel %vm519, %v840, %v847
        %v849 = vrot.slane %v844, 4
        %v850 = vsel %vm519, %v849, %v832
        %v851 = vrot.slane %v832, 4
        %v852 = vsel %vm519, %v844, %v851
        %v853 = vpack.c.bf16 %v784, %v784
        %v854 = vpack.c.bf16 %v786, %v786
        %v855 = vpack.c.bf16 %v788, %v788
        %v856 = vpack.c.bf16 %v790, %v790
        %vm857 = vcmask 60416
        %858 = vst.msk [vmem:[#allocation2] sm:$0xf] %vm857, %v853
        %859 = vst.msk [vmem:[#allocation2 + $0x4] sm:$0xf] %vm857, %v854
        %860 = vst.msk [vmem:[#allocation2 + $0x8] sm:$0xf] %vm857, %v855
        %861 = vst.msk [vmem:[#allocation2 + $0xc] sm:$0xf] %vm857, %v856
        %v862 = vpack.c.bf16 %v792, %v792
        %v863 = vpack.c.bf16 %v794, %v794
        %v864 = vpack.c.bf16 %v796, %v796
        %v865 = vpack.c.bf16 %v798, %v798
        %v866 = vpack.c.bf16 %v846, %v846
        %v867 = vpack.c.bf16 %v848, %v848
        %v868 = vpack.c.bf16 %v850, %v850
        %v869 = vpack.c.bf16 %v852, %v852
        %v870 = vld [vmem:[%s4] sm:$0xf]
        %v871 = vld [vmem:[%s4 + $0x4] sm:$0xf]
        %v872 = vld [vmem:[%s4 + $0x8] sm:$0xf]
        %v873 = vld [vmem:[%s4 + $0xc] sm:$0xf]
        %v874 = vld [vmem:[#allocation2] sm:$0xf]
        %v875 = vld [vmem:[#allocation2 + $0x4] sm:$0xf]
        %v876 = vld [vmem:[#allocation2 + $0x8] sm:$0xf]
        %v877 = vld [vmem:[#allocation2 + $0xc] sm:$0xf]
        %vm878 = vcmask 64512
        %v880 = vsel %vm878, %v874, 0
        %v883 = vsel %vm878, %v862, 0
        %885 = vmatpush.bf16.xpose.msra.mxu0 0
        %886 = vmatpush.bf16.xpose.msra.mxu0 0
        %887 = vmatpush.bf16.xpose.msra.mxu0 0
        %888 = vmatpush.bf16.xpose.msra.mxu0 0
        %889 = vmatpush.bf16.xpose.msra.mxu0 0
        %890 = vmatpush.bf16.xpose.msra.mxu0 0
        %891 = vmatpush.bf16.xpose.msra.mxu0 0
        %892 = vmatpush.bf16.xpose.msra.mxu0 %v883
        %893 = vmatmul.bf16.gmra.mxu0 %v880
        %v894 = vpop.f32.mrf.mxu0
        %v895 = vadd.f32 0.0, %v894
        %v896 = vpop.f32.mrf.mxu0
        %897 = vdwg.mxu0
        %v899 = vsel %vm878, %v875, 0
        %v902 = vsel %vm878, %v863, 0
        %904 = vmatpush.bf16.xpose.msra.mxu0 0
        %905 = vmatpush.bf16.xpose.msra.mxu0 0
        %906 = vmatpush.bf16.xpose.msra.mxu0 0
        %907 = vmatpush.bf16.xpose.msra.mxu0 0
        %908 = vmatpush.bf16.xpose.msra.mxu0 0
        %909 = vmatpush.bf16.xpose.msra.mxu0 0
        %910 = vmatpush.bf16.xpose.msra.mxu0 0
        %911 = vmatpush.bf16.xpose.msra.mxu0 %v902
        %912 = vmatmul.bf16.gmra.mxu0 %v899
        %v913 = vpop.f32.mrf.mxu0
        %v914 = vadd.f32 0.0, %v913
        %v915 = vpop.f32.mrf.mxu0
        %916 = vdwg.mxu0
        %v918 = vsel %vm878, %v876, 0
        %v921 = vsel %vm878, %v864, 0
        %923 = vmatpush.bf16.xpose.msra.mxu0 0
        %924 = vmatpush.bf16.xpose.msra.mxu0 0
        %925 = vmatpush.bf16.xpose.msra.mxu0 0
        %926 = vmatpush.bf16.xpose.msra.mxu0 0
        %927 = vmatpush.bf16.xpose.msra.mxu0 0
        %928 = vmatpush.bf16.xpose.msra.mxu0 0
        %929 = vmatpush.bf16.xpose.msra.mxu0 0
        %930 = vmatpush.bf16.xpose.msra.mxu0 %v921
        %931 = vmatmul.bf16.gmra.mxu0 %v918
        %v932 = vpop.f32.mrf.mxu0
        %v933 = vadd.f32 0.0, %v932
        %v934 = vpop.f32.mrf.mxu0
        %935 = vdwg.mxu0
        %v937 = vsel %vm878, %v877, 0
        %v940 = vsel %vm878, %v865, 0
        %942 = vmatpush.bf16.xpose.msra.mxu0 0
        %943 = vmatpush.bf16.xpose.msra.mxu0 0
        %944 = vmatpush.bf16.xpose.msra.mxu0 0
        %945 = vmatpush.bf16.xpose.msra.mxu0 0
        %946 = vmatpush.bf16.xpose.msra.mxu0 0
        %947 = vmatpush.bf16.xpose.msra.mxu0 0
        %948 = vmatpush.bf16.xpose.msra.mxu0 0
        %949 = vmatpush.bf16.xpose.msra.mxu0 %v940
        %950 = vmatmul.bf16.gmra.mxu0 %v937
        %v951 = vpop.f32.mrf.mxu0
        %v952 = vadd.f32 0.0, %v951
        %v953 = vpop.f32.mrf.mxu0
        %954 = vdwg.mxu0
        %v955 = vsel %vm878, %v895, -inf
        %956 = vmax.xlane.f32.xlu0 %v955
        %v957 = vpop.xlane.xlu0 %956
        %v958 = vsel %vm878, %v914, -inf
        %959 = vmax.xlane.f32.xlu0 %v958
        %v960 = vpop.xlane.xlu0 %959
        %v961 = vsel %vm878, %v933, -inf
        %962 = vmax.xlane.f32.xlu0 %v961
        %v963 = vpop.xlane.xlu0 %962
        %v964 = vsel %vm878, %v952, -inf
        %965 = vmax.xlane.f32.xlu0 %v964
        %v966 = vpop.xlane.xlu0 %965
        %v967 = vsub.f32 %v895, %v957
        %v968 = vsub.f32 %v914, %v960
        %v969 = vsub.f32 %v933, %v963
        %v970 = vsub.f32 %v952, %v966
        %v971 = vmul.f32 %v967, 1.442695
        %v972 = vpow.pop %v971
        %v973 = vmul.f32 %v968, 1.442695
        %v974 = vpow.pop %v973
        %v975 = vmul.f32 %v969, 1.442695
        %v976 = vpow.pop %v975
        %v977 = vmul.f32 %v970, 1.442695
        %v978 = vpow.pop %v977
        %v979 = vsel %vm878, %v972, 0.0
        %980 = vadd.xlane.f32.xlu0 %v979
        %v981 = vpop.xlane.xlu0 %980
        %v982 = vsel %vm878, %v974, 0.0
        %983 = vadd.xlane.f32.xlu0 %v982
        %v984 = vpop.xlane.xlu0 %983
        %v985 = vsel %vm878, %v976, 0.0
        %986 = vadd.xlane.f32.xlu0 %v985
        %v987 = vpop.xlane.xlu0 %986
        %v988 = vsel %vm878, %v978, 0.0
        %989 = vadd.xlane.f32.xlu0 %v988
        %v990 = vpop.xlane.xlu0 %989
        %v991 = vrcp.pop %v981
        %v992 = vrcp.pop %v984
        %v993 = vrcp.pop %v987
        %v994 = vrcp.pop %v990
        %v995 = vmul.f32 %v972, %v991
        %v996 = vmul.f32 %v974, %v992
        %v997 = vmul.f32 %v976, %v993
        %v998 = vmul.f32 %v978, %v994
        %v999 = vpack.c.bf16 %v995, %v995
        %v1000 = vpack.c.bf16 %v996, %v996
        %v1001 = vpack.c.bf16 %v997, %v997
        %v1002 = vpack.c.bf16 %v998, %v998
        %v1004 = vsel %vm878, %v999, 0
        %vm1006 = vcmask 1043456
        %v1008 = vsel %vm1006, %v866, 0
        %1010 = vmatpush.bf16.msra.mxu0 0
        %1011 = vmatpush.bf16.msra.mxu0 0
        %1012 = vmatpush.bf16.msra.mxu0 0
        %1013 = vmatpush.bf16.msra.mxu0 0
        %1014 = vmatpush.bf16.msra.mxu0 0
        %1015 = vmatpush.bf16.msra.mxu0 0
        %1016 = vmatpush.bf16.msra.mxu0 0
        %1017 = vmatpush.bf16.msra.mxu0 %v1008
        %1018 = vmatmul.bf16.gmra.mxu0 %v1004
        %v1019 = vpop.f32.mrf.mxu0
        %v1020 = vadd.f32 0.0, %v1019
        %v1021 = vpop.f32.mrf.mxu0
        %1022 = vdwg.mxu0
        %v1024 = vsel %vm878, %v1000, 0
        %v1027 = vsel %vm1006, %v867, 0
        %1029 = vmatpush.bf16.msra.mxu0 0
        %1030 = vmatpush.bf16.msra.mxu0 0
        %1031 = vmatpush.bf16.msra.mxu0 0
        %1032 = vmatpush.bf16.msra.mxu0 0
        %1033 = vmatpush.bf16.msra.mxu0 0
        %1034 = vmatpush.bf16.msra.mxu0 0
        %1035 = vmatpush.bf16.msra.mxu0 0
        %1036 = vmatpush.bf16.msra.mxu0 %v1027
        %1037 = vmatmul.bf16.gmra.mxu0 %v1024
        %v1038 = vpop.f32.mrf.mxu0
        %v1039 = vadd.f32 0.0, %v1038
        %v1040 = vpop.f32.mrf.mxu0
        %1041 = vdwg.mxu0
        %v1043 = vsel %vm878, %v1001, 0
        %v1046 = vsel %vm1006, %v868, 0
        %1048 = vmatpush.bf16.msra.mxu0 0
        %1049 = vmatpush.bf16.msra.mxu0 0
        %1050 = vmatpush.bf16.msra.mxu0 0
        %1051 = vmatpush.bf16.msra.mxu0 0
        %1052 = vmatpush.bf16.msra.mxu0 0
        %1053 = vmatpush.bf16.msra.mxu0 0
        %1054 = vmatpush.bf16.msra.mxu0 0
        %1055 = vmatpush.bf16.msra.mxu0 %v1046
        %1056 = vmatmul.bf16.gmra.mxu0 %v1043
        %v1057 = vpop.f32.mrf.mxu0
        %v1058 = vadd.f32 0.0, %v1057
        %v1059 = vpop.f32.mrf.mxu0
        %1060 = vdwg.mxu0
        %v1062 = vsel %vm878, %v1002, 0
        %v1065 = vsel %vm1006, %v869, 0
        %1067 = vmatpush.bf16.msra.mxu0 0
        %1068 = vmatpush.bf16.msra.mxu0 0
        %1069 = vmatpush.bf16.msra.mxu0 0
        %1070 = vmatpush.bf16.msra.mxu0 0
        %1071 = vmatpush.bf16.msra.mxu0 0
        %1072 = vmatpush.bf16.msra.mxu0 0
        %1073 = vmatpush.bf16.msra.mxu0 0
        %1074 = vmatpush.bf16.msra.mxu0 %v1065
        %1075 = vmatmul.bf16.gmra.mxu0 %v1062
        %v1076 = vpop.f32.mrf.mxu0
        %v1077 = vadd.f32 0.0, %v1076
        %v1078 = vpop.f32.mrf.mxu0
        %1079 = vdwg.mxu0
        %v1080 = vrot.slane %v1058, 4
        %v1081 = vsel %vm519, %v1080, %v1020
        %v1082 = vrot.slane %v1020, 4
        %v1083 = vsel %vm519, %v1058, %v1082
        %v1085 = vunpack.c.l.s4 1983009808
        %v1086 = vunpack.c.0.s8 %v1085
        %v1087 = vperm.slane %v1081, %v1086
        %v1089 = vunpack.c.l.s4 1983009808
        %v1090 = vunpack.c.0.s8 %v1089
        %v1091 = vperm.slane %v1083, %v1090
        %v1092 = vrot.slane %v1077, 4
        %v1093 = vsel %vm519, %v1092, %v1039
        %v1094 = vrot.slane %v1039, 4
        %v1095 = vsel %vm519, %v1077, %v1094
        %v1097 = vunpack.c.l.s4 1983009808
        %v1098 = vunpack.c.0.s8 %v1097
        %v1099 = vperm.slane %v1093, %v1098
        %v1101 = vunpack.c.l.s4 1983009808
        %v1102 = vunpack.c.0.s8 %v1101
        %v1103 = vperm.slane %v1095, %v1102
        %v1104 = vrot.slane %v1099, 4
        %v1105 = vsel %vm519, %v1104, %v1087
        %v1106 = vrot.slane %v1087, 4
        %v1107 = vsel %vm519, %v1099, %v1106
        %v1109 = vunpack.c.l.s4 1934713408
        %v1110 = vunpack.c.0.s8 %v1109
        %v1111 = vperm.slane %v1105, %v1110
        %v1113 = vunpack.c.l.s4 1934713408
        %v1114 = vunpack.c.0.s8 %v1113
        %v1115 = vperm.slane %v1107, %v1114
        %v1116 = vrot.slane %v1103, 4
        %v1117 = vsel %vm519, %v1116, %v1091
        %v1118 = vrot.slane %v1091, 4
        %v1119 = vsel %vm519, %v1103, %v1118
        %v1121 = vunpack.c.l.s4 1934713408
        %v1122 = vunpack.c.0.s8 %v1121
        %v1123 = vperm.slane %v1117, %v1122
        %v1125 = vunpack.c.l.s4 1934713408
        %v1126 = vunpack.c.0.s8 %v1125
        %v1127 = vperm.slane %v1119, %v1126
        %v1128 = vrot.slane %v1111, 4
        %v1129 = vsel %vm519, 0.0, %v1128
        %v1130 = vrot.slane %v1115, 4
        %v1131 = vsel %vm519, 0.0, %v1130
        %v1132 = vrot.slane %v1123, 4
        %v1133 = vsel %vm519, 0.0, %v1132
        %v1134 = vrot.slane %v1127, 4
        %v1135 = vsel %vm519, 0.0, %v1134
        %v1136 = vsel %vm519, %v1130, %v1111
        %v1138 = vunpack.c.l.s4 1983009808
        %v1139 = vunpack.c.0.s8 %v1138
        %v1140 = vperm.slane %v1136, %v1139
        %v1141 = vrot.slane %v1131, 4
        %v1142 = vsel %vm519, %v1141, %v1129
        %v1144 = vunpack.c.l.s4 1983009808
        %v1145 = vunpack.c.0.s8 %v1144
        %v1146 = vperm.slane %v1142, %v1145
        %v1147 = vsel %vm519, %v1134, %v1123
        %v1149 = vunpack.c.l.s4 1983009808
        %v1150 = vunpack.c.0.s8 %v1149
        %v1151 = vperm.slane %v1147, %v1150
        %v1152 = vrot.slane %v1135, 4
        %v1153 = vsel %vm519, %v1152, %v1133
        %v1155 = vunpack.c.l.s4 1983009808
        %v1156 = vunpack.c.0.s8 %v1155
        %v1157 = vperm.slane %v1153, %v1156
        %v1158 = vrot.slane %v1146, 4
        %v1159 = vsel %vm519, %v1158, %v1140
        %v1160 = vrot.slane %v1140, 4
        %v1161 = vsel %vm519, %v1146, %v1160
        %v1163 = vunpack.c.l.s4 1934713408
        %v1164 = vunpack.c.0.s8 %v1163
        %v1165 = vperm.slane %v1159, %v1164
        %v1167 = vunpack.c.l.s4 1934713408
        %v1168 = vunpack.c.0.s8 %v1167
        %v1169 = vperm.slane %v1161, %v1168
        %v1170 = vrot.slane %v1157, 4
        %v1171 = vsel %vm519, %v1170, %v1151
        %v1172 = vrot.slane %v1151, 4
        %v1173 = vsel %vm519, %v1157, %v1172
        %v1175 = vunpack.c.l.s4 1934713408
        %v1176 = vunpack.c.0.s8 %v1175
        %v1177 = vperm.slane %v1171, %v1176
        %v1179 = vunpack.c.l.s4 1934713408
        %v1180 = vunpack.c.0.s8 %v1179
        %v1181 = vperm.slane %v1173, %v1180
        %v1182 = vrot.slane %v1177, 4
        %v1183 = vsel %vm519, %v1182, %v1165
        %v1184 = vrot.slane %v1165, 4
        %v1185 = vsel %vm519, %v1177, %v1184
        %v1186 = vrot.slane %v1181, 4
        %v1187 = vsel %vm519, %v1186, %v1169
        %v1188 = vrot.slane %v1169, 4
        %v1189 = vsel %vm519, %v1181, %v1188
        %1191 = vrot.lane.b32.xlu0 %v1185, 8
        %v1192 = vpop.permute.xlu0 %1191
        %1195 = vrot.lane.b32.xlu0 %v1187, 16
        %v1196 = vpop.permute.xlu0 %1195
        %1199 = vrot.lane.b32.xlu0 %v1189, 24
        %v1200 = vpop.permute.xlu0 %1199
        %v1202 = vsel %vm878, %v1183, %v1192
        %vm1203 = vcmask 130048
        %v1204 = vsel %vm1203, %v1202, %v1196
        %vm1205 = vcmask 195584
        %v1206 = vsel %vm1205, %v1204, %v1200
        %v1207 = vpack.c.bf16 %v1206, %v1206
        %v1212 = vunpack.c.l.b16 %v870
        %v1213 = vunpack.c.l.b16 %v871
        %v1214 = vunpack.c.l.b16 %v872
        %v1215 = vunpack.c.l.b16 %v873
        %v1216 = vpack.c.b16 %v1213, %v1212
        %v1217 = vpack.c.b16 %v1215, %v1214
        %v1221 = vsel %vm413, %v1207, 0
        %1223 = vmatpush.bf16.msra.mxu0 0
        %1224 = vmatpush.bf16.msra.mxu0 0
        %1225 = vmatpush.bf16.msra.mxu0 0
        %1226 = vmatpush.bf16.msra.mxu0 0
        %1227 = vmatpush.bf16.msra.mxu0 0
        %1228 = vmatpush.bf16.msra.mxu0 0
        %1229 = vmatpush.bf16.msra.mxu0 %v1217
        %1230 = vmatpush.bf16.msra.mxu0 %v1216
        %1231 = vmatmul.bf16.gmra.mxu0 %v1221
        %v1232 = vpop.f32.mrf.mxu0
        %v1233 = vadd.f32 0.0, %v1232
        %v1234 = vpop.f32.mrf.mxu0
        %1235 = vdwg.mxu0
        %1236 = vst.msk [vmem:[#allocation3] sm:$0xff] %vm413, %v1233
        %v1237 = vld [vmem:[#allocation3] sm:$0xff]
        %v1238 = vld [vmem:[%s5] sm:$0x1]
        %v1240 = vperm.slane %v1238, 0
        %v1242 = vadd.f32 %v1237, %v1240
        %v1243 = vadd.f32 %v410, %v1242
        %v1244 = vld [vmem:[%s6] sm:$0x1]
        %v1245 = vld [vmem:[%s7] sm:$0x1]
        %v1246 = vsel %vm413, %v1243, 0.0
        %1247 = vadd.xlane.f32.xlu0 %v1246
        %v1248 = vpop.xlane.xlu0 %1247
        %v1249 = vmul.f32 %v1248, %v423
        %v1250 = vsub.f32 %v1243, %v1249
        %v1251 = vmul.f32 %v1250, %v1250
        %v1252 = vsel %vm413, %v1251, 0.0
        %1253 = vadd.xlane.f32.xlu0 %v1252
        %v1254 = vpop.xlane.xlu0 %1253
        %v1255 = vmul.f32 %v1254, %v423
        %v1256 = vadd.f32 %v1255, 1e-05
        %v1257 = vrsqrt.pop %v1256
        %v1258 = vmul.f32 %v1257, %v1256
        %v1259 = vmul.f32 %v1258, %v1257
        %v1260 = vmul.f32 0.5, %v1259
        %v1261 = vsub.f32 1.5, %v1260
        %v1262 = vmul.f32 %v1257, %v1261
        %vm1263 = vweird.f32 %v1256
        %vm1264 = vweird.f32 %v1257
        %vm1265 = vmor %vm1263, %vm1264
        %v1266 = vsel %vm1265, %v1257, %v1262
        %v1267 = vmul.f32 %v1250, %v1266
        %v1269 = vperm.slane %v1244, 0
        %v1271 = vmul.f32 %v1267, %v1269
        %v1273 = vperm.slane %v1245, 0
        %v1275 = vadd.f32 %v1271, %v1273
        %v1276 = vpack.c.bf16 %v1275, %v1275
        %v1277 = vld [vmem:[%s8] sm:$0xf]
        %v1278 = vld [vmem:[%s8 + $0x4] sm:$0xf]
        %v1279 = vld [vmem:[%s8 + $0x8] sm:$0xf]
        %v1280 = vld [vmem:[%s8 + $0xc] sm:$0xf]
        %v1281 = vld [vmem:[%s9] sm:$0x1]
        %v1283 = vperm.slane %v1281, 0
        %v1289 = vunpack.c.l.b16 %v1277
        %v1290 = vunpack.c.l.b16 %v1278
        %v1291 = vunpack.c.l.b16 %v1279
        %v1292 = vunpack.c.l.b16 %v1280
        %v1293 = vpack.c.b16 %v1290, %v1289
        %v1294 = vpack.c.b16 %v1292, %v1291
        %v1298 = vsel %vm413, %v1276, 0
        %1300 = vmatpush.bf16.msra.mxu0 0
        %1301 = vmatpush.bf16.msra.mxu0 0
        %1302 = vmatpush.bf16.msra.mxu0 0
        %1303 = vmatpush.bf16.msra.mxu0 0
        %1304 = vmatpush.bf16.msra.mxu0 0
        %1305 = vmatpush.bf16.msra.mxu0 0
        %1306 = vmatpush.bf16.msra.mxu0 %v1294
        %1307 = vmatpush.bf16.msra.mxu0 %v1293
        %1308 = vmatmul.bf16.gmra.mxu0 %v1298
        %v1309 = vpop.f32.mrf.mxu0
        %v1310 = vadd.f32 %v1283, %v1309
        %v1311 = vpop.f32.mrf.mxu0
        %1312 = vdwg.mxu0
        %v1313 = vmul.f32 %v1310, 0.5
        %v1314 = vrcp.pop 1.4142135
        %v1315 = vmul.f32 1.4142135, %v1314
        %v1316 = vsub.f32 1.0, %v1315
        %v1317 = vmul.f32 %v1314, %v1316
        %v1318 = vadd.f32 %v1314, %v1317
        %vm1319 = vweird.f32 %v1314
        %v1320 = vsel %vm1319, %v1314, %v1318
        %v1321 = vmul.f32 %v1310, %v1320
        %v1322 = vmul.f32 %v1321, %v1321
        %v1323 = vmin.f32 16.0, %v1322
        %v1324 = vmul.f32 %v1323, 2.1237322e-06
        %v1325 = vadd.f32 %v1324, 0.00028619796
        %v1326 = vmul.f32 %v1323, %v1325
        %v1327 = vadd.f32 %v1326, 0.0036580483
        %v1328 = vmul.f32 %v1323, %v1327
        %v1329 = vadd.f32 %v1328, 0.05243302
        %v1330 = vmul.f32 %v1323, %v1329
        %v1331 = vadd.f32 %v1330, 0.18741608
        %v1332 = vmul.f32 %v1323, %v1331
        %v1333 = vadd.f32 %v1332, 1.1283791
        %v1334 = vmul.f32 %v1321, %v1333
        %v1335 = vmul.f32 %v1323, 3.8918573e-05
        %v1336 = vadd.f32 %v1335, 0.001143296
        %v1337 = vmul.f32 %v1323, %v1336
        %v1338 = vadd.f32 %v1337, 0.014752088
        %v1339 = vmul.f32 %v1323, %v1338
        %v1340 = vadd.f32 %v1339, 0.112945676
        %v1341 = vmul.f32 %v1323, %v1340
        %v1342 = vadd.f32 %v1341, 0.4994258
        %v1343 = vmul.f32 %v1323, %v1342
        %v1344 = vadd.f32 %v1343, 1.0
        %v1345 = vrcp.pop %v1344
        %v1346 = vmul.f32 %v1344, %v1345
        %v1347 = vsub.f32 1.0, %v1346
        %v1348 = vmul.f32 %v1345, %v1347
        %v1349 = vadd.f32 %v1345, %v1348
        %vm1350 = vweird.f32 %v1344
        %vm1351 = vweird.f32 %v1345
        %vm1352 = vmor %vm1350, %vm1351
        %v1353 = vsel %vm1352, %v1345, %v1349
        %v1354 = vand.u32 2147483647, %v1344
        %vm1355 = vcmp.eq.f32.partialorder %v1354, 8.507059e+37
        %v1356 = vand.u32 %v1344, 2147483648
        %v1357 = vor.u32 1.1754944e-38, %v1356
        %v1358 = vsel %vm1355, %v1357, %v1353
        %v1359 = vmul.f32 %v1334, %v1358
        %v1360 = vmin.f32 %v1359, 1.0
        %v1361 = vmax.f32 %v1360, -1.0
        %v1362 = vadd.f32 %v1361, 1.0
        %v1363 = vmul.f32 %v1313, %v1362
        %v1364 = vpack.c.bf16 %v1363, %v1363
        %v1365 = vld [vmem:[%s10] sm:$0xf]
        %v1366 = vld [vmem:[%s10 + $0x4] sm:$0xf]
        %v1367 = vld [vmem:[%s10 + $0x8] sm:$0xf]
        %v1368 = vld [vmem:[%s10 + $0xc] sm:$0xf]
        %v1369 = vld [vmem:[%s10 + $0x10] sm:$0xf]
        %v1370 = vld [vmem:[%s10 + $0x14] sm:$0xf]
        %v1371 = vld [vmem:[%s10 + $0x18] sm:$0xf]
        %v1372 = vld [vmem:[%s10 + $0x1c] sm:$0xf]
        %v1373 = vld [vmem:[%s10 + $0x20] sm:$0xf]
        %v1374 = vld [vmem:[%s10 + $0x24] sm:$0xf]
        %v1375 = vld [vmem:[%s10 + $0x28] sm:$0xf]
        %v1376 = vld [vmem:[%s10 + $0x2c] sm:$0xf]
        %v1377 = vld [vmem:[%s10 + $0x30] sm:$0xf]
        %v1378 = vld [vmem:[%s10 + $0x34] sm:$0xf]
        %v1379 = vld [vmem:[%s10 + $0x38] sm:$0xf]
        %v1380 = vld [vmem:[%s10 + $0x3c] sm:$0xf]
        %v1381 = vld [vmem:[%s11] sm:$0x1]
        %v1383 = vperm.slane %v1381, 0
        %v1401 = vunpack.c.l.b16 %v1365
        %v1402 = vunpack.c.l.b16 %v1366
        %v1403 = vunpack.c.l.b16 %v1367
        %v1404 = vunpack.c.l.b16 %v1368
        %v1405 = vunpack.c.l.b16 %v1369
        %v1406 = vunpack.c.l.b16 %v1370
        %v1407 = vunpack.c.l.b16 %v1371
        %v1408 = vunpack.c.l.b16 %v1372
        %v1409 = vunpack.c.l.b16 %v1373
        %v1410 = vunpack.c.l.b16 %v1374
        %v1411 = vunpack.c.l.b16 %v1375
        %v1412 = vunpack.c.l.b16 %v1376
        %v1413 = vunpack.c.l.b16 %v1377
        %v1414 = vunpack.c.l.b16 %v1378
        %v1415 = vunpack.c.l.b16 %v1379
        %v1416 = vunpack.c.l.b16 %v1380
        %v1417 = vpack.c.b16 %v1402, %v1401
        %v1418 = vpack.c.b16 %v1404, %v1403
        %v1419 = vpack.c.b16 %v1406, %v1405
        %v1420 = vpack.c.b16 %v1408, %v1407
        %v1421 = vpack.c.b16 %v1410, %v1409
        %v1422 = vpack.c.b16 %v1412, %v1411
        %v1423 = vpack.c.b16 %v1414, %v1413
        %v1424 = vpack.c.b16 %v1416, %v1415
        %1433 = vmatpush.bf16.msra.mxu0 %v1424
        %1434 = vmatpush.bf16.msra.mxu0 %v1423
        %1435 = vmatpush.bf16.msra.mxu0 %v1422
        %1436 = vmatpush.bf16.msra.mxu0 %v1421
        %1437 = vmatpush.bf16.msra.mxu0 %v1420
        %1438 = vmatpush.bf16.msra.mxu0 %v1419
        %1439 = vmatpush.bf16.msra.mxu0 %v1418
        %1440 = vmatpush.bf16.msra.mxu0 %v1417
        %1441 = vmatmul.bf16.gmra.mxu0 %v1364
        %v1442 = vpop.f32.mrf.mxu0
        %v1443 = vadd.f32 %v1383, %v1442
        %v1444 = vpop.f32.mrf.mxu0
        %1445 = vdwg.mxu0
        %v1446 = vadd.f32 %v1243, %v1443
        %1447 = vst.msk [vmem:[%s404] sm:$0xff] %vm413, %v1446
        %s1448 = sand.u32 %s291, 1
        %s1449 = scalar_lea.sflag [#allocation5], %s1448
        %s1450 = sand.u32 %s291, 1
        %s1451 = smul.addr %s1450, 8
        %s1452 = scalar_lea.vmem [#allocation4], %s1451
        // Predicated region
        $region69: #{tpu_custom_call.1} parent=67 // pred_check
          %p1453 = pneg %p301
        $region70: #{tpu_custom_call.1} parent=67 // pred_check_branch
          %1455 = sbr.rel (%p1453) target = $region72
        $region71: #{tpu_custom_call.1} parent=67 // pred_region
          %1457 = vsyncadd %s1449, 0
          %s1458 = smul.addr %s26, 8
          %s1459 = scalar_lea.hbm %s12, %s1458
          %s1461 = sshll.u32 %s1452, 4
          %s1462 = int_to_ptr.vmem [resolvable:$true] %s1461
          %s1463 = sshll.u32 %s1459, 4
          %s1464 = int_to_ptr.hbm [resolvable:$true] %s1463
          %1466 = dma.vmem_to_hbm [thread:$0]  %s1462, 128, %s1464, %s1449
        $region72: #{tpu_custom_call.1} parent=67 // pred_fallthru
          _
      $region68: #{tpu_custom_call.1} parent=5 // pred_fallthru
        _
      %p1467 = scmp.le.s32.totalorder 2, %s21
      // Predicated region
      $region73: #{tpu_custom_call.1} parent=5 // pred_check
        %p1468 = pneg %p1467
      $region74: #{tpu_custom_call.1} parent=5 // pred_check_branch
        %1470 = sbr.rel (%p1468) target = $region76
      $region75: #{tpu_custom_call.1} parent=5 // pred_region
        %s1471 = ssub.s32 %s21, 2
        // Predicated region
        $region77: #{tpu_custom_call.1} parent=75 // pred_check
          %p1472 = pneg %p307
        $region78: #{tpu_custom_call.1} parent=75 // pred_check_branch
          %1474 = sbr.rel (%p1472) target = $region80
        $region79: #{tpu_custom_call.1} parent=75 // pred_region
          %s1475 = sand.u32 %s292, 1
          %s1476 = scalar_lea.sflag [#allocation5], %s1475
          %s1477 = sand.u32 %s292, 1
          %s1478 = smul.addr %s1477, 8
          %s1479 = scalar_lea.vmem [#allocation4], %s1478
          %1481 = dma.done %s1476, 128
        $region80: #{tpu_custom_call.1} parent=75 // pred_fallthru
          _
      $region76: #{tpu_custom_call.1} parent=5 // pred_fallthru
        _
    $region6: #{tpu_custom_call.1} parent=1 // loop_footer
      %s25 = sadd.s32 1, %s21
    $region7: #{tpu_custom_call.1} parent=1 // loop_footer_branch
      %20 = sbr.rel target = $region3
    $region8: #{tpu_custom_call.1} parent=1 // loop_exit
      _
    %1482 = vsyncpa [#allocation5], 1
    %s1483 = scalar_lea.sflag [#allocation5], 1
    %1484 = vsyncpa %s1483, 1

</llo_original>
